<compile_context>
chip_gen: v7x
topology: tpu7x:2x2x1
jax: 0.10.0
libtpu: 0.0.40
codegen_flags: <defaults>
</compile_context>

<pallas_src>
import functools

import jax
import jax.numpy as jnp
from jax.experimental import pallas as pl
from jax.experimental.pallas import tpu as pltpu


_VMEM_SPEC = pl.BlockSpec(memory_space=pltpu.MemorySpace.VMEM)


# ---------------------------------------------------------------------------
# Fused Pallas kernel
# ---------------------------------------------------------------------------

def _fused_kernel(x_ref, h0_ref, c0_ref, *refs, num_layers, n_dense):
    """Fused stacked-LSTM + MLP forward.

    x_ref:   (T*B, Din0)   flat time-major input (row order t*B + b)
    h0/c0:   (L, B, H)
    per layer l (3 refs): wih_l (Din_l, 4H), whh_l (H, 4H), b_l (1, 4H) = (b_ih + b_hh)
    then: wd (n_dense, H, H), bd (n_dense, 1, H), wo (H, O), bo (1, O)
    outputs: out (T*B, O), hn (L, B, H), cn (L, B, H)
    """
    L = num_layers
    _, B, H = h0_ref.shape
    T = x_ref.shape[0] // B

    layer_refs = refs[:3 * L]
    wd_ref, bd_ref, wo_ref, bo_ref = refs[3 * L:3 * L + 4]
    out_ref, hn_ref, cn_ref = refs[3 * L + 4:3 * L + 7]

    # Hoist all loop-invariant weight loads.
    wih = [layer_refs[3 * l + 0][...] for l in range(L)]    # (Din_l, 4H)
    whh = [layer_refs[3 * l + 1][...] for l in range(L)]    # (H, 4H)   merged gates
    bias = [layer_refs[3 * l + 2][...] for l in range(L)]   # (1, 4H)

    # Layer-0 input projection hoisted out of the recurrence: one GEMM over all T*B rows,
    # bias fused in.  Gate order along the 4H lanes: i, f, g, o.
    xg0 = jnp.dot(x_ref[...], wih[0], preferred_element_type=jnp.float32) + bias[0]

    h = [h0_ref[l] for l in range(L)]                       # (B, H) each
    c = [c0_ref[l] for l in range(L)]
    xg_stage = [None] * L        # staged per-step input projection for layers l > 0
    y_last = [None] * T          # last layer's per-step hidden states (stay in registers)

    # Wavefront over (layer, time): macro-step u runs layer l at time t = u - l.
    # Layers are visited in reverse order so a staged xg is consumed before being
    # overwritten by the producing layer's next step.
    for u in range(T + L - 1):
        for l in range(L - 1, -1, -1):
            t = u - l
            if t < 0 or t >= T:
                continue
            if l == 0:
                xg_t = xg0[t * B:(t + 1) * B]               # lane-dense row slice
            else:
                xg_t = xg_stage[l]
            # Single merged-gate matmul per step: (B, H) @ (H, 4H) -> (B, 4H).
            gates = xg_t + jnp.dot(h[l], whh[l], preferred_element_type=jnp.float32)
            sg = jax.nn.sigmoid(gates)                      # one EUP pass: i, f, o lanes
            g_t = jnp.tanh(gates[:, 2 * H:3 * H])           # g lanes only
            c[l] = sg[:, H:2 * H] * c[l] + sg[:, 0:H] * g_t
            h[l] = sg[:, 3 * H:4 * H] * jnp.tanh(c[l])
            if l + 1 < L:
                # Stage the next layer's input projection now; it is consumed one
                # macro-step later, so it sits off that layer's recurrent critical path.
                xg_stage[l + 1] = (jnp.dot(h[l], wih[l + 1],
                                           preferred_element_type=jnp.float32)
                                   + bias[l + 1])
            else:
                y_last[t] = h[l]

    for l in range(L):
        hn_ref[l] = h[l]
        cn_ref[l] = c[l]

    # Dense/ReLU stack + output Linear on the flat (T*B, H) activation slab.
    a = jnp.concatenate(y_last, axis=0)                     # (T*B, H), one-time pack
    for d in range(n_dense):                                # static unroll
        a = jnp.maximum(
            jnp.dot(a, wd_ref[d], preferred_element_type=jnp.float32) + bd_ref[d], 0.0)
    out_ref[...] = jnp.dot(a, wo_ref[...], preferred_element_type=jnp.float32) + bo_ref[...]


# ---------------------------------------------------------------------------
# One-time parameter preprocessing (outside the per-call path)
# ---------------------------------------------------------------------------

def prepare_params(params, num_layers):
    prep = {}
    for l in range(num_layers):
        w_ih = params[f"w_ih_{l}"]                           # (4H, Din), gates i,f,g,o
        w_hh = params[f"w_hh_{l}"]                           # (4H, H)
        prep[f"wih_{l}"] = jnp.transpose(w_ih)               # (Din, 4H)
        prep[f"whh_{l}"] = jnp.transpose(w_hh)               # (H, 4H)   merged gates
        prep[f"b_{l}"] = (params[f"b_ih_{l}"] + params[f"b_hh_{l}"])[None, :]   # (1, 4H)
    prep["wd"] = jnp.stack([jnp.transpose(w) for w in params["dense_w"]])       # (nd,H,H)
    prep["bd"] = jnp.stack([b[None, :] for b in params["dense_b"]])             # (nd,1,H)
    prep["wo"] = jnp.transpose(params["w_out"])                                 # (H, O)
    prep["bo"] = params["b_out"][None, :]                                       # (1, O)
    return prep


# ---------------------------------------------------------------------------
# Forward wrapper
# ---------------------------------------------------------------------------

@functools.partial(jax.jit, static_argnames=("num_layers", "n_dense"))
def lstm_stacked_forward(prep, inputs, hidden, *, num_layers, n_dense):
    """Pallas equivalent of LSTMStacked.forward(inputs, hidden)."""
    h0, c0 = hidden                                          # (L, B, H) each
    B, T, D = inputs.shape
    L, _, H = h0.shape
    O = prep["wo"].shape[1]

    # Flat time-major input slab; row order is (t*B + b).
    x_flat = jnp.transpose(inputs, (1, 0, 2)).reshape(T * B, D)

    args = [x_flat, h0, c0]
    for l in range(num_layers):
        args += [prep[f"wih_{l}"], prep[f"whh_{l}"], prep[f"b_{l}"]]
    args += [prep["wd"], prep["bd"], prep["wo"], prep["bo"]]

    kernel = functools.partial(_fused_kernel, num_layers=num_layers, n_dense=n_dense)
    out_flat, hn, cn = pl.pallas_call(
        kernel,
        out_shape=(jax.ShapeDtypeStruct((T * B, O), jnp.float32),
                   jax.ShapeDtypeStruct((L, B, H), jnp.float32),
                   jax.ShapeDtypeStruct((L, B, H), jnp.float32)),
        in_specs=[_VMEM_SPEC] * len(args),
        out_specs=(_VMEM_SPEC, _VMEM_SPEC, _VMEM_SPEC),
    )(*args)
    out = jnp.transpose(out_flat.reshape(T, B, O), (1, 0, 2))   # (B, T, O)
    return out, (hn, cn)


# ---------------------------------------------------------------------------
# Pure-JAX reference (for correctness check only)
# ---------------------------------------------------------------------------

def reference_forward(params, inputs, hidden, num_layers):
    h0_all, c0_all = hidden
    x = inputs                                               # (B, T, Din)
    hn_list, cn_list = [], []
    for l in range(num_layers):
        w_ih, w_hh = params[f"w_ih_{l}"], params[f"w_hh_{l}"]
        b = params[f"b_ih_{l}"] + params[f"b_hh_{l}"]
        H = w_hh.shape[1]
        h, c = h0_all[l], c0_all[l]
        ys = []
        for t in range(x.shape[1]):
            gates = x[:, t, :] @ w_ih.T + h @ w_hh.T + b
            i = jax.nn.sigmoid(gates[:, 0 * H:1 * H])
            f = jax.nn.sigmoid(gates[:, 1 * H:2 * H])
            g = jnp.tanh(gates[:, 2 * H:3 * H])
            o = jax.nn.sigmoid(gates[:, 3 * H:4 * H])
            c = f * c + i * g
            h = o * jnp.tanh(c)
            ys.append(h)
        x = jnp.stack(ys, axis=1)
        hn_list.append(h)
        cn_list.append(c)
    out = x
    for w, b in zip(params["dense_w"], params["dense_b"]):
        out = jnp.maximum(out @ w.T + b, 0.0)
    out = out @ params["w_out"].T + params["b_out"]
    return out, (jnp.stack(hn_list), jnp.stack(cn_list))


# ---------------------------------------------------------------------------
# Main
# ---------------------------------------------------------------------------

if __name__ == "__main__":
    config = dict(input_dim=4, hidden_dim=32, n_lstm_layer=2,
                  n_dense_layer=2, output_dim=4)
    B, T = 2, 8
    D, H, L = config["input_dim"], config["hidden_dim"], config["n_lstm_layer"]
    ND, O = config["n_dense_layer"], config["output_dim"]

    key = jax.random.PRNGKey(0)
    keys = iter(jax.random.split(key, 64))
    scale = 1.0 / jnp.sqrt(H)

    params = {}
    for l in range(L):
        din = D if l == 0 else H
        params[f"w_ih_{l}"] = scale * jax.random.normal(next(keys), (4 * H, din), jnp.float32)
        params[f"w_hh_{l}"] = scale * jax.random.normal(next(keys), (4 * H, H), jnp.float32)
        params[f"b_ih_{l}"] = scale * jax.random.normal(next(keys), (4 * H,), jnp.float32)
        params[f"b_hh_{l}"] = scale * jax.random.normal(next(keys), (4 * H,), jnp.float32)
    params["dense_w"] = [scale * jax.random.normal(next(keys), (H, H), jnp.float32)
                         for _ in range(ND)]
    params["dense_b"] = [scale * jax.random.normal(next(keys), (H,), jnp.float32)
                         for _ in range(ND)]
    params["w_out"] = scale * jax.random.normal(next(keys), (O, H), jnp.float32)
    params["b_out"] = scale * jax.random.normal(next(keys), (O,), jnp.float32)

    x = jax.random.normal(next(keys), (B, T, D), jnp.float32)
    h0 = jax.random.normal(next(keys), (L, B, H), jnp.float32)
    c0 = jax.random.normal(next(keys), (L, B, H), jnp.float32)

    # One-time weight preprocessing (kept out of the per-call path).
    prep = prepare_params(params, L)

    out, (hn, cn) = lstm_stacked_forward(prep, x, (h0, c0), num_layers=L, n_dense=ND)
    jax.block_until_ready((out, hn, cn))

    ref_out, (ref_hn, ref_cn) = reference_forward(params, x, (h0, c0), L)
    assert out.shape == (B, T, O) and hn.shape == (L, B, H) and cn.shape == (L, B, H)
    # f32 everywhere; tolerance covers the hoisted-GEMM reassociation differences.
    assert jnp.allclose(out, ref_out, atol=1e-4, rtol=1e-4)
    assert jnp.allclose(hn, ref_hn, atol=1e-4, rtol=1e-4)
    assert jnp.allclose(cn, ref_cn, atol=1e-4, rtol=1e-4)

    print("KERNEL_OK")
</pallas_src>

<mosaic_0001>
module attributes {stable_mosaic.version = 11 : i64} {
  func.func @_fused_kernel(%arg0: memref<16x4xf32, #tpu.memory_space<vmem>>, %arg1: memref<2x2x32xf32, #tpu.memory_space<vmem>>, %arg2: memref<2x2x32xf32, #tpu.memory_space<vmem>>, %arg3: memref<4x128xf32, #tpu.memory_space<vmem>>, %arg4: memref<32x128xf32, #tpu.memory_space<vmem>>, %arg5: memref<1x128xf32, #tpu.memory_space<vmem>>, %arg6: memref<32x128xf32, #tpu.memory_space<vmem>>, %arg7: memref<32x128xf32, #tpu.memory_space<vmem>>, %arg8: memref<1x128xf32, #tpu.memory_space<vmem>>, %arg9: memref<2x32x32xf32, #tpu.memory_space<vmem>>, %arg10: memref<2x1x32xf32, #tpu.memory_space<vmem>>, %arg11: memref<32x4xf32, #tpu.memory_space<vmem>>, %arg12: memref<1x4xf32, #tpu.memory_space<vmem>>, %arg13: memref<16x4xf32, #tpu.memory_space<vmem>>, %arg14: memref<2x2x32xf32, #tpu.memory_space<vmem>>, %arg15: memref<2x2x32xf32, #tpu.memory_space<vmem>>) attributes {dimension_semantics = [], scalar_prefetch = 0 : i64, scratch_operands = 0 : i64, tpu.core_type = #tpu.core_type<tc>} {
    %c0 = arith.constant 0 : index
    %c0_0 = arith.constant 0 : index
    %0 = vector.load %arg3[%c0, %c0_0] : memref<4x128xf32, #tpu.memory_space<vmem>>, vector<4x128xf32>
    %c0_1 = arith.constant 0 : index
    %c0_2 = arith.constant 0 : index
    %1 = vector.load %arg6[%c0_1, %c0_2] : memref<32x128xf32, #tpu.memory_space<vmem>>, vector<32x128xf32>
    %c0_3 = arith.constant 0 : index
    %c0_4 = arith.constant 0 : index
    %2 = vector.load %arg4[%c0_3, %c0_4] : memref<32x128xf32, #tpu.memory_space<vmem>>, vector<32x128xf32>
    %c0_5 = arith.constant 0 : index
    %c0_6 = arith.constant 0 : index
    %3 = vector.load %arg7[%c0_5, %c0_6] : memref<32x128xf32, #tpu.memory_space<vmem>>, vector<32x128xf32>
    %c0_7 = arith.constant 0 : index
    %c0_8 = arith.constant 0 : index
    %4 = vector.load %arg5[%c0_7, %c0_8] : memref<1x128xf32, #tpu.memory_space<vmem>>, vector<1x128xf32>
    %c0_9 = arith.constant 0 : index
    %c0_10 = arith.constant 0 : index
    %5 = vector.load %arg8[%c0_9, %c0_10] : memref<1x128xf32, #tpu.memory_space<vmem>>, vector<1x128xf32>
    %c0_11 = arith.constant 0 : index
    %c0_12 = arith.constant 0 : index
    %6 = vector.load %arg0[%c0_11, %c0_12] : memref<16x4xf32, #tpu.memory_space<vmem>>, vector<16x4xf32>
    %cst = arith.constant dense<0.000000e+00> : vector<16x128xf32>
    %7 = tpu.matmul %6, %0, %cst {dimension_numbers = #tpu.dot_dimension_numbers<[1], [0], [0], [1], [0, 0, 1, 1], [], []>} : vector<16x4xf32>, vector<4x128xf32>, vector<16x128xf32> -> vector<16x128xf32>
    %8 = vector.broadcast %4 : vector<1x128xf32> to vector<16x128xf32>
    %9 = arith.addf %7, %8 : vector<16x128xf32>
    %c0_13 = arith.constant 0 : index
    %c0_14 = arith.constant 0 : index
    %c0_15 = arith.constant 0 : index
    %10 = vector.load %arg1[%c0_13, %c0_14, %c0_15] : memref<2x2x32xf32, #tpu.memory_space<vmem>>, vector<1x2x32xf32>
    %11 = vector.shape_cast %10 : vector<1x2x32xf32> to vector<2x32xf32>
    %c1 = arith.constant 1 : index
    %c0_16 = arith.constant 0 : index
    %c0_17 = arith.constant 0 : index
    %12 = vector.load %arg1[%c1, %c0_16, %c0_17] : memref<2x2x32xf32, #tpu.memory_space<vmem>>, vector<1x2x32xf32>
    %13 = vector.shape_cast %12 : vector<1x2x32xf32> to vector<2x32xf32>
    %c0_18 = arith.constant 0 : index
    %c0_19 = arith.constant 0 : index
    %c0_20 = arith.constant 0 : index
    %14 = vector.load %arg2[%c0_18, %c0_19, %c0_20] : memref<2x2x32xf32, #tpu.memory_space<vmem>>, vector<1x2x32xf32>
    %15 = vector.shape_cast %14 : vector<1x2x32xf32> to vector<2x32xf32>
    %c1_21 = arith.constant 1 : index
    %c0_22 = arith.constant 0 : index
    %c0_23 = arith.constant 0 : index
    %16 = vector.load %arg2[%c1_21, %c0_22, %c0_23] : memref<2x2x32xf32, #tpu.memory_space<vmem>>, vector<1x2x32xf32>
    %17 = vector.shape_cast %16 : vector<1x2x32xf32> to vector<2x32xf32>
    %18 = vector.extract_strided_slice %9 {offsets = [0, 0], sizes = [2, 128], strides = [1, 1]} : vector<16x128xf32> to vector<2x128xf32>
    %cst_24 = arith.constant dense<0.000000e+00> : vector<2x128xf32>
    %19 = tpu.matmul %11, %2, %cst_24 {dimension_numbers = #tpu.dot_dimension_numbers<[1], [0], [0], [1], [0, 0, 1, 1], [], []>} : vector<2x32xf32>, vector<32x128xf32>, vector<2x128xf32> -> vector<2x128xf32>
    %20 = arith.addf %18, %19 : vector<2x128xf32>
    %21 = arith.negf %20 : vector<2x128xf32>
    %22 = math.exp %21 : vector<2x128xf32>
    %cst_25 = arith.constant 1.000000e+00 : f32
    %23 = vector.broadcast %cst_25 : f32 to vector<2x128xf32>
    %24 = arith.addf %23, %22 : vector<2x128xf32>
    %25 = arith.divf %23, %24 : vector<2x128xf32>
    %26 = vector.extract_strided_slice %20 {offsets = [0, 64], sizes = [2, 32], strides = [1, 1]} : vector<2x128xf32> to vector<2x32xf32>
    %27 = math.tanh %26 : vector<2x32xf32>
    %28 = vector.extract_strided_slice %25 {offsets = [0, 32], sizes = [2, 32], strides = [1, 1]} : vector<2x128xf32> to vector<2x32xf32>
    %29 = arith.mulf %28, %15 : vector<2x32xf32>
    %30 = vector.extract_strided_slice %25 {offsets = [0, 0], sizes = [2, 32], strides = [1, 1]} : vector<2x128xf32> to vector<2x32xf32>
    %31 = arith.mulf %30, %27 : vector<2x32xf32>
    %32 = arith.addf %29, %31 : vector<2x32xf32>
    %33 = vector.extract_strided_slice %25 {offsets = [0, 96], sizes = [2, 32], strides = [1, 1]} : vector<2x128xf32> to vector<2x32xf32>
    %34 = math.tanh %32 : vector<2x32xf32>
    %35 = arith.mulf %33, %34 : vector<2x32xf32>
    %cst_26 = arith.constant dense<0.000000e+00> : vector<2x128xf32>
    %36 = tpu.matmul %35, %1, %cst_26 {dimension_numbers = #tpu.dot_dimension_numbers<[1], [0], [0], [1], [0, 0, 1, 1], [], []>} : vector<2x32xf32>, vector<32x128xf32>, vector<2x128xf32> -> vector<2x128xf32>
    %37 = vector.broadcast %5 : vector<1x128xf32> to vector<2x128xf32>
    %38 = arith.addf %36, %37 : vector<2x128xf32>
    %cst_27 = arith.constant dense<0.000000e+00> : vector<2x128xf32>
    %39 = tpu.matmul %13, %3, %cst_27 {dimension_numbers = #tpu.dot_dimension_numbers<[1], [0], [0], [1], [0, 0, 1, 1], [], []>} : vector<2x32xf32>, vector<32x128xf32>, vector<2x128xf32> -> vector<2x128xf32>
    %40 = arith.addf %38, %39 : vector<2x128xf32>
    %41 = arith.negf %40 : vector<2x128xf32>
    %42 = math.exp %41 : vector<2x128xf32>
    %cst_28 = arith.constant 1.000000e+00 : f32
    %43 = vector.broadcast %cst_28 : f32 to vector<2x128xf32>
    %44 = arith.addf %43, %42 : vector<2x128xf32>
    %45 = arith.divf %43, %44 : vector<2x128xf32>
    %46 = vector.extract_strided_slice %40 {offsets = [0, 64], sizes = [2, 32], strides = [1, 1]} : vector<2x128xf32> to vector<2x32xf32>
    %47 = math.tanh %46 : vector<2x32xf32>
    %48 = vector.extract_strided_slice %45 {offsets = [0, 32], sizes = [2, 32], strides = [1, 1]} : vector<2x128xf32> to vector<2x32xf32>
    %49 = arith.mulf %48, %17 : vector<2x32xf32>
    %50 = vector.extract_strided_slice %45 {offsets = [0, 0], sizes = [2, 32], strides = [1, 1]} : vector<2x128xf32> to vector<2x32xf32>
    %51 = arith.mulf %50, %47 : vector<2x32xf32>
    %52 = arith.addf %49, %51 : vector<2x32xf32>
    %53 = vector.extract_strided_slice %45 {offsets = [0, 96], sizes = [2, 32], strides = [1, 1]} : vector<2x128xf32> to vector<2x32xf32>
    %54 = math.tanh %52 : vector<2x32xf32>
    %55 = arith.mulf %53, %54 : vector<2x32xf32>
    %56 = vector.extract_strided_slice %9 {offsets = [2, 0], sizes = [2, 128], strides = [1, 1]} : vector<16x128xf32> to vector<2x128xf32>
    %cst_29 = arith.constant dense<0.000000e+00> : vector<2x128xf32>
    %57 = tpu.matmul %35, %2, %cst_29 {dimension_numbers = #tpu.dot_dimension_numbers<[1], [0], [0], [1], [0, 0, 1, 1], [], []>} : vector<2x32xf32>, vector<32x128xf32>, vector<2x128xf32> -> vector<2x128xf32>
    %58 = arith.addf %56, %57 : vector<2x128xf32>
    %59 = arith.negf %58 : vector<2x128xf32>
    %60 = math.exp %59 : vector<2x128xf32>
    %cst_30 = arith.constant 1.000000e+00 : f32
    %61 = vector.broadcast %cst_30 : f32 to vector<2x128xf32>
    %62 = arith.addf %61, %60 : vector<2x128xf32>
    %63 = arith.divf %61, %62 : vector<2x128xf32>
    %64 = vector.extract_strided_slice %58 {offsets = [0, 64], sizes = [2, 32], strides = [1, 1]} : vector<2x128xf32> to vector<2x32xf32>
    %65 = math.tanh %64 : vector<2x32xf32>
    %66 = vector.extract_strided_slice %63 {offsets = [0, 32], sizes = [2, 32], strides = [1, 1]} : vector<2x128xf32> to vector<2x32xf32>
    %67 = arith.mulf %66, %32 : vector<2x32xf32>
    %68 = vector.extract_strided_slice %63 {offsets = [0, 0], sizes = [2, 32], strides = [1, 1]} : vector<2x128xf32> to vector<2x32xf32>
    %69 = arith.mulf %68, %65 : vector<2x32xf32>
    %70 = arith.addf %67, %69 : vector<2x32xf32>
    %71 = vector.extract_strided_slice %63 {offsets = [0, 96], sizes = [2, 32], strides = [1, 1]} : vector<2x128xf32> to vector<2x32xf32>
    %72 = math.tanh %70 : vector<2x32xf32>
    %73 = arith.mulf %71, %72 : vector<2x32xf32>
    %cst_31 = arith.constant dense<0.000000e+00> : vector<2x128xf32>
    %74 = tpu.matmul %73, %1, %cst_31 {dimension_numbers = #tpu.dot_dimension_numbers<[1], [0], [0], [1], [0, 0, 1, 1], [], []>} : vector<2x32xf32>, vector<32x128xf32>, vector<2x128xf32> -> vector<2x128xf32>
    %75 = vector.broadcast %5 : vector<1x128xf32> to vector<2x128xf32>
    %76 = arith.addf %74, %75 : vector<2x128xf32>
    %cst_32 = arith.constant dense<0.000000e+00> : vector<2x128xf32>
    %77 = tpu.matmul %55, %3, %cst_32 {dimension_numbers = #tpu.dot_dimension_numbers<[1], [0], [0], [1], [0, 0, 1, 1], [], []>} : vector<2x32xf32>, vector<32x128xf32>, vector<2x128xf32> -> vector<2x128xf32>
    %78 = arith.addf %76, %77 : vector<2x128xf32>
    %79 = arith.negf %78 : vector<2x128xf32>
    %80 = math.exp %79 : vector<2x128xf32>
    %cst_33 = arith.constant 1.000000e+00 : f32
    %81 = vector.broadcast %cst_33 : f32 to vector<2x128xf32>
    %82 = arith.addf %81, %80 : vector<2x128xf32>
    %83 = arith.divf %81, %82 : vector<2x128xf32>
    %84 = vector.extract_strided_slice %78 {offsets = [0, 64], sizes = [2, 32], strides = [1, 1]} : vector<2x128xf32> to vector<2x32xf32>
    %85 = math.tanh %84 : vector<2x32xf32>
    %86 = vector.extract_strided_slice %83 {offsets = [0, 32], sizes = [2, 32], strides = [1, 1]} : vector<2x128xf32> to vector<2x32xf32>
    %87 = arith.mulf %86, %52 : vector<2x32xf32>
    %88 = vector.extract_strided_slice %83 {offsets = [0, 0], sizes = [2, 32], strides = [1, 1]} : vector<2x128xf32> to vector<2x32xf32>
    %89 = arith.mulf %88, %85 : vector<2x32xf32>
    %90 = arith.addf %87, %89 : vector<2x32xf32>
    %91 = vector.extract_strided_slice %83 {offsets = [0, 96], sizes = [2, 32], strides = [1, 1]} : vector<2x128xf32> to vector<2x32xf32>
    %92 = math.tanh %90 : vector<2x32xf32>
    %93 = arith.mulf %91, %92 : vector<2x32xf32>
    %94 = vector.extract_strided_slice %9 {offsets = [4, 0], sizes = [2, 128], strides = [1, 1]} : vector<16x128xf32> to vector<2x128xf32>
    %cst_34 = arith.constant dense<0.000000e+00> : vector<2x128xf32>
    %95 = tpu.matmul %73, %2, %cst_34 {dimension_numbers = #tpu.dot_dimension_numbers<[1], [0], [0], [1], [0, 0, 1, 1], [], []>} : vector<2x32xf32>, vector<32x128xf32>, vector<2x128xf32> -> vector<2x128xf32>
    %96 = arith.addf %94, %95 : vector<2x128xf32>
    %97 = arith.negf %96 : vector<2x128xf32>
    %98 = math.exp %97 : vector<2x128xf32>
    %cst_35 = arith.constant 1.000000e+00 : f32
    %99 = vector.broadcast %cst_35 : f32 to vector<2x128xf32>
    %100 = arith.addf %99, %98 : vector<2x128xf32>
    %101 = arith.divf %99, %100 : vector<2x128xf32>
    %102 = vector.extract_strided_slice %96 {offsets = [0, 64], sizes = [2, 32], strides = [1, 1]} : vector<2x128xf32> to vector<2x32xf32>
    %103 = math.tanh %102 : vector<2x32xf32>
    %104 = vector.extract_strided_slice %101 {offsets = [0, 32], sizes = [2, 32], strides = [1, 1]} : vector<2x128xf32> to vector<2x32xf32>
    %105 = arith.mulf %104, %70 : vector<2x32xf32>
    %106 = vector.extract_strided_slice %101 {offsets = [0, 0], sizes = [2, 32], strides = [1, 1]} : vector<2x128xf32> to vector<2x32xf32>
    %107 = arith.mulf %106, %103 : vector<2x32xf32>
    %108 = arith.addf %105, %107 : vector<2x32xf32>
    %109 = vector.extract_strided_slice %101 {offsets = [0, 96], sizes = [2, 32], strides = [1, 1]} : vector<2x128xf32> to vector<2x32xf32>
    %110 = math.tanh %108 : vector<2x32xf32>
    %111 = arith.mulf %109, %110 : vector<2x32xf32>
    %cst_36 = arith.constant dense<0.000000e+00> : vector<2x128xf32>
    %112 = tpu.matmul %111, %1, %cst_36 {dimension_numbers = #tpu.dot_dimension_numbers<[1], [0], [0], [1], [0, 0, 1, 1], [], []>} : vector<2x32xf32>, vector<32x128xf32>, vector<2x128xf32> -> vector<2x128xf32>
    %113 = vector.broadcast %5 : vector<1x128xf32> to vector<2x128xf32>
    %114 = arith.addf %112, %113 : vector<2x128xf32>
    %cst_37 = arith.constant dense<0.000000e+00> : vector<2x128xf32>
    %115 = tpu.matmul %93, %3, %cst_37 {dimension_numbers = #tpu.dot_dimension_numbers<[1], [0], [0], [1], [0, 0, 1, 1], [], []>} : vector<2x32xf32>, vector<32x128xf32>, vector<2x128xf32> -> vector<2x128xf32>
    %116 = arith.addf %114, %115 : vector<2x128xf32>
    %117 = arith.negf %116 : vector<2x128xf32>
    %118 = math.exp %117 : vector<2x128xf32>
    %cst_38 = arith.constant 1.000000e+00 : f32
    %119 = vector.broadcast %cst_38 : f32 to vector<2x128xf32>
    %120 = arith.addf %119, %118 : vector<2x128xf32>
    %121 = arith.divf %119, %120 : vector<2x128xf32>
    %122 = vector.extract_strided_slice %116 {offsets = [0, 64], sizes = [2, 32], strides = [1, 1]} : vector<2x128xf32> to vector<2x32xf32>
    %123 = math.tanh %122 : vector<2x32xf32>
    %124 = vector.extract_strided_slice %121 {offsets = [0, 32], sizes = [2, 32], strides = [1, 1]} : vector<2x128xf32> to vector<2x32xf32>
    %125 = arith.mulf %124, %90 : vector<2x32xf32>
    %126 = vector.extract_strided_slice %121 {offsets = [0, 0], sizes = [2, 32], strides = [1, 1]} : vector<2x128xf32> to vector<2x32xf32>
    %127 = arith.mulf %126, %123 : vector<2x32xf32>
    %128 = arith.addf %125, %127 : vector<2x32xf32>
    %129 = vector.extract_strided_slice %121 {offsets = [0, 96], sizes = [2, 32], strides = [1, 1]} : vector<2x128xf32> to vector<2x32xf32>
    %130 = math.tanh %128 : vector<2x32xf32>
    %131 = arith.mulf %129, %130 : vector<2x32xf32>
    %132 = vector.extract_strided_slice %9 {offsets = [6, 0], sizes = [2, 128], strides = [1, 1]} : vector<16x128xf32> to vector<2x128xf32>
    %cst_39 = arith.constant dense<0.000000e+00> : vector<2x128xf32>
    %133 = tpu.matmul %111, %2, %cst_39 {dimension_numbers = #tpu.dot_dimension_numbers<[1], [0], [0], [1], [0, 0, 1, 1], [], []>} : vector<2x32xf32>, vector<32x128xf32>, vector<2x128xf32> -> vector<2x128xf32>
    %134 = arith.addf %132, %133 : vector<2x128xf32>
    %135 = arith.negf %134 : vector<2x128xf32>
    %136 = math.exp %135 : vector<2x128xf32>
    %cst_40 = arith.constant 1.000000e+00 : f32
    %137 = vector.broadcast %cst_40 : f32 to vector<2x128xf32>
    %138 = arith.addf %137, %136 : vector<2x128xf32>
    %139 = arith.divf %137, %138 : vector<2x128xf32>
    %140 = vector.extract_strided_slice %134 {offsets = [0, 64], sizes = [2, 32], strides = [1, 1]} : vector<2x128xf32> to vector<2x32xf32>
    %141 = math.tanh %140 : vector<2x32xf32>
    %142 = vector.extract_strided_slice %139 {offsets = [0, 32], sizes = [2, 32], strides = [1, 1]} : vector<2x128xf32> to vector<2x32xf32>
    %143 = arith.mulf %142, %108 : vector<2x32xf32>
    %144 = vector.extract_strided_slice %139 {offsets = [0, 0], sizes = [2, 32], strides = [1, 1]} : vector<2x128xf32> to vector<2x32xf32>
    %145 = arith.mulf %144, %141 : vector<2x32xf32>
    %146 = arith.addf %143, %145 : vector<2x32xf32>
    %147 = vector.extract_strided_slice %139 {offsets = [0, 96], sizes = [2, 32], strides = [1, 1]} : vector<2x128xf32> to vector<2x32xf32>
    %148 = math.tanh %146 : vector<2x32xf32>
    %149 = arith.mulf %147, %148 : vector<2x32xf32>
    %cst_41 = arith.constant dense<0.000000e+00> : vector<2x128xf32>
    %150 = tpu.matmul %149, %1, %cst_41 {dimension_numbers = #tpu.dot_dimension_numbers<[1], [0], [0], [1], [0, 0, 1, 1], [], []>} : vector<2x32xf32>, vector<32x128xf32>, vector<2x128xf32> -> vector<2x128xf32>
    %151 = vector.broadcast %5 : vector<1x128xf32> to vector<2x128xf32>
    %152 = arith.addf %150, %151 : vector<2x128xf32>
    %cst_42 = arith.constant dense<0.000000e+00> : vector<2x128xf32>
    %153 = tpu.matmul %131, %3, %cst_42 {dimension_numbers = #tpu.dot_dimension_numbers<[1], [0], [0], [1], [0, 0, 1, 1], [], []>} : vector<2x32xf32>, vector<32x128xf32>, vector<2x128xf32> -> vector<2x128xf32>
    %154 = arith.addf %152, %153 : vector<2x128xf32>
    %155 = arith.negf %154 : vector<2x128xf32>
    %156 = math.exp %155 : vector<2x128xf32>
    %cst_43 = arith.constant 1.000000e+00 : f32
    %157 = vector.broadcast %cst_43 : f32 to vector<2x128xf32>
    %158 = arith.addf %157, %156 : vector<2x128xf32>
    %159 = arith.divf %157, %158 : vector<2x128xf32>
    %160 = vector.extract_strided_slice %154 {offsets = [0, 64], sizes = [2, 32], strides = [1, 1]} : vector<2x128xf32> to vector<2x32xf32>
    %161 = math.tanh %160 : vector<2x32xf32>
    %162 = vector.extract_strided_slice %159 {offsets = [0, 32], sizes = [2, 32], strides = [1, 1]} : vector<2x128xf32> to vector<2x32xf32>
    %163 = arith.mulf %162, %128 : vector<2x32xf32>
    %164 = vector.extract_strided_slice %159 {offsets = [0, 0], sizes = [2, 32], strides = [1, 1]} : vector<2x128xf32> to vector<2x32xf32>
    %165 = arith.mulf %164, %161 : vector<2x32xf32>
    %166 = arith.addf %163, %165 : vector<2x32xf32>
    %167 = vector.extract_strided_slice %159 {offsets = [0, 96], sizes = [2, 32], strides = [1, 1]} : vector<2x128xf32> to vector<2x32xf32>
    %168 = math.tanh %166 : vector<2x32xf32>
    %169 = arith.mulf %167, %168 : vector<2x32xf32>
    %170 = vector.extract_strided_slice %9 {offsets = [8, 0], sizes = [2, 128], strides = [1, 1]} : vector<16x128xf32> to vector<2x128xf32>
    %cst_44 = arith.constant dense<0.000000e+00> : vector<2x128xf32>
    %171 = tpu.matmul %149, %2, %cst_44 {dimension_numbers = #tpu.dot_dimension_numbers<[1], [0], [0], [1], [0, 0, 1, 1], [], []>} : vector<2x32xf32>, vector<32x128xf32>, vector<2x128xf32> -> vector<2x128xf32>
    %172 = arith.addf %170, %171 : vector<2x128xf32>
    %173 = arith.negf %172 : vector<2x128xf32>
    %174 = math.exp %173 : vector<2x128xf32>
    %cst_45 = arith.constant 1.000000e+00 : f32
    %175 = vector.broadcast %cst_45 : f32 to vector<2x128xf32>
    %176 = arith.addf %175, %174 : vector<2x128xf32>
    %177 = arith.divf %175, %176 : vector<2x128xf32>
    %178 = vector.extract_strided_slice %172 {offsets = [0, 64], sizes = [2, 32], strides = [1, 1]} : vector<2x128xf32> to vector<2x32xf32>
    %179 = math.tanh %178 : vector<2x32xf32>
    %180 = vector.extract_strided_slice %177 {offsets = [0, 32], sizes = [2, 32], strides = [1, 1]} : vector<2x128xf32> to vector<2x32xf32>
    %181 = arith.mulf %180, %146 : vector<2x32xf32>
    %182 = vector.extract_strided_slice %177 {offsets = [0, 0], sizes = [2, 32], strides = [1, 1]} : vector<2x128xf32> to vector<2x32xf32>
    %183 = arith.mulf %182, %179 : vector<2x32xf32>
    %184 = arith.addf %181, %183 : vector<2x32xf32>
    %185 = vector.extract_strided_slice %177 {offsets = [0, 96], sizes = [2, 32], strides = [1, 1]} : vector<2x128xf32> to vector<2x32xf32>
    %186 = math.tanh %184 : vector<2x32xf32>
    %187 = arith.mulf %185, %186 : vector<2x32xf32>
    %cst_46 = arith.constant dense<0.000000e+00> : vector<2x128xf32>
    %188 = tpu.matmul %187, %1, %cst_46 {dimension_numbers = #tpu.dot_dimension_numbers<[1], [0], [0], [1], [0, 0, 1, 1], [], []>} : vector<2x32xf32>, vector<32x128xf32>, vector<2x128xf32> -> vector<2x128xf32>
    %189 = vector.broadcast %5 : vector<1x128xf32> to vector<2x128xf32>
    %190 = arith.addf %188, %189 : vector<2x128xf32>
    %cst_47 = arith.constant dense<0.000000e+00> : vector<2x128xf32>
    %191 = tpu.matmul %169, %3, %cst_47 {dimension_numbers = #tpu.dot_dimension_numbers<[1], [0], [0], [1], [0, 0, 1, 1], [], []>} : vector<2x32xf32>, vector<32x128xf32>, vector<2x128xf32> -> vector<2x128xf32>
    %192 = arith.addf %190, %191 : vector<2x128xf32>
    %193 = arith.negf %192 : vector<2x128xf32>
    %194 = math.exp %193 : vector<2x128xf32>
    %cst_48 = arith.constant 1.000000e+00 : f32
    %195 = vector.broadcast %cst_48 : f32 to vector<2x128xf32>
    %196 = arith.addf %195, %194 : vector<2x128xf32>
    %197 = arith.divf %195, %196 : vector<2x128xf32>
    %198 = vector.extract_strided_slice %192 {offsets = [0, 64], sizes = [2, 32], strides = [1, 1]} : vector<2x128xf32> to vector<2x32xf32>
    %199 = math.tanh %198 : vector<2x32xf32>
    %200 = vector.extract_strided_slice %197 {offsets = [0, 32], sizes = [2, 32], strides = [1, 1]} : vector<2x128xf32> to vector<2x32xf32>
    %201 = arith.mulf %200, %166 : vector<2x32xf32>
    %202 = vector.extract_strided_slice %197 {offsets = [0, 0], sizes = [2, 32], strides = [1, 1]} : vector<2x128xf32> to vector<2x32xf32>
    %203 = arith.mulf %202, %199 : vector<2x32xf32>
    %204 = arith.addf %201, %203 : vector<2x32xf32>
    %205 = vector.extract_strided_slice %197 {offsets = [0, 96], sizes = [2, 32], strides = [1, 1]} : vector<2x128xf32> to vector<2x32xf32>
    %206 = math.tanh %204 : vector<2x32xf32>
    %207 = arith.mulf %205, %206 : vector<2x32xf32>
    %208 = vector.extract_strided_slice %9 {offsets = [10, 0], sizes = [2, 128], strides = [1, 1]} : vector<16x128xf32> to vector<2x128xf32>
    %cst_49 = arith.constant dense<0.000000e+00> : vector<2x128xf32>
    %209 = tpu.matmul %187, %2, %cst_49 {dimension_numbers = #tpu.dot_dimension_numbers<[1], [0], [0], [1], [0, 0, 1, 1], [], []>} : vector<2x32xf32>, vector<32x128xf32>, vector<2x128xf32> -> vector<2x128xf32>
    %210 = arith.addf %208, %209 : vector<2x128xf32>
    %211 = arith.negf %210 : vector<2x128xf32>
    %212 = math.exp %211 : vector<2x128xf32>
    %cst_50 = arith.constant 1.000000e+00 : f32
    %213 = vector.broadcast %cst_50 : f32 to vector<2x128xf32>
    %214 = arith.addf %213, %212 : vector<2x128xf32>
    %215 = arith.divf %213, %214 : vector<2x128xf32>
    %216 = vector.extract_strided_slice %210 {offsets = [0, 64], sizes = [2, 32], strides = [1, 1]} : vector<2x128xf32> to vector<2x32xf32>
    %217 = math.tanh %216 : vector<2x32xf32>
    %218 = vector.extract_strided_slice %215 {offsets = [0, 32], sizes = [2, 32], strides = [1, 1]} : vector<2x128xf32> to vector<2x32xf32>
    %219 = arith.mulf %218, %184 : vector<2x32xf32>
    %220 = vector.extract_strided_slice %215 {offsets = [0, 0], sizes = [2, 32], strides = [1, 1]} : vector<2x128xf32> to vector<2x32xf32>
    %221 = arith.mulf %220, %217 : vector<2x32xf32>
    %222 = arith.addf %219, %221 : vector<2x32xf32>
    %223 = vector.extract_strided_slice %215 {offsets = [0, 96], sizes = [2, 32], strides = [1, 1]} : vector<2x128xf32> to vector<2x32xf32>
    %224 = math.tanh %222 : vector<2x32xf32>
    %225 = arith.mulf %223, %224 : vector<2x32xf32>
    %cst_51 = arith.constant dense<0.000000e+00> : vector<2x128xf32>
    %226 = tpu.matmul %225, %1, %cst_51 {dimension_numbers = #tpu.dot_dimension_numbers<[1], [0], [0], [1], [0, 0, 1, 1], [], []>} : vector<2x32xf32>, vector<32x128xf32>, vector<2x128xf32> -> vector<2x128xf32>
    %227 = vector.broadcast %5 : vector<1x128xf32> to vector<2x128xf32>
    %228 = arith.addf %226, %227 : vector<2x128xf32>
    %cst_52 = arith.constant dense<0.000000e+00> : vector<2x128xf32>
    %229 = tpu.matmul %207, %3, %cst_52 {dimension_numbers = #tpu.dot_dimension_numbers<[1], [0], [0], [1], [0, 0, 1, 1], [], []>} : vector<2x32xf32>, vector<32x128xf32>, vector<2x128xf32> -> vector<2x128xf32>
    %230 = arith.addf %228, %229 : vector<2x128xf32>
    %231 = arith.negf %230 : vector<2x128xf32>
    %232 = math.exp %231 : vector<2x128xf32>
    %cst_53 = arith.constant 1.000000e+00 : f32
    %233 = vector.broadcast %cst_53 : f32 to vector<2x128xf32>
    %234 = arith.addf %233, %232 : vector<2x128xf32>
    %235 = arith.divf %233, %234 : vector<2x128xf32>
    %236 = vector.extract_strided_slice %230 {offsets = [0, 64], sizes = [2, 32], strides = [1, 1]} : vector<2x128xf32> to vector<2x32xf32>
    %237 = math.tanh %236 : vector<2x32xf32>
    %238 = vector.extract_strided_slice %235 {offsets = [0, 32], sizes = [2, 32], strides = [1, 1]} : vector<2x128xf32> to vector<2x32xf32>
    %239 = arith.mulf %238, %204 : vector<2x32xf32>
    %240 = vector.extract_strided_slice %235 {offsets = [0, 0], sizes = [2, 32], strides = [1, 1]} : vector<2x128xf32> to vector<2x32xf32>
    %241 = arith.mulf %240, %237 : vector<2x32xf32>
    %242 = arith.addf %239, %241 : vector<2x32xf32>
    %243 = vector.extract_strided_slice %235 {offsets = [0, 96], sizes = [2, 32], strides = [1, 1]} : vector<2x128xf32> to vector<2x32xf32>
    %244 = math.tanh %242 : vector<2x32xf32>
    %245 = arith.mulf %243, %244 : vector<2x32xf32>
    %246 = vector.extract_strided_slice %9 {offsets = [12, 0], sizes = [2, 128], strides = [1, 1]} : vector<16x128xf32> to vector<2x128xf32>
    %cst_54 = arith.constant dense<0.000000e+00> : vector<2x128xf32>
    %247 = tpu.matmul %225, %2, %cst_54 {dimension_numbers = #tpu.dot_dimension_numbers<[1], [0], [0], [1], [0, 0, 1, 1], [], []>} : vector<2x32xf32>, vector<32x128xf32>, vector<2x128xf32> -> vector<2x128xf32>
    %248 = arith.addf %246, %247 : vector<2x128xf32>
    %249 = arith.negf %248 : vector<2x128xf32>
    %250 = math.exp %249 : vector<2x128xf32>
    %cst_55 = arith.constant 1.000000e+00 : f32
    %251 = vector.broadcast %cst_55 : f32 to vector<2x128xf32>
    %252 = arith.addf %251, %250 : vector<2x128xf32>
    %253 = arith.divf %251, %252 : vector<2x128xf32>
    %254 = vector.extract_strided_slice %248 {offsets = [0, 64], sizes = [2, 32], strides = [1, 1]} : vector<2x128xf32> to vector<2x32xf32>
    %255 = math.tanh %254 : vector<2x32xf32>
    %256 = vector.extract_strided_slice %253 {offsets = [0, 32], sizes = [2, 32], strides = [1, 1]} : vector<2x128xf32> to vector<2x32xf32>
    %257 = arith.mulf %256, %222 : vector<2x32xf32>
    %258 = vector.extract_strided_slice %253 {offsets = [0, 0], sizes = [2, 32], strides = [1, 1]} : vector<2x128xf32> to vector<2x32xf32>
    %259 = arith.mulf %258, %255 : vector<2x32xf32>
    %260 = arith.addf %257, %259 : vector<2x32xf32>
    %261 = vector.extract_strided_slice %253 {offsets = [0, 96], sizes = [2, 32], strides = [1, 1]} : vector<2x128xf32> to vector<2x32xf32>
    %262 = math.tanh %260 : vector<2x32xf32>
    %263 = arith.mulf %261, %262 : vector<2x32xf32>
    %cst_56 = arith.constant dense<0.000000e+00> : vector<2x128xf32>
    %264 = tpu.matmul %263, %1, %cst_56 {dimension_numbers = #tpu.dot_dimension_numbers<[1], [0], [0], [1], [0, 0, 1, 1], [], []>} : vector<2x32xf32>, vector<32x128xf32>, vector<2x128xf32> -> vector<2x128xf32>
    %265 = vector.broadcast %5 : vector<1x128xf32> to vector<2x128xf32>
    %266 = arith.addf %264, %265 : vector<2x128xf32>
    %cst_57 = arith.constant dense<0.000000e+00> : vector<2x128xf32>
    %267 = tpu.matmul %245, %3, %cst_57 {dimension_numbers = #tpu.dot_dimension_numbers<[1], [0], [0], [1], [0, 0, 1, 1], [], []>} : vector<2x32xf32>, vector<32x128xf32>, vector<2x128xf32> -> vector<2x128xf32>
    %268 = arith.addf %266, %267 : vector<2x128xf32>
    %269 = arith.negf %268 : vector<2x128xf32>
    %270 = math.exp %269 : vector<2x128xf32>
    %cst_58 = arith.constant 1.000000e+00 : f32
    %271 = vector.broadcast %cst_58 : f32 to vector<2x128xf32>
    %272 = arith.addf %271, %270 : vector<2x128xf32>
    %273 = arith.divf %271, %272 : vector<2x128xf32>
    %274 = vector.extract_strided_slice %268 {offsets = [0, 64], sizes = [2, 32], strides = [1, 1]} : vector<2x128xf32> to vector<2x32xf32>
    %275 = math.tanh %274 : vector<2x32xf32>
    %276 = vector.extract_strided_slice %273 {offsets = [0, 32], sizes = [2, 32], strides = [1, 1]} : vector<2x128xf32> to vector<2x32xf32>
    %277 = arith.mulf %276, %242 : vector<2x32xf32>
    %278 = vector.extract_strided_slice %273 {offsets = [0, 0], sizes = [2, 32], strides = [1, 1]} : vector<2x128xf32> to vector<2x32xf32>
    %279 = arith.mulf %278, %275 : vector<2x32xf32>
    %280 = arith.addf %277, %279 : vector<2x32xf32>
    %281 = vector.extract_strided_slice %273 {offsets = [0, 96], sizes = [2, 32], strides = [1, 1]} : vector<2x128xf32> to vector<2x32xf32>
    %282 = math.tanh %280 : vector<2x32xf32>
    %283 = arith.mulf %281, %282 : vector<2x32xf32>
    %284 = vector.extract_strided_slice %9 {offsets = [14, 0], sizes = [2, 128], strides = [1, 1]} : vector<16x128xf32> to vector<2x128xf32>
    %cst_59 = arith.constant dense<0.000000e+00> : vector<2x128xf32>
    %285 = tpu.matmul %263, %2, %cst_59 {dimension_numbers = #tpu.dot_dimension_numbers<[1], [0], [0], [1], [0, 0, 1, 1], [], []>} : vector<2x32xf32>, vector<32x128xf32>, vector<2x128xf32> -> vector<2x128xf32>
    %286 = arith.addf %284, %285 : vector<2x128xf32>
    %287 = arith.negf %286 : vector<2x128xf32>
    %288 = math.exp %287 : vector<2x128xf32>
    %cst_60 = arith.constant 1.000000e+00 : f32
    %289 = vector.broadcast %cst_60 : f32 to vector<2x128xf32>
    %290 = arith.addf %289, %288 : vector<2x128xf32>
    %291 = arith.divf %289, %290 : vector<2x128xf32>
    %292 = vector.extract_strided_slice %286 {offsets = [0, 64], sizes = [2, 32], strides = [1, 1]} : vector<2x128xf32> to vector<2x32xf32>
    %293 = math.tanh %292 : vector<2x32xf32>
    %294 = vector.extract_strided_slice %291 {offsets = [0, 32], sizes = [2, 32], strides = [1, 1]} : vector<2x128xf32> to vector<2x32xf32>
    %295 = arith.mulf %294, %260 : vector<2x32xf32>
    %296 = vector.extract_strided_slice %291 {offsets = [0, 0], sizes = [2, 32], strides = [1, 1]} : vector<2x128xf32> to vector<2x32xf32>
    %297 = arith.mulf %296, %293 : vector<2x32xf32>
    %298 = arith.addf %295, %297 : vector<2x32xf32>
    %299 = vector.extract_strided_slice %291 {offsets = [0, 96], sizes = [2, 32], strides = [1, 1]} : vector<2x128xf32> to vector<2x32xf32>
    %300 = math.tanh %298 : vector<2x32xf32>
    %301 = arith.mulf %299, %300 : vector<2x32xf32>
    %cst_61 = arith.constant dense<0.000000e+00> : vector<2x128xf32>
    %302 = tpu.matmul %301, %1, %cst_61 {dimension_numbers = #tpu.dot_dimension_numbers<[1], [0], [0], [1], [0, 0, 1, 1], [], []>} : vector<2x32xf32>, vector<32x128xf32>, vector<2x128xf32> -> vector<2x128xf32>
    %303 = vector.broadcast %5 : vector<1x128xf32> to vector<2x128xf32>
    %304 = arith.addf %302, %303 : vector<2x128xf32>
    %cst_62 = arith.constant dense<0.000000e+00> : vector<2x128xf32>
    %305 = tpu.matmul %283, %3, %cst_62 {dimension_numbers = #tpu.dot_dimension_numbers<[1], [0], [0], [1], [0, 0, 1, 1], [], []>} : vector<2x32xf32>, vector<32x128xf32>, vector<2x128xf32> -> vector<2x128xf32>
    %306 = arith.addf %304, %305 : vector<2x128xf32>
    %307 = arith.negf %306 : vector<2x128xf32>
    %308 = math.exp %307 : vector<2x128xf32>
    %cst_63 = arith.constant 1.000000e+00 : f32
    %309 = vector.broadcast %cst_63 : f32 to vector<2x128xf32>
    %310 = arith.addf %309, %308 : vector<2x128xf32>
    %311 = arith.divf %309, %310 : vector<2x128xf32>
    %312 = vector.extract_strided_slice %306 {offsets = [0, 64], sizes = [2, 32], strides = [1, 1]} : vector<2x128xf32> to vector<2x32xf32>
    %313 = math.tanh %312 : vector<2x32xf32>
    %314 = vector.extract_strided_slice %311 {offsets = [0, 32], sizes = [2, 32], strides = [1, 1]} : vector<2x128xf32> to vector<2x32xf32>
    %315 = arith.mulf %314, %280 : vector<2x32xf32>
    %316 = vector.extract_strided_slice %311 {offsets = [0, 0], sizes = [2, 32], strides = [1, 1]} : vector<2x128xf32> to vector<2x32xf32>
    %317 = arith.mulf %316, %313 : vector<2x32xf32>
    %318 = arith.addf %315, %317 : vector<2x32xf32>
    %319 = vector.extract_strided_slice %311 {offsets = [0, 96], sizes = [2, 32], strides = [1, 1]} : vector<2x128xf32> to vector<2x32xf32>
    %320 = math.tanh %318 : vector<2x32xf32>
    %321 = arith.mulf %319, %320 : vector<2x32xf32>
    %c0_64 = arith.constant 0 : index
    %c0_65 = arith.constant 0 : index
    %c0_66 = arith.constant 0 : index
    %322 = vector.load %arg14[%c0_64, %c0_65, %c0_66] : memref<2x2x32xf32, #tpu.memory_space<vmem>>, vector<1x2x32xf32>
    %323 = vector.shape_cast %322 : vector<1x2x32xf32> to vector<2x32xf32>
    %324 = vector.shape_cast %301 : vector<2x32xf32> to vector<1x2x32xf32>
    tpu.vector_store %arg14[%c0_64, %c0_65, %c0_66], %324 {strides = array<i32>} : memref<2x2x32xf32, #tpu.memory_space<vmem>>, vector<1x2x32xf32>,
    %c0_67 = arith.constant 0 : index
    %c0_68 = arith.constant 0 : index
    %c0_69 = arith.constant 0 : index
    %325 = vector.load %arg15[%c0_67, %c0_68, %c0_69] : memref<2x2x32xf32, #tpu.memory_space<vmem>>, vector<1x2x32xf32>
    %326 = vector.shape_cast %325 : vector<1x2x32xf32> to vector<2x32xf32>
    %327 = vector.shape_cast %298 : vector<2x32xf32> to vector<1x2x32xf32>
    tpu.vector_store %arg15[%c0_67, %c0_68, %c0_69], %327 {strides = array<i32>} : memref<2x2x32xf32, #tpu.memory_space<vmem>>, vector<1x2x32xf32>,
    %c1_70 = arith.constant 1 : index
    %c0_71 = arith.constant 0 : index
    %c0_72 = arith.constant 0 : index
    %328 = vector.load %arg14[%c1_70, %c0_71, %c0_72] : memref<2x2x32xf32, #tpu.memory_space<vmem>>, vector<1x2x32xf32>
    %329 = vector.shape_cast %328 : vector<1x2x32xf32> to vector<2x32xf32>
    %330 = vector.shape_cast %321 : vector<2x32xf32> to vector<1x2x32xf32>
    tpu.vector_store %arg14[%c1_70, %c0_71, %c0_72], %330 {strides = array<i32>} : memref<2x2x32xf32, #tpu.memory_space<vmem>>, vector<1x2x32xf32>,
    %c1_73 = arith.constant 1 : index
    %c0_74 = arith.constant 0 : index
    %c0_75 = arith.constant 0 : index
    %331 = vector.load %arg15[%c1_73, %c0_74, %c0_75] : memref<2x2x32xf32, #tpu.memory_space<vmem>>, vector<1x2x32xf32>
    %332 = vector.shape_cast %331 : vector<1x2x32xf32> to vector<2x32xf32>
    %333 = vector.shape_cast %318 : vector<2x32xf32> to vector<1x2x32xf32>
    tpu.vector_store %arg15[%c1_73, %c0_74, %c0_75], %333 {strides = array<i32>} : memref<2x2x32xf32, #tpu.memory_space<vmem>>, vector<1x2x32xf32>,
    %334 = tpu.concatenate %55, %93, %131, %169, %207, %245, %283, %321 in 0 : vector<2x32xf32>, vector<2x32xf32>, vector<2x32xf32>, vector<2x32xf32>, vector<2x32xf32>, vector<2x32xf32>, vector<2x32xf32>, vector<2x32xf32> -> vector<16x32xf32>
    %c0_76 = arith.constant 0 : index
    %c0_77 = arith.constant 0 : index
    %c0_78 = arith.constant 0 : index
    %335 = vector.load %arg9[%c0_76, %c0_77, %c0_78] : memref<2x32x32xf32, #tpu.memory_space<vmem>>, vector<1x32x32xf32>
    %336 = vector.shape_cast %335 : vector<1x32x32xf32> to vector<32x32xf32>
    %cst_79 = arith.constant dense<0.000000e+00> : vector<16x32xf32>
    %337 = tpu.matmul %334, %336, %cst_79 {dimension_numbers = #tpu.dot_dimension_numbers<[1], [0], [0], [1], [0, 0, 1, 1], [], []>} : vector<16x32xf32>, vector<32x32xf32>, vector<16x32xf32> -> vector<16x32xf32>
    %c0_80 = arith.constant 0 : index
    %c0_81 = arith.constant 0 : index
    %c0_82 = arith.constant 0 : index
    %338 = vector.load %arg10[%c0_80, %c0_81, %c0_82] : memref<2x1x32xf32, #tpu.memory_space<vmem>>, vector<1x1x32xf32>
    %339 = vector.shape_cast %338 : vector<1x1x32xf32> to vector<1x32xf32>
    %340 = vector.broadcast %339 : vector<1x32xf32> to vector<16x32xf32>
    %341 = arith.addf %337, %340 : vector<16x32xf32>
    %cst_83 = arith.constant 0.000000e+00 : f32
    %342 = vector.broadcast %cst_83 : f32 to vector<16x32xf32>
    %343 = arith.maximumf %341, %342 : vector<16x32xf32>
    %c1_84 = arith.constant 1 : index
    %c0_85 = arith.constant 0 : index
    %c0_86 = arith.constant 0 : index
    %344 = vector.load %arg9[%c1_84, %c0_85, %c0_86] : memref<2x32x32xf32, #tpu.memory_space<vmem>>, vector<1x32x32xf32>
    %345 = vector.shape_cast %344 : vector<1x32x32xf32> to vector<32x32xf32>
    %cst_87 = arith.constant dense<0.000000e+00> : vector<16x32xf32>
    %346 = tpu.matmul %343, %345, %cst_87 {dimension_numbers = #tpu.dot_dimension_numbers<[1], [0], [0], [1], [0, 0, 1, 1], [], []>} : vector<16x32xf32>, vector<32x32xf32>, vector<16x32xf32> -> vector<16x32xf32>
    %c1_88 = arith.constant 1 : index
    %c0_89 = arith.constant 0 : index
    %c0_90 = arith.constant 0 : index
    %347 = vector.load %arg10[%c1_88, %c0_89, %c0_90] : memref<2x1x32xf32, #tpu.memory_space<vmem>>, vector<1x1x32xf32>
    %348 = vector.shape_cast %347 : vector<1x1x32xf32> to vector<1x32xf32>
    %349 = vector.broadcast %348 : vector<1x32xf32> to vector<16x32xf32>
    %350 = arith.addf %346, %349 : vector<16x32xf32>
    %cst_91 = arith.constant 0.000000e+00 : f32
    %351 = vector.broadcast %cst_91 : f32 to vector<16x32xf32>
    %352 = arith.maximumf %350, %351 : vector<16x32xf32>
    %c0_92 = arith.constant 0 : index
    %c0_93 = arith.constant 0 : index
    %353 = vector.load %arg11[%c0_92, %c0_93] : memref<32x4xf32, #tpu.memory_space<vmem>>, vector<32x4xf32>
    %cst_94 = arith.constant dense<0.000000e+00> : vector<16x4xf32>
    %354 = tpu.matmul %352, %353, %cst_94 {dimension_numbers = #tpu.dot_dimension_numbers<[1], [0], [0], [1], [0, 0, 1, 1], [], []>} : vector<16x32xf32>, vector<32x4xf32>, vector<16x4xf32> -> vector<16x4xf32>
    %c0_95 = arith.constant 0 : index
    %c0_96 = arith.constant 0 : index
    %355 = vector.load %arg12[%c0_95, %c0_96] : memref<1x4xf32, #tpu.memory_space<vmem>>, vector<1x4xf32>
    %356 = vector.broadcast %355 : vector<1x4xf32> to vector<16x4xf32>
    %357 = arith.addf %354, %356 : vector<16x4xf32>
    %c0_97 = arith.constant 0 : index
    %c0_98 = arith.constant 0 : index
    %358 = vector.load %arg13[%c0_97, %c0_98] : memref<16x4xf32, #tpu.memory_space<vmem>>, vector<16x4xf32>
    tpu.vector_store %arg13[%c0_97, %c0_98], %357 {strides = array<i32>} : memref<16x4xf32, #tpu.memory_space<vmem>>, vector<16x4xf32>,
    return
  }
}

</mosaic_0001>

<llo_original>
// kernel: lstm_stacked_forward.1
$region0: #{lstm_stacked_forward.1}
  #allocation0 [shape = 'u32[]', space=smem, size = 0x4, offset = 0x4, fixed_abs, tag = 'smem constant byte address 0x4 - core index']
  #allocation1 [shape = 'u32[144,128]{1,0:T(1,128)}', space=vmem, size = 0x12000, scoped, tag = 'internal scratch']
  %s0 = inlined_call_operand.vmem [shape: f32[16,4], index: 0, kind: input, shape index: {}]
  %s1 = inlined_call_operand.vmem [shape: f32[2,2,32], index: 1, kind: input, shape index: {}]
  %s2 = inlined_call_operand.vmem [shape: f32[2,2,32], index: 2, kind: input, shape index: {}]
  %s3 = inlined_call_operand.hbm [shape: f32[4,128], index: 3, kind: input, shape index: {}]
  %s4 = inlined_call_operand.hbm [shape: f32[32,128], index: 4, kind: input, shape index: {}]
  %s5 = inlined_call_operand.vmem [shape: f32[1,128], index: 5, kind: input, shape index: {}]
  %s6 = inlined_call_operand.vmem [shape: f32[32,128], index: 6, kind: input, shape index: {}]
  %s7 = inlined_call_operand.hbm [shape: f32[32,128], index: 7, kind: input, shape index: {}]
  %s8 = inlined_call_operand.hbm [shape: f32[1,128], index: 8, kind: input, shape index: {}]
  %s9 = inlined_call_operand.vmem [shape: f32[2,32,32], index: 9, kind: input, shape index: {}]
  %s10 = inlined_call_operand.hbm [shape: f32[2,1,32], index: 10, kind: input, shape index: {}]
  %s11 = inlined_call_operand.vmem [shape: f32[32,4], index: 11, kind: input, shape index: {}]
  %s12 = inlined_call_operand.hbm [shape: f32[1,4], index: 12, kind: input, shape index: {}]
  %s13 = inlined_call_operand.vmem [shape: f32[16,4], index: 13, kind: output, shape index: {0}]
  %s14 = inlined_call_operand.hbm [shape: f32[2,2,32], index: 14, kind: output, shape index: {1}]
  %s15 = inlined_call_operand.hbm [shape: f32[2,2,32], index: 15, kind: output, shape index: {2}]
  %16 = xla_tuple %s13, %s14, %s15
  %s17 = sld [smem:[#allocation0]]
  $region102: #{lstm_stacked_forward.1} parent=0
    _
  %s19 = ssub.s32 1, %s17
  %s20 = scalar_select 0, %s19, %s17
  $region1: #{lstm_stacked_forward.1} parent=0
    #allocation2 [shape = 'u8[2048]{0}', space=vmem, size = 0x800, scoped, tag = 'input window, operand 3, single buffered']
    #allocation3 [shape = 's32[1]{0}', space=sflag, size = 0x4, scoped, tag = 'scoped memory for lstm_stacked_forward.1']
    #allocation4 [shape = 's32[1]{0}', space=sflag, size = 0x4, scoped, tag = 'scoped memory for lstm_stacked_forward.1']
    #allocation5 [shape = 'u8[16384]{0}', space=vmem, size = 0x4000, scoped, tag = 'input window, operand 4, single buffered']
    #allocation6 [shape = 's32[1]{0}', space=sflag, size = 0x4, scoped, tag = 'scoped memory for lstm_stacked_forward.1']
    #allocation7 [shape = 'u8[16384]{0}', space=vmem, size = 0x4000, scoped, tag = 'input window, operand 7, single buffered']
    #allocation8 [shape = 'u8[512]{0}', space=vmem, size = 0x400, scoped, tag = 'input window, operand 8, single buffered']
    #allocation9 [shape = 's32[1]{0}', space=sflag, size = 0x4, scoped, tag = 'scoped memory for lstm_stacked_forward.1']
    #allocation10 [shape = 'u8[1024]{0}', space=vmem, size = 0x400, scoped, tag = 'input window, operand 10, single buffered']
    #allocation11 [shape = 'u8[512]{0}', space=vmem, size = 0x400, scoped, tag = 'input window, operand 12, single buffered']
    #allocation12 [shape = 's32[1]{0}', space=sflag, size = 0x4, scoped, tag = 'scoped memory for lstm_stacked_forward.1']
    #allocation13 [shape = 'u8[2048]{0}', space=vmem, size = 0x800, scoped, tag = 'output window, operand 1, single buffered']
    #allocation14 [shape = 'u8[2048]{0}', space=vmem, size = 0x800, scoped, tag = 'output window, operand 2, single buffered']
    #allocation15 [shape = 's32[1]{0}', space=sflag, size = 0x4, scoped, tag = 'scoped memory for lstm_stacked_forward.1']
    %21 = vsyncpa [#allocation3], 0
    %22 = vsyncpa [#allocation6], 0
    %23 = vsyncpa [#allocation9], 0
    %24 = vsyncpa [#allocation12], 0
    %25 = vsyncpa [#allocation4], 0
    %26 = vsyncpa [#allocation15], 0
    // Predicated region
    $region2: #{lstm_stacked_forward.1} parent=1 // pred_check
      _
    $region3: #{lstm_stacked_forward.1} parent=1 // pred_check_branch
      %28 = sbr.rel (0) target = $region5
    $region4: #{lstm_stacked_forward.1} parent=1 // pred_region
      _
    $region5: #{lstm_stacked_forward.1} parent=1 // pred_fallthru
      _
    // Predicated region
    $region6: #{lstm_stacked_forward.1} parent=1 // pred_check
      _
    $region7: #{lstm_stacked_forward.1} parent=1 // pred_check_branch
      %30 = sbr.rel (0) target = $region9
    $region8: #{lstm_stacked_forward.1} parent=1 // pred_region
      _
    $region9: #{lstm_stacked_forward.1} parent=1 // pred_fallthru
      _
    // Predicated region
    $region10: #{lstm_stacked_forward.1} parent=1 // pred_check
      _
    $region11: #{lstm_stacked_forward.1} parent=1 // pred_check_branch
      %32 = sbr.rel (0) target = $region13
    $region12: #{lstm_stacked_forward.1} parent=1 // pred_region
      _
    $region13: #{lstm_stacked_forward.1} parent=1 // pred_fallthru
      _
    // Predicated region
    $region14: #{lstm_stacked_forward.1} parent=1 // pred_check
      _
    $region15: #{lstm_stacked_forward.1} parent=1 // pred_check_branch
      %34 = sbr.rel (0) target = $region17
    $region16: #{lstm_stacked_forward.1} parent=1 // pred_region
      %s36 = ssub.s32 64, 64
      %37 = vsyncadd [#allocation3], %s36
      %s39 = sshll.u32 [#allocation2], 4
      %s40 = int_to_ptr.vmem [resolvable:$true] %s39
      %42 = dma.hbm_to_vmem [thread:$0]  %s3, 64, %s40, [#allocation3]
    $region17: #{lstm_stacked_forward.1} parent=1 // pred_fallthru
      _
    // Predicated region
    $region18: #{lstm_stacked_forward.1} parent=1 // pred_check
      _
    $region19: #{lstm_stacked_forward.1} parent=1 // pred_check_branch
      %44 = sbr.rel (0) target = $region21
    $region20: #{lstm_stacked_forward.1} parent=1 // pred_region
      %s46 = ssub.s32 512, 512
      %47 = vsyncadd [#allocation6], %s46
      %s48 = sshll.u32 [#allocation5], 4
      %s49 = int_to_ptr.vmem [resolvable:$true] %s48
      %54 = dma.hbm_to_vmem [thread:$0]  %s4, 512, %s49, [#allocation6], 128, 128, 8
    $region21: #{lstm_stacked_forward.1} parent=1 // pred_fallthru
      _
    // Predicated region
    $region22: #{lstm_stacked_forward.1} parent=1 // pred_check
      _
    $region23: #{lstm_stacked_forward.1} parent=1 // pred_check_branch
      %56 = sbr.rel (0) target = $region25
    $region24: #{lstm_stacked_forward.1} parent=1 // pred_region
      _
    $region25: #{lstm_stacked_forward.1} parent=1 // pred_fallthru
      _
    // Predicated region
    $region26: #{lstm_stacked_forward.1} parent=1 // pred_check
      _
    $region27: #{lstm_stacked_forward.1} parent=1 // pred_check_branch
      %58 = sbr.rel (0) target = $region29
    $region28: #{lstm_stacked_forward.1} parent=1 // pred_region
      _
    $region29: #{lstm_stacked_forward.1} parent=1 // pred_fallthru
      _
    // Predicated region
    $region30: #{lstm_stacked_forward.1} parent=1 // pred_check
      _
    $region31: #{lstm_stacked_forward.1} parent=1 // pred_check_branch
      %60 = sbr.rel (0) target = $region33
    $region32: #{lstm_stacked_forward.1} parent=1 // pred_region
      %s62 = ssub.s32 512, 512
      %63 = vsyncadd [#allocation6], %s62
      %s64 = sshll.u32 [#allocation7], 4
      %s65 = int_to_ptr.vmem [resolvable:$true] %s64
      %70 = dma.hbm_to_vmem [thread:$0]  %s7, 512, %s65, [#allocation6], 128, 128, 8
    $region33: #{lstm_stacked_forward.1} parent=1 // pred_fallthru
      _
    // Predicated region
    $region34: #{lstm_stacked_forward.1} parent=1 // pred_check
      _
    $region35: #{lstm_stacked_forward.1} parent=1 // pred_check_branch
      %72 = sbr.rel (0) target = $region37
    $region36: #{lstm_stacked_forward.1} parent=1 // pred_region
      %s74 = ssub.s32 16, 16
      %75 = vsyncadd [#allocation9], %s74
      %s77 = sshll.u32 [#allocation8], 4
      %s78 = int_to_ptr.vmem [resolvable:$true] %s77
      %80 = dma.hbm_to_vmem [thread:$0]  %s8, 16, %s78, [#allocation9]
    $region37: #{lstm_stacked_forward.1} parent=1 // pred_fallthru
      _
    // Predicated region
    $region38: #{lstm_stacked_forward.1} parent=1 // pred_check
      _
    $region39: #{lstm_stacked_forward.1} parent=1 // pred_check_branch
      %82 = sbr.rel (0) target = $region41
    $region40: #{lstm_stacked_forward.1} parent=1 // pred_region
      _
    $region41: #{lstm_stacked_forward.1} parent=1 // pred_fallthru
      _
    // Predicated region
    $region42: #{lstm_stacked_forward.1} parent=1 // pred_check
      _
    $region43: #{lstm_stacked_forward.1} parent=1 // pred_check_branch
      %84 = sbr.rel (0) target = $region45
    $region44: #{lstm_stacked_forward.1} parent=1 // pred_region
      %s86 = ssub.s32 32, 32
      %87 = vsyncadd [#allocation9], %s86
      %s88 = sshll.u32 [#allocation10], 4
      %s89 = int_to_ptr.vmem [resolvable:$true] %s88
      %94 = dma.hbm_to_vmem [thread:$0]  %s10, 32, %s89, [#allocation9], 16, 16, 1
    $region45: #{lstm_stacked_forward.1} parent=1 // pred_fallthru
      _
    // Predicated region
    $region46: #{lstm_stacked_forward.1} parent=1 // pred_check
      _
    $region47: #{lstm_stacked_forward.1} parent=1 // pred_check_branch
      %96 = sbr.rel (0) target = $region49
    $region48: #{lstm_stacked_forward.1} parent=1 // pred_region
      _
    $region49: #{lstm_stacked_forward.1} parent=1 // pred_fallthru
      _
    // Predicated region
    $region50: #{lstm_stacked_forward.1} parent=1 // pred_check
      _
    $region51: #{lstm_stacked_forward.1} parent=1 // pred_check_branch
      %98 = sbr.rel (0) target = $region53
    $region52: #{lstm_stacked_forward.1} parent=1 // pred_region
      %s100 = ssub.s32 16, 16
      %101 = vsyncadd [#allocation12], %s100
      %s103 = sshll.u32 [#allocation11], 4
      %s104 = int_to_ptr.vmem [resolvable:$true] %s103
      %106 = dma.hbm_to_vmem [thread:$0]  %s12, 16, %s104, [#allocation12]
    $region53: #{lstm_stacked_forward.1} parent=1 // pred_fallthru
      _
    // Predicated region
    $region54: #{lstm_stacked_forward.1} parent=1 // pred_check
      _
    $region55: #{lstm_stacked_forward.1} parent=1 // pred_check_branch
      %108 = sbr.rel (0) target = $region57
    $region56: #{lstm_stacked_forward.1} parent=1 // pred_region
      %109 = dma.done [#allocation3], 64
    $region57: #{lstm_stacked_forward.1} parent=1 // pred_fallthru
      _
    // Predicated region
    $region58: #{lstm_stacked_forward.1} parent=1 // pred_check
      _
    $region59: #{lstm_stacked_forward.1} parent=1 // pred_check_branch
      %111 = sbr.rel (0) target = $region61
    $region60: #{lstm_stacked_forward.1} parent=1 // pred_region
      %112 = dma.done [#allocation6], 512
    $region61: #{lstm_stacked_forward.1} parent=1 // pred_fallthru
      _
    // Predicated region
    $region62: #{lstm_stacked_forward.1} parent=1 // pred_check
      _
    $region63: #{lstm_stacked_forward.1} parent=1 // pred_check_branch
      %114 = sbr.rel (0) target = $region65
    $region64: #{lstm_stacked_forward.1} parent=1 // pred_region
      %115 = dma.done [#allocation6], 512
    $region65: #{lstm_stacked_forward.1} parent=1 // pred_fallthru
      _
    // Predicated region
    $region66: #{lstm_stacked_forward.1} parent=1 // pred_check
      _
    $region67: #{lstm_stacked_forward.1} parent=1 // pred_check_branch
      %117 = sbr.rel (0) target = $region69
    $region68: #{lstm_stacked_forward.1} parent=1 // pred_region
      %118 = dma.done [#allocation9], 16
    $region69: #{lstm_stacked_forward.1} parent=1 // pred_fallthru
      _
    // Predicated region
    $region70: #{lstm_stacked_forward.1} parent=1 // pred_check
      _
    $region71: #{lstm_stacked_forward.1} parent=1 // pred_check_branch
      %120 = sbr.rel (0) target = $region73
    $region72: #{lstm_stacked_forward.1} parent=1 // pred_region
      %121 = dma.done [#allocation9], 32
    $region73: #{lstm_stacked_forward.1} parent=1 // pred_fallthru
      _
    // Predicated region
    $region74: #{lstm_stacked_forward.1} parent=1 // pred_check
      _
    $region75: #{lstm_stacked_forward.1} parent=1 // pred_check_branch
      %123 = sbr.rel (0) target = $region77
    $region76: #{lstm_stacked_forward.1} parent=1 // pred_region
      %124 = dma.done [#allocation12], 16
    $region77: #{lstm_stacked_forward.1} parent=1 // pred_fallthru
      _
    %v125 = vld [vmem:[#allocation2] sm:$0xf]
    %v126 = vld [vmem:[%s6] sm:$0xff]
    %v127 = vld [vmem:[%s6 + $0x8] sm:$0xff]
    %v128 = vld [vmem:[%s6 + $0x10] sm:$0xff]
    %v129 = vld [vmem:[%s6 + $0x18] sm:$0xff]
    %v130 = vld [vmem:[#allocation5] sm:$0xff]
    %v131 = vld [vmem:[#allocation5 + $0x8] sm:$0xff]
    %v132 = vld [vmem:[#allocation5 + $0x10] sm:$0xff]
    %v133 = vld [vmem:[#allocation5 + $0x18] sm:$0xff]
    %v134 = vld [vmem:[#allocation7] sm:$0xff]
    %v135 = vld [vmem:[#allocation7 + $0x8] sm:$0xff]
    %v136 = vld [vmem:[#allocation7 + $0x10] sm:$0xff]
    %v137 = vld [vmem:[#allocation7 + $0x18] sm:$0xff]
    %v138 = vld [vmem:[%s5] sm:$0x1]
    %v139 = vld [vmem:[#allocation8] sm:$0x1]
    %v140 = vld [vmem:[%s0] sm:$0xff]
    %v141 = vld [vmem:[%s0 + $0x8] sm:$0xff]
    %v143 = vlaneseq
    %v144 = vshrl.u32 %v143, 7
    %v145 = vsub.s32 0, %v144
    %v146 = vrot.slane %v138, %v145
    %vm148 = vcmask 31744
    %v150 = vsel %vm148, %v140, 0
    %v153 = vsel %vm148, %v141, 0
    %vm155 = vcmask 1043456
    %v157 = vsel %vm155, %v125, 0
    %159 = vmatprep.subr.mxu0 0.0
    %160 = vmatpush1.msra.mxu0 %v157
    %161 = vmatprep.subr.mxu0 0.0
    %162 = vmatpush1.msra.mxu0 0.0
    %163 = vmatprep.subr.mxu0 0.0
    %164 = vmatpush1.msra.mxu0 0.0
    %165 = vmatprep.subr.mxu0 0.0
    %166 = vmatpush1.msra.mxu0 0.0
    %167 = vmatprep.subr.mxu0 0.0
    %168 = vmatpush1.msra.mxu0 0.0
    %169 = vmatprep.subr.mxu0 0.0
    %170 = vmatpush1.msra.mxu0 0.0
    %171 = vmatprep.subr.mxu0 0.0
    %172 = vmatpush1.msra.mxu0 0.0
    %173 = vmatprep.subr.mxu0 0.0
    %174 = vmatpush1.msra.mxu0 0.0
    %175 = vmatprep.subr.mxu0 0.0
    %176 = vmatpush1.msra.mxu0 0.0
    %177 = vmatprep.subr.mxu0 0.0
    %178 = vmatpush1.msra.mxu0 0.0
    %179 = vmatprep.subr.mxu0 0.0
    %180 = vmatpush1.msra.mxu0 0.0
    %181 = vmatprep.subr.mxu0 0.0
    %182 = vmatpush1.msra.mxu0 0.0
    %183 = vmatprep.subr.mxu0 0.0
    %184 = vmatpush1.msra.mxu0 0.0
    %185 = vmatprep.subr.mxu0 0.0
    %186 = vmatpush1.msra.mxu0 0.0
    %187 = vmatprep.subr.mxu0 0.0
    %188 = vmatpush1.msra.mxu0 0.0
    %189 = vmatprep.subr.mxu0 0.0
    %190 = vmatpush1.msra.mxu0 0.0
    %191 = vmatprep.subr.mxu0 0.0
    %192 = vmatpush1.msra.mxu0 0.0
    %193 = vmatprep.subr.mxu0 0.0
    %194 = vmatpush1.msra.mxu0 0.0
    %195 = vmatprep.subr.mxu0 0.0
    %196 = vmatpush1.msra.mxu0 0.0
    %197 = vmatprep.subr.mxu0 0.0
    %198 = vmatpush1.msra.mxu0 0.0
    %199 = vmatprep.subr.mxu0 0.0
    %200 = vmatpush1.msra.mxu0 0.0
    %201 = vmatprep.subr.mxu0 0.0
    %202 = vmatpush1.msra.mxu0 0.0
    %203 = vmatprep.subr.mxu0 0.0
    %204 = vmatpush1.msra.mxu0 0.0
    %205 = vmatprep.subr.mxu0 0.0
    %206 = vmatpush1.msra.mxu0 0.0
    %207 = vmatprep.subr.mxu0 0.0
    %208 = vmatpush1.msra.mxu0 0.0
    %209 = vmatprep.subr.mxu0 0.0
    %210 = vmatpush1.msra.mxu0 0.0
    %211 = vmatprep.subr.mxu0 0.0
    %212 = vmatpush1.msra.mxu0 0.0
    %213 = vmatprep.subr.mxu0 0.0
    %214 = vmatpush1.msra.mxu0 0.0
    %215 = vmatprep.subr.mxu0 0.0
    %216 = vmatpush1.msra.mxu0 0.0
    %217 = vmatprep.subr.mxu0 0.0
    %218 = vmatpush1.msra.mxu0 0.0
    %219 = vmatprep.subr.mxu0 0.0
    %220 = vmatpush1.msra.mxu0 0.0
    %221 = vmatprep.subr.mxu0 0.0
    %222 = vmatpush1.msra.mxu0 0.0
    %223 = vmatprep.mubr.f32.mxu0 0.0
    %224 = vmatmul.mubr.f32.gmra.mrb[0].mxu0 %v150
    %v225 = vpop.f32.mrb[0].mxu0
    %v226 = vadd.f32 %v146, %v225
    %v227 = vpop.f32.mrb[0].mxu0
    %228 = vmatprep.mubr.f32.mxu0 0.0
    %229 = vmatmul.mubr.f32.gmra.mrb[0].mxu0 %v153
    %v230 = vpop.f32.mrb[0].mxu0
    %v231 = vadd.f32 %v146, %v230
    %v232 = vpop.f32.mrb[0].mxu0
    %233 = vdwg.mxu0
    %v234 = vld [vmem:[%s1] sm:$0x3]
    %s235 = scalar_lea.vmem %s1, 2
    %v236 = vld [vmem:[%s235] sm:$0x3]
    %v237 = vld [vmem:[%s2] sm:$0x3]
    %s238 = scalar_lea.vmem %s2, 2
    %v239 = vld [vmem:[%s238] sm:$0x3]
    %vm240 = vcmask 261120
    %v242 = vsel %vm240, %v234, 0
    %244 = vmatprep.subr.mxu0 0.0
    %245 = vmatpush1.msra.mxu0 %v130
    %246 = vmatprep.subr.mxu0 0.0
    %247 = vmatpush1.msra.mxu0 %v131
    %248 = vmatprep.subr.mxu0 0.0
    %249 = vmatpush1.msra.mxu0 %v132
    %250 = vmatprep.subr.mxu0 0.0
    %251 = vmatpush1.msra.mxu0 %v133
    %252 = vmatprep.subr.mxu0 0.0
    %253 = vmatpush1.msra.mxu0 0.0
    %254 = vmatprep.subr.mxu0 0.0
    %255 = vmatpush1.msra.mxu0 0.0
    %256 = vmatprep.subr.mxu0 0.0
    %257 = vmatpush1.msra.mxu0 0.0
    %258 = vmatprep.subr.mxu0 0.0
    %259 = vmatpush1.msra.mxu0 0.0
    %260 = vmatprep.subr.mxu0 0.0
    %261 = vmatpush1.msra.mxu0 0.0
    %262 = vmatprep.subr.mxu0 0.0
    %263 = vmatpush1.msra.mxu0 0.0
    %264 = vmatprep.subr.mxu0 0.0
    %265 = vmatpush1.msra.mxu0 0.0
    %266 = vmatprep.subr.mxu0 0.0
    %267 = vmatpush1.msra.mxu0 0.0
    %268 = vmatprep.subr.mxu0 0.0
    %269 = vmatpush1.msra.mxu0 0.0
    %270 = vmatprep.subr.mxu0 0.0
    %271 = vmatpush1.msra.mxu0 0.0
    %272 = vmatprep.subr.mxu0 0.0
    %273 = vmatpush1.msra.mxu0 0.0
    %274 = vmatprep.subr.mxu0 0.0
    %275 = vmatpush1.msra.mxu0 0.0
    %276 = vmatprep.subr.mxu0 0.0
    %277 = vmatpush1.msra.mxu0 0.0
    %278 = vmatprep.subr.mxu0 0.0
    %279 = vmatpush1.msra.mxu0 0.0
    %280 = vmatprep.subr.mxu0 0.0
    %281 = vmatpush1.msra.mxu0 0.0
    %282 = vmatprep.subr.mxu0 0.0
    %283 = vmatpush1.msra.mxu0 0.0
    %284 = vmatprep.subr.mxu0 0.0
    %285 = vmatpush1.msra.mxu0 0.0
    %286 = vmatprep.subr.mxu0 0.0
    %287 = vmatpush1.msra.mxu0 0.0
    %288 = vmatprep.subr.mxu0 0.0
    %289 = vmatpush1.msra.mxu0 0.0
    %290 = vmatprep.subr.mxu0 0.0
    %291 = vmatpush1.msra.mxu0 0.0
    %292 = vmatprep.subr.mxu0 0.0
    %293 = vmatpush1.msra.mxu0 0.0
    %294 = vmatprep.subr.mxu0 0.0
    %295 = vmatpush1.msra.mxu0 0.0
    %296 = vmatprep.subr.mxu0 0.0
    %297 = vmatpush1.msra.mxu0 0.0
    %298 = vmatprep.subr.mxu0 0.0
    %299 = vmatpush1.msra.mxu0 0.0
    %300 = vmatprep.subr.mxu0 0.0
    %301 = vmatpush1.msra.mxu0 0.0
    %302 = vmatprep.subr.mxu0 0.0
    %303 = vmatpush1.msra.mxu0 0.0
    %304 = vmatprep.subr.mxu0 0.0
    %305 = vmatpush1.msra.mxu0 0.0
    %306 = vmatprep.subr.mxu0 0.0
    %307 = vmatpush1.msra.mxu0 0.0
    %308 = vmatprep.mubr.f32.mxu0 0.0
    %309 = vmatmul.mubr.f32.gmra.mrb[0].mxu0 %v242
    %v310 = vpop.f32.mrb[0].mxu0
    %v311 = vadd.f32 0.0, %v310
    %v312 = vpop.f32.mrb[0].mxu0
    %313 = vdwg.mxu0
    %v314 = vadd.f32 %v226, %v311
    %v315 = vxor.u32 %v314, 2147483648
    %v316 = vmul.f32 %v315, 1.442695
    %v317 = vpow.pop %v316
    %v318 = vadd.f32 %v317, 1.0
    %v319 = vrcp.pop %v318
    %v320 = vmul.f32 1.0, %v319
    %v321 = vtanh.pop %v314
    %323 = vrot.lane.b32.xlu0 %v237, 32
    %v324 = vpop.permute.xlu0 %323
    %v326 = vmul.f32 %v320, %v324
    %328 = vrot.lane.b32.xlu0 %v321, 64
    %v329 = vpop.permute.xlu0 %328
    %v331 = vmul.f32 %v320, %v329
    %333 = vrot.lane.b32.xlu0 %v331, 32
    %v334 = vpop.permute.xlu0 %333
    %v336 = vadd.f32 %v326, %v334
    %v337 = vtanh.pop %v336
    %339 = vrot.lane.b32.xlu0 %v337, 64
    %v340 = vpop.permute.xlu0 %339
    %v342 = vmul.f32 %v320, %v340
    %v344 = vlaneseq
    %v345 = vshrl.u32 %v344, 7
    %v346 = vsub.s32 0, %v345
    %v347 = vrot.slane %v139, %v346
    %350 = vrot.lane.b32.xlu0 %v342, 32
    %v351 = vpop.permute.xlu0 %350
    %v352 = vsel %vm240, %v351, 0
    %354 = vmatprep.subr.mxu0 0.0
    %355 = vmatpush1.msra.mxu0 %v126
    %356 = vmatprep.subr.mxu0 0.0
    %357 = vmatpush1.msra.mxu0 %v127
    %358 = vmatprep.subr.mxu0 0.0
    %359 = vmatpush1.msra.mxu0 %v128
    %360 = vmatprep.subr.mxu0 0.0
    %361 = vmatpush1.msra.mxu0 %v129
    %362 = vmatprep.subr.mxu0 0.0
    %363 = vmatpush1.msra.mxu0 0.0
    %364 = vmatprep.subr.mxu0 0.0
    %365 = vmatpush1.msra.mxu0 0.0
    %366 = vmatprep.subr.mxu0 0.0
    %367 = vmatpush1.msra.mxu0 0.0
    %368 = vmatprep.subr.mxu0 0.0
    %369 = vmatpush1.msra.mxu0 0.0
    %370 = vmatprep.subr.mxu0 0.0
    %371 = vmatpush1.msra.mxu0 0.0
    %372 = vmatprep.subr.mxu0 0.0
    %373 = vmatpush1.msra.mxu0 0.0
    %374 = vmatprep.subr.mxu0 0.0
    %375 = vmatpush1.msra.mxu0 0.0
    %376 = vmatprep.subr.mxu0 0.0
    %377 = vmatpush1.msra.mxu0 0.0
    %378 = vmatprep.subr.mxu0 0.0
    %379 = vmatpush1.msra.mxu0 0.0
    %380 = vmatprep.subr.mxu0 0.0
    %381 = vmatpush1.msra.mxu0 0.0
    %382 = vmatprep.subr.mxu0 0.0
    %383 = vmatpush1.msra.mxu0 0.0
    %384 = vmatprep.subr.mxu0 0.0
    %385 = vmatpush1.msra.mxu0 0.0
    %386 = vmatprep.subr.mxu0 0.0
    %387 = vmatpush1.msra.mxu0 0.0
    %388 = vmatprep.subr.mxu0 0.0
    %389 = vmatpush1.msra.mxu0 0.0
    %390 = vmatprep.subr.mxu0 0.0
    %391 = vmatpush1.msra.mxu0 0.0
    %392 = vmatprep.subr.mxu0 0.0
    %393 = vmatpush1.msra.mxu0 0.0
    %394 = vmatprep.subr.mxu0 0.0
    %395 = vmatpush1.msra.mxu0 0.0
    %396 = vmatprep.subr.mxu0 0.0
    %397 = vmatpush1.msra.mxu0 0.0
    %398 = vmatprep.subr.mxu0 0.0
    %399 = vmatpush1.msra.mxu0 0.0
    %400 = vmatprep.subr.mxu0 0.0
    %401 = vmatpush1.msra.mxu0 0.0
    %402 = vmatprep.subr.mxu0 0.0
    %403 = vmatpush1.msra.mxu0 0.0
    %404 = vmatprep.subr.mxu0 0.0
    %405 = vmatpush1.msra.mxu0 0.0
    %406 = vmatprep.subr.mxu0 0.0
    %407 = vmatpush1.msra.mxu0 0.0
    %408 = vmatprep.subr.mxu0 0.0
    %409 = vmatpush1.msra.mxu0 0.0
    %410 = vmatprep.subr.mxu0 0.0
    %411 = vmatpush1.msra.mxu0 0.0
    %412 = vmatprep.subr.mxu0 0.0
    %413 = vmatpush1.msra.mxu0 0.0
    %414 = vmatprep.subr.mxu0 0.0
    %415 = vmatpush1.msra.mxu0 0.0
    %416 = vmatprep.subr.mxu0 0.0
    %417 = vmatpush1.msra.mxu0 0.0
    %418 = vmatprep.mubr.f32.mxu0 0.0
    %419 = vmatmul.mubr.f32.gmra.mrb[0].mxu0 %v352
    %v420 = vpop.f32.mrb[0].mxu0
    %v421 = vadd.f32 %v347, %v420
    %v422 = vpop.f32.mrb[0].mxu0
    %423 = vdwg.mxu0
    %v425 = vsel %vm240, %v236, 0
    %427 = vmatprep.subr.mxu0 0.0
    %428 = vmatpush1.msra.mxu0 %v134
    %429 = vmatprep.subr.mxu0 0.0
    %430 = vmatpush1.msra.mxu0 %v135
    %431 = vmatprep.subr.mxu0 0.0
    %432 = vmatpush1.msra.mxu0 %v136
    %433 = vmatprep.subr.mxu0 0.0
    %434 = vmatpush1.msra.mxu0 %v137
    %435 = vmatprep.subr.mxu0 0.0
    %436 = vmatpush1.msra.mxu0 0.0
    %437 = vmatprep.subr.mxu0 0.0
    %438 = vmatpush1.msra.mxu0 0.0
    %439 = vmatprep.subr.mxu0 0.0
    %440 = vmatpush1.msra.mxu0 0.0
    %441 = vmatprep.subr.mxu0 0.0
    %442 = vmatpush1.msra.mxu0 0.0
    %443 = vmatprep.subr.mxu0 0.0
    %444 = vmatpush1.msra.mxu0 0.0
    %445 = vmatprep.subr.mxu0 0.0
    %446 = vmatpush1.msra.mxu0 0.0
    %447 = vmatprep.subr.mxu0 0.0
    %448 = vmatpush1.msra.mxu0 0.0
    %449 = vmatprep.subr.mxu0 0.0
    %450 = vmatpush1.msra.mxu0 0.0
    %451 = vmatprep.subr.mxu0 0.0
    %452 = vmatpush1.msra.mxu0 0.0
    %453 = vmatprep.subr.mxu0 0.0
    %454 = vmatpush1.msra.mxu0 0.0
    %455 = vmatprep.subr.mxu0 0.0
    %456 = vmatpush1.msra.mxu0 0.0
    %457 = vmatprep.subr.mxu0 0.0
    %458 = vmatpush1.msra.mxu0 0.0
    %459 = vmatprep.subr.mxu0 0.0
    %460 = vmatpush1.msra.mxu0 0.0
    %461 = vmatprep.subr.mxu0 0.0
    %462 = vmatpush1.msra.mxu0 0.0
    %463 = vmatprep.subr.mxu0 0.0
    %464 = vmatpush1.msra.mxu0 0.0
    %465 = vmatprep.subr.mxu0 0.0
    %466 = vmatpush1.msra.mxu0 0.0
    %467 = vmatprep.subr.mxu0 0.0
    %468 = vmatpush1.msra.mxu0 0.0
    %469 = vmatprep.subr.mxu0 0.0
    %470 = vmatpush1.msra.mxu0 0.0
    %471 = vmatprep.subr.mxu0 0.0
    %472 = vmatpush1.msra.mxu0 0.0
    %473 = vmatprep.subr.mxu0 0.0
    %474 = vmatpush1.msra.mxu0 0.0
    %475 = vmatprep.subr.mxu0 0.0
    %476 = vmatpush1.msra.mxu0 0.0
    %477 = vmatprep.subr.mxu0 0.0
    %478 = vmatpush1.msra.mxu0 0.0
    %479 = vmatprep.subr.mxu0 0.0
    %480 = vmatpush1.msra.mxu0 0.0
    %481 = vmatprep.subr.mxu0 0.0
    %482 = vmatpush1.msra.mxu0 0.0
    %483 = vmatprep.subr.mxu0 0.0
    %484 = vmatpush1.msra.mxu0 0.0
    %485 = vmatprep.subr.mxu0 0.0
    %486 = vmatpush1.msra.mxu0 0.0
    %487 = vmatprep.subr.mxu0 0.0
    %488 = vmatpush1.msra.mxu0 0.0
    %489 = vmatprep.subr.mxu0 0.0
    %490 = vmatpush1.msra.mxu0 0.0
    %491 = vmatprep.mubr.f32.mxu0 0.0
    %492 = vmatmul.mubr.f32.gmra.mrb[0].mxu0 %v425
    %v493 = vpop.f32.mrb[0].mxu0
    %v494 = vadd.f32 0.0, %v493
    %v495 = vpop.f32.mrb[0].mxu0
    %496 = vdwg.mxu0
    %v497 = vadd.f32 %v421, %v494
    %v498 = vxor.u32 %v497, 2147483648
    %v499 = vmul.f32 %v498, 1.442695
    %v500 = vpow.pop %v499
    %v501 = vadd.f32 %v500, 1.0
    %v502 = vrcp.pop %v501
    %v503 = vmul.f32 1.0, %v502
    %v504 = vtanh.pop %v497
    %506 = vrot.lane.b32.xlu0 %v239, 32
    %v507 = vpop.permute.xlu0 %506
    %v509 = vmul.f32 %v503, %v507
    %511 = vrot.lane.b32.xlu0 %v504, 64
    %v512 = vpop.permute.xlu0 %511
    %v514 = vmul.f32 %v503, %v512
    %516 = vrot.lane.b32.xlu0 %v514, 32
    %v517 = vpop.permute.xlu0 %516
    %v519 = vadd.f32 %v509, %v517
    %v520 = vtanh.pop %v519
    %522 = vrot.lane.b32.xlu0 %v520, 64
    %v523 = vpop.permute.xlu0 %522
    %v525 = vmul.f32 %v503, %v523
    %526 = vmatprep.subr.mxu0 0.0
    %527 = vmatpush1.msra.mxu0 %v130
    %528 = vmatprep.subr.mxu0 0.0
    %529 = vmatpush1.msra.mxu0 %v131
    %530 = vmatprep.subr.mxu0 0.0
    %531 = vmatpush1.msra.mxu0 %v132
    %532 = vmatprep.subr.mxu0 0.0
    %533 = vmatpush1.msra.mxu0 %v133
    %534 = vmatprep.subr.mxu0 0.0
    %535 = vmatpush1.msra.mxu0 0.0
    %536 = vmatprep.subr.mxu0 0.0
    %537 = vmatpush1.msra.mxu0 0.0
    %538 = vmatprep.subr.mxu0 0.0
    %539 = vmatpush1.msra.mxu0 0.0
    %540 = vmatprep.subr.mxu0 0.0
    %541 = vmatpush1.msra.mxu0 0.0
    %542 = vmatprep.subr.mxu0 0.0
    %543 = vmatpush1.msra.mxu0 0.0
    %544 = vmatprep.subr.mxu0 0.0
    %545 = vmatpush1.msra.mxu0 0.0
    %546 = vmatprep.subr.mxu0 0.0
    %547 = vmatpush1.msra.mxu0 0.0
    %548 = vmatprep.subr.mxu0 0.0
    %549 = vmatpush1.msra.mxu0 0.0
    %550 = vmatprep.subr.mxu0 0.0
    %551 = vmatpush1.msra.mxu0 0.0
    %552 = vmatprep.subr.mxu0 0.0
    %553 = vmatpush1.msra.mxu0 0.0
    %554 = vmatprep.subr.mxu0 0.0
    %555 = vmatpush1.msra.mxu0 0.0
    %556 = vmatprep.subr.mxu0 0.0
    %557 = vmatpush1.msra.mxu0 0.0
    %558 = vmatprep.subr.mxu0 0.0
    %559 = vmatpush1.msra.mxu0 0.0
    %560 = vmatprep.subr.mxu0 0.0
    %561 = vmatpush1.msra.mxu0 0.0
    %562 = vmatprep.subr.mxu0 0.0
    %563 = vmatpush1.msra.mxu0 0.0
    %564 = vmatprep.subr.mxu0 0.0
    %565 = vmatpush1.msra.mxu0 0.0
    %566 = vmatprep.subr.mxu0 0.0
    %567 = vmatpush1.msra.mxu0 0.0
    %568 = vmatprep.subr.mxu0 0.0
    %569 = vmatpush1.msra.mxu0 0.0
    %570 = vmatprep.subr.mxu0 0.0
    %571 = vmatpush1.msra.mxu0 0.0
    %572 = vmatprep.subr.mxu0 0.0
    %573 = vmatpush1.msra.mxu0 0.0
    %574 = vmatprep.subr.mxu0 0.0
    %575 = vmatpush1.msra.mxu0 0.0
    %576 = vmatprep.subr.mxu0 0.0
    %577 = vmatpush1.msra.mxu0 0.0
    %578 = vmatprep.subr.mxu0 0.0
    %579 = vmatpush1.msra.mxu0 0.0
    %580 = vmatprep.subr.mxu0 0.0
    %581 = vmatpush1.msra.mxu0 0.0
    %582 = vmatprep.subr.mxu0 0.0
    %583 = vmatpush1.msra.mxu0 0.0
    %584 = vmatprep.subr.mxu0 0.0
    %585 = vmatpush1.msra.mxu0 0.0
    %586 = vmatprep.subr.mxu0 0.0
    %587 = vmatpush1.msra.mxu0 0.0
    %588 = vmatprep.subr.mxu0 0.0
    %589 = vmatpush1.msra.mxu0 0.0
    %590 = vmatprep.mubr.f32.mxu0 0.0
    %591 = vmatmul.mubr.f32.gmra.mrb[0].mxu0 %v352
    %v592 = vpop.f32.mrb[0].mxu0
    %v593 = vadd.f32 0.0, %v592
    %v594 = vpop.f32.mrb[0].mxu0
    %595 = vdwg.mxu0
    %v597 = vrot.slane %v593, 6
    %v599 = vadd.f32 %v226, %v597
    %v600 = vxor.u32 %v599, 2147483648
    %v601 = vmul.f32 %v600, 1.442695
    %v602 = vpow.pop %v601
    %v603 = vadd.f32 %v602, 1.0
    %v604 = vrcp.pop %v603
    %v605 = vmul.f32 1.0, %v604
    %v606 = vtanh.pop %v599
    %v608 = vrot.slane %v336, 6
    %v610 = vmul.f32 %v605, %v608
    %612 = vrot.lane.b32.xlu0 %v606, 64
    %v613 = vpop.permute.xlu0 %612
    %v615 = vmul.f32 %v605, %v613
    %617 = vrot.lane.b32.xlu0 %v615, 32
    %v618 = vpop.permute.xlu0 %617
    %v620 = vadd.f32 %v610, %v618
    %v621 = vtanh.pop %v620
    %623 = vrot.lane.b32.xlu0 %v621, 64
    %v624 = vpop.permute.xlu0 %623
    %v626 = vmul.f32 %v605, %v624
    %v628 = vrot.slane %v626, 2
    %629 = vrot.lane.b32.xlu0 %v628, 32
    %v630 = vpop.permute.xlu0 %629
    %v631 = vsel %vm240, %v630, 0
    %633 = vmatprep.subr.mxu0 0.0
    %634 = vmatpush1.msra.mxu0 %v126
    %635 = vmatprep.subr.mxu0 0.0
    %636 = vmatpush1.msra.mxu0 %v127
    %637 = vmatprep.subr.mxu0 0.0
    %638 = vmatpush1.msra.mxu0 %v128
    %639 = vmatprep.subr.mxu0 0.0
    %640 = vmatpush1.msra.mxu0 %v129
    %641 = vmatprep.subr.mxu0 0.0
    %642 = vmatpush1.msra.mxu0 0.0
    %643 = vmatprep.subr.mxu0 0.0
    %644 = vmatpush1.msra.mxu0 0.0
    %645 = vmatprep.subr.mxu0 0.0
    %646 = vmatpush1.msra.mxu0 0.0
    %647 = vmatprep.subr.mxu0 0.0
    %648 = vmatpush1.msra.mxu0 0.0
    %649 = vmatprep.subr.mxu0 0.0
    %650 = vmatpush1.msra.mxu0 0.0
    %651 = vmatprep.subr.mxu0 0.0
    %652 = vmatpush1.msra.mxu0 0.0
    %653 = vmatprep.subr.mxu0 0.0
    %654 = vmatpush1.msra.mxu0 0.0
    %655 = vmatprep.subr.mxu0 0.0
    %656 = vmatpush1.msra.mxu0 0.0
    %657 = vmatprep.subr.mxu0 0.0
    %658 = vmatpush1.msra.mxu0 0.0
    %659 = vmatprep.subr.mxu0 0.0
    %660 = vmatpush1.msra.mxu0 0.0
    %661 = vmatprep.subr.mxu0 0.0
    %662 = vmatpush1.msra.mxu0 0.0
    %663 = vmatprep.subr.mxu0 0.0
    %664 = vmatpush1.msra.mxu0 0.0
    %665 = vmatprep.subr.mxu0 0.0
    %666 = vmatpush1.msra.mxu0 0.0
    %667 = vmatprep.subr.mxu0 0.0
    %668 = vmatpush1.msra.mxu0 0.0
    %669 = vmatprep.subr.mxu0 0.0
    %670 = vmatpush1.msra.mxu0 0.0
    %671 = vmatprep.subr.mxu0 0.0
    %672 = vmatpush1.msra.mxu0 0.0
    %673 = vmatprep.subr.mxu0 0.0
    %674 = vmatpush1.msra.mxu0 0.0
    %675 = vmatprep.subr.mxu0 0.0
    %676 = vmatpush1.msra.mxu0 0.0
    %677 = vmatprep.subr.mxu0 0.0
    %678 = vmatpush1.msra.mxu0 0.0
    %679 = vmatprep.subr.mxu0 0.0
    %680 = vmatpush1.msra.mxu0 0.0
    %681 = vmatprep.subr.mxu0 0.0
    %682 = vmatpush1.msra.mxu0 0.0
    %683 = vmatprep.subr.mxu0 0.0
    %684 = vmatpush1.msra.mxu0 0.0
    %685 = vmatprep.subr.mxu0 0.0
    %686 = vmatpush1.msra.mxu0 0.0
    %687 = vmatprep.subr.mxu0 0.0
    %688 = vmatpush1.msra.mxu0 0.0
    %689 = vmatprep.subr.mxu0 0.0
    %690 = vmatpush1.msra.mxu0 0.0
    %691 = vmatprep.subr.mxu0 0.0
    %692 = vmatpush1.msra.mxu0 0.0
    %693 = vmatprep.subr.mxu0 0.0
    %694 = vmatpush1.msra.mxu0 0.0
    %695 = vmatprep.subr.mxu0 0.0
    %696 = vmatpush1.msra.mxu0 0.0
    %697 = vmatprep.mubr.f32.mxu0 0.0
    %698 = vmatmul.mubr.f32.gmra.mrb[0].mxu0 %v631
    %v699 = vpop.f32.mrb[0].mxu0
    %v700 = vadd.f32 %v347, %v699
    %v701 = vpop.f32.mrb[0].mxu0
    %702 = vdwg.mxu0
    %704 = vrot.lane.b32.xlu0 %v525, 32
    %v705 = vpop.permute.xlu0 %704
    %v706 = vsel %vm240, %v705, 0
    %708 = vmatprep.subr.mxu0 0.0
    %709 = vmatpush1.msra.mxu0 %v134
    %710 = vmatprep.subr.mxu0 0.0
    %711 = vmatpush1.msra.mxu0 %v135
    %712 = vmatprep.subr.mxu0 0.0
    %713 = vmatpush1.msra.mxu0 %v136
    %714 = vmatprep.subr.mxu0 0.0
    %715 = vmatpush1.msra.mxu0 %v137
    %716 = vmatprep.subr.mxu0 0.0
    %717 = vmatpush1.msra.mxu0 0.0
    %718 = vmatprep.subr.mxu0 0.0
    %719 = vmatpush1.msra.mxu0 0.0
    %720 = vmatprep.subr.mxu0 0.0
    %721 = vmatpush1.msra.mxu0 0.0
    %722 = vmatprep.subr.mxu0 0.0
    %723 = vmatpush1.msra.mxu0 0.0
    %724 = vmatprep.subr.mxu0 0.0
    %725 = vmatpush1.msra.mxu0 0.0
    %726 = vmatprep.subr.mxu0 0.0
    %727 = vmatpush1.msra.mxu0 0.0
    %728 = vmatprep.subr.mxu0 0.0
    %729 = vmatpush1.msra.mxu0 0.0
    %730 = vmatprep.subr.mxu0 0.0
    %731 = vmatpush1.msra.mxu0 0.0
    %732 = vmatprep.subr.mxu0 0.0
    %733 = vmatpush1.msra.mxu0 0.0
    %734 = vmatprep.subr.mxu0 0.0
    %735 = vmatpush1.msra.mxu0 0.0
    %736 = vmatprep.subr.mxu0 0.0
    %737 = vmatpush1.msra.mxu0 0.0
    %738 = vmatprep.subr.mxu0 0.0
    %739 = vmatpush1.msra.mxu0 0.0
    %740 = vmatprep.subr.mxu0 0.0
    %741 = vmatpush1.msra.mxu0 0.0
    %742 = vmatprep.subr.mxu0 0.0
    %743 = vmatpush1.msra.mxu0 0.0
    %744 = vmatprep.subr.mxu0 0.0
    %745 = vmatpush1.msra.mxu0 0.0
    %746 = vmatprep.subr.mxu0 0.0
    %747 = vmatpush1.msra.mxu0 0.0
    %748 = vmatprep.subr.mxu0 0.0
    %749 = vmatpush1.msra.mxu0 0.0
    %750 = vmatprep.subr.mxu0 0.0
    %751 = vmatpush1.msra.mxu0 0.0
    %752 = vmatprep.subr.mxu0 0.0
    %753 = vmatpush1.msra.mxu0 0.0
    %754 = vmatprep.subr.mxu0 0.0
    %755 = vmatpush1.msra.mxu0 0.0
    %756 = vmatprep.subr.mxu0 0.0
    %757 = vmatpush1.msra.mxu0 0.0
    %758 = vmatprep.subr.mxu0 0.0
    %759 = vmatpush1.msra.mxu0 0.0
    %760 = vmatprep.subr.mxu0 0.0
    %761 = vmatpush1.msra.mxu0 0.0
    %762 = vmatprep.subr.mxu0 0.0
    %763 = vmatpush1.msra.mxu0 0.0
    %764 = vmatprep.subr.mxu0 0.0
    %765 = vmatpush1.msra.mxu0 0.0
    %766 = vmatprep.subr.mxu0 0.0
    %767 = vmatpush1.msra.mxu0 0.0
    %768 = vmatprep.subr.mxu0 0.0
    %769 = vmatpush1.msra.mxu0 0.0
    %770 = vmatprep.subr.mxu0 0.0
    %771 = vmatpush1.msra.mxu0 0.0
    %772 = vmatprep.mubr.f32.mxu0 0.0
    %773 = vmatmul.mubr.f32.gmra.mrb[0].mxu0 %v706
    %v774 = vpop.f32.mrb[0].mxu0
    %v775 = vadd.f32 0.0, %v774
    %v776 = vpop.f32.mrb[0].mxu0
    %777 = vdwg.mxu0
    %v778 = vadd.f32 %v700, %v775
    %v779 = vxor.u32 %v778, 2147483648
    %v780 = vmul.f32 %v779, 1.442695
    %v781 = vpow.pop %v780
    %v782 = vadd.f32 %v781, 1.0
    %v783 = vrcp.pop %v782
    %v784 = vmul.f32 1.0, %v783
    %v785 = vtanh.pop %v778
    %v786 = vmul.f32 %v784, %v519
    %788 = vrot.lane.b32.xlu0 %v785, 64
    %v789 = vpop.permute.xlu0 %788
    %v791 = vmul.f32 %v784, %v789
    %793 = vrot.lane.b32.xlu0 %v791, 32
    %v794 = vpop.permute.xlu0 %793
    %v796 = vadd.f32 %v786, %v794
    %v797 = vtanh.pop %v796
    %799 = vrot.lane.b32.xlu0 %v797, 64
    %v800 = vpop.permute.xlu0 %799
    %v802 = vmul.f32 %v784, %v800
    %803 = vmatprep.subr.mxu0 0.0
    %804 = vmatpush1.msra.mxu0 %v130
    %805 = vmatprep.subr.mxu0 0.0
    %806 = vmatpush1.msra.mxu0 %v131
    %807 = vmatprep.subr.mxu0 0.0
    %808 = vmatpush1.msra.mxu0 %v132
    %809 = vmatprep.subr.mxu0 0.0
    %810 = vmatpush1.msra.mxu0 %v133
    %811 = vmatprep.subr.mxu0 0.0
    %812 = vmatpush1.msra.mxu0 0.0
    %813 = vmatprep.subr.mxu0 0.0
    %814 = vmatpush1.msra.mxu0 0.0
    %815 = vmatprep.subr.mxu0 0.0
    %816 = vmatpush1.msra.mxu0 0.0
    %817 = vmatprep.subr.mxu0 0.0
    %818 = vmatpush1.msra.mxu0 0.0
    %819 = vmatprep.subr.mxu0 0.0
    %820 = vmatpush1.msra.mxu0 0.0
    %821 = vmatprep.subr.mxu0 0.0
    %822 = vmatpush1.msra.mxu0 0.0
    %823 = vmatprep.subr.mxu0 0.0
    %824 = vmatpush1.msra.mxu0 0.0
    %825 = vmatprep.subr.mxu0 0.0
    %826 = vmatpush1.msra.mxu0 0.0
    %827 = vmatprep.subr.mxu0 0.0
    %828 = vmatpush1.msra.mxu0 0.0
    %829 = vmatprep.subr.mxu0 0.0
    %830 = vmatpush1.msra.mxu0 0.0
    %831 = vmatprep.subr.mxu0 0.0
    %832 = vmatpush1.msra.mxu0 0.0
    %833 = vmatprep.subr.mxu0 0.0
    %834 = vmatpush1.msra.mxu0 0.0
    %835 = vmatprep.subr.mxu0 0.0
    %836 = vmatpush1.msra.mxu0 0.0
    %837 = vmatprep.subr.mxu0 0.0
    %838 = vmatpush1.msra.mxu0 0.0
    %839 = vmatprep.subr.mxu0 0.0
    %840 = vmatpush1.msra.mxu0 0.0
    %841 = vmatprep.subr.mxu0 0.0
    %842 = vmatpush1.msra.mxu0 0.0
    %843 = vmatprep.subr.mxu0 0.0
    %844 = vmatpush1.msra.mxu0 0.0
    %845 = vmatprep.subr.mxu0 0.0
    %846 = vmatpush1.msra.mxu0 0.0
    %847 = vmatprep.subr.mxu0 0.0
    %848 = vmatpush1.msra.mxu0 0.0
    %849 = vmatprep.subr.mxu0 0.0
    %850 = vmatpush1.msra.mxu0 0.0
    %851 = vmatprep.subr.mxu0 0.0
    %852 = vmatpush1.msra.mxu0 0.0
    %853 = vmatprep.subr.mxu0 0.0
    %854 = vmatpush1.msra.mxu0 0.0
    %855 = vmatprep.subr.mxu0 0.0
    %856 = vmatpush1.msra.mxu0 0.0
    %857 = vmatprep.subr.mxu0 0.0
    %858 = vmatpush1.msra.mxu0 0.0
    %859 = vmatprep.subr.mxu0 0.0
    %860 = vmatpush1.msra.mxu0 0.0
    %861 = vmatprep.subr.mxu0 0.0
    %862 = vmatpush1.msra.mxu0 0.0
    %863 = vmatprep.subr.mxu0 0.0
    %864 = vmatpush1.msra.mxu0 0.0
    %865 = vmatprep.subr.mxu0 0.0
    %866 = vmatpush1.msra.mxu0 0.0
    %867 = vmatprep.mubr.f32.mxu0 0.0
    %868 = vmatmul.mubr.f32.gmra.mrb[0].mxu0 %v631
    %v869 = vpop.f32.mrb[0].mxu0
    %v870 = vadd.f32 0.0, %v869
    %v871 = vpop.f32.mrb[0].mxu0
    %872 = vdwg.mxu0
    %v874 = vrot.slane %v870, 4
    %v876 = vadd.f32 %v226, %v874
    %v877 = vxor.u32 %v876, 2147483648
    %v878 = vmul.f32 %v877, 1.442695
    %v879 = vpow.pop %v878
    %v880 = vadd.f32 %v879, 1.0
    %v881 = vrcp.pop %v880
    %v882 = vmul.f32 1.0, %v881
    %v883 = vtanh.pop %v876
    %v885 = vrot.slane %v620, 6
    %v887 = vmul.f32 %v882, %v885
    %889 = vrot.lane.b32.xlu0 %v883, 64
    %v890 = vpop.permute.xlu0 %889
    %v892 = vmul.f32 %v882, %v890
    %894 = vrot.lane.b32.xlu0 %v892, 32
    %v895 = vpop.permute.xlu0 %894
    %v897 = vadd.f32 %v887, %v895
    %v898 = vtanh.pop %v897
    %900 = vrot.lane.b32.xlu0 %v898, 64
    %v901 = vpop.permute.xlu0 %900
    %v903 = vmul.f32 %v882, %v901
    %v905 = vrot.slane %v903, 4
    %906 = vrot.lane.b32.xlu0 %v905, 32
    %v907 = vpop.permute.xlu0 %906
    %v908 = vsel %vm240, %v907, 0
    %910 = vmatprep.subr.mxu0 0.0
    %911 = vmatpush1.msra.mxu0 %v126
    %912 = vmatprep.subr.mxu0 0.0
    %913 = vmatpush1.msra.mxu0 %v127
    %914 = vmatprep.subr.mxu0 0.0
    %915 = vmatpush1.msra.mxu0 %v128
    %916 = vmatprep.subr.mxu0 0.0
    %917 = vmatpush1.msra.mxu0 %v129
    %918 = vmatprep.subr.mxu0 0.0
    %919 = vmatpush1.msra.mxu0 0.0
    %920 = vmatprep.subr.mxu0 0.0
    %921 = vmatpush1.msra.mxu0 0.0
    %922 = vmatprep.subr.mxu0 0.0
    %923 = vmatpush1.msra.mxu0 0.0
    %924 = vmatprep.subr.mxu0 0.0
    %925 = vmatpush1.msra.mxu0 0.0
    %926 = vmatprep.subr.mxu0 0.0
    %927 = vmatpush1.msra.mxu0 0.0
    %928 = vmatprep.subr.mxu0 0.0
    %929 = vmatpush1.msra.mxu0 0.0
    %930 = vmatprep.subr.mxu0 0.0
    %931 = vmatpush1.msra.mxu0 0.0
    %932 = vmatprep.subr.mxu0 0.0
    %933 = vmatpush1.msra.mxu0 0.0
    %934 = vmatprep.subr.mxu0 0.0
    %935 = vmatpush1.msra.mxu0 0.0
    %936 = vmatprep.subr.mxu0 0.0
    %937 = vmatpush1.msra.mxu0 0.0
    %938 = vmatprep.subr.mxu0 0.0
    %939 = vmatpush1.msra.mxu0 0.0
    %940 = vmatprep.subr.mxu0 0.0
    %941 = vmatpush1.msra.mxu0 0.0
    %942 = vmatprep.subr.mxu0 0.0
    %943 = vmatpush1.msra.mxu0 0.0
    %944 = vmatprep.subr.mxu0 0.0
    %945 = vmatpush1.msra.mxu0 0.0
    %946 = vmatprep.subr.mxu0 0.0
    %947 = vmatpush1.msra.mxu0 0.0
    %948 = vmatprep.subr.mxu0 0.0
    %949 = vmatpush1.msra.mxu0 0.0
    %950 = vmatprep.subr.mxu0 0.0
    %951 = vmatpush1.msra.mxu0 0.0
    %952 = vmatprep.subr.mxu0 0.0
    %953 = vmatpush1.msra.mxu0 0.0
    %954 = vmatprep.subr.mxu0 0.0
    %955 = vmatpush1.msra.mxu0 0.0
    %956 = vmatprep.subr.mxu0 0.0
    %957 = vmatpush1.msra.mxu0 0.0
    %958 = vmatprep.subr.mxu0 0.0
    %959 = vmatpush1.msra.mxu0 0.0
    %960 = vmatprep.subr.mxu0 0.0
    %961 = vmatpush1.msra.mxu0 0.0
    %962 = vmatprep.subr.mxu0 0.0
    %963 = vmatpush1.msra.mxu0 0.0
    %964 = vmatprep.subr.mxu0 0.0
    %965 = vmatpush1.msra.mxu0 0.0
    %966 = vmatprep.subr.mxu0 0.0
    %967 = vmatpush1.msra.mxu0 0.0
    %968 = vmatprep.subr.mxu0 0.0
    %969 = vmatpush1.msra.mxu0 0.0
    %970 = vmatprep.subr.mxu0 0.0
    %971 = vmatpush1.msra.mxu0 0.0
    %972 = vmatprep.subr.mxu0 0.0
    %973 = vmatpush1.msra.mxu0 0.0
    %974 = vmatprep.mubr.f32.mxu0 0.0
    %975 = vmatmul.mubr.f32.gmra.mrb[0].mxu0 %v908
    %v976 = vpop.f32.mrb[0].mxu0
    %v977 = vadd.f32 %v347, %v976
    %v978 = vpop.f32.mrb[0].mxu0
    %979 = vdwg.mxu0
    %981 = vrot.lane.b32.xlu0 %v802, 32
    %v982 = vpop.permute.xlu0 %981
    %v983 = vsel %vm240, %v982, 0
    %985 = vmatprep.subr.mxu0 0.0
    %986 = vmatpush1.msra.mxu0 %v134
    %987 = vmatprep.subr.mxu0 0.0
    %988 = vmatpush1.msra.mxu0 %v135
    %989 = vmatprep.subr.mxu0 0.0
    %990 = vmatpush1.msra.mxu0 %v136
    %991 = vmatprep.subr.mxu0 0.0
    %992 = vmatpush1.msra.mxu0 %v137
    %993 = vmatprep.subr.mxu0 0.0
    %994 = vmatpush1.msra.mxu0 0.0
    %995 = vmatprep.subr.mxu0 0.0
    %996 = vmatpush1.msra.mxu0 0.0
    %997 = vmatprep.subr.mxu0 0.0
    %998 = vmatpush1.msra.mxu0 0.0
    %999 = vmatprep.subr.mxu0 0.0
    %1000 = vmatpush1.msra.mxu0 0.0
    %1001 = vmatprep.subr.mxu0 0.0
    %1002 = vmatpush1.msra.mxu0 0.0
    %1003 = vmatprep.subr.mxu0 0.0
    %1004 = vmatpush1.msra.mxu0 0.0
    %1005 = vmatprep.subr.mxu0 0.0
    %1006 = vmatpush1.msra.mxu0 0.0
    %1007 = vmatprep.subr.mxu0 0.0
    %1008 = vmatpush1.msra.mxu0 0.0
    %1009 = vmatprep.subr.mxu0 0.0
    %1010 = vmatpush1.msra.mxu0 0.0
    %1011 = vmatprep.subr.mxu0 0.0
    %1012 = vmatpush1.msra.mxu0 0.0
    %1013 = vmatprep.subr.mxu0 0.0
    %1014 = vmatpush1.msra.mxu0 0.0
    %1015 = vmatprep.subr.mxu0 0.0
    %1016 = vmatpush1.msra.mxu0 0.0
    %1017 = vmatprep.subr.mxu0 0.0
    %1018 = vmatpush1.msra.mxu0 0.0
    %1019 = vmatprep.subr.mxu0 0.0
    %1020 = vmatpush1.msra.mxu0 0.0
    %1021 = vmatprep.subr.mxu0 0.0
    %1022 = vmatpush1.msra.mxu0 0.0
    %1023 = vmatprep.subr.mxu0 0.0
    %1024 = vmatpush1.msra.mxu0 0.0
    %1025 = vmatprep.subr.mxu0 0.0
    %1026 = vmatpush1.msra.mxu0 0.0
    %1027 = vmatprep.subr.mxu0 0.0
    %1028 = vmatpush1.msra.mxu0 0.0
    %1029 = vmatprep.subr.mxu0 0.0
    %1030 = vmatpush1.msra.mxu0 0.0
    %1031 = vmatprep.subr.mxu0 0.0
    %1032 = vmatpush1.msra.mxu0 0.0
    %1033 = vmatprep.subr.mxu0 0.0
    %1034 = vmatpush1.msra.mxu0 0.0
    %1035 = vmatprep.subr.mxu0 0.0
    %1036 = vmatpush1.msra.mxu0 0.0
    %1037 = vmatprep.subr.mxu0 0.0
    %1038 = vmatpush1.msra.mxu0 0.0
    %1039 = vmatprep.subr.mxu0 0.0
    %1040 = vmatpush1.msra.mxu0 0.0
    %1041 = vmatprep.subr.mxu0 0.0
    %1042 = vmatpush1.msra.mxu0 0.0
    %1043 = vmatprep.subr.mxu0 0.0
    %1044 = vmatpush1.msra.mxu0 0.0
    %1045 = vmatprep.subr.mxu0 0.0
    %1046 = vmatpush1.msra.mxu0 0.0
    %1047 = vmatprep.subr.mxu0 0.0
    %1048 = vmatpush1.msra.mxu0 0.0
    %1049 = vmatprep.mubr.f32.mxu0 0.0
    %1050 = vmatmul.mubr.f32.gmra.mrb[0].mxu0 %v983
    %v1051 = vpop.f32.mrb[0].mxu0
    %v1052 = vadd.f32 0.0, %v1051
    %v1053 = vpop.f32.mrb[0].mxu0
    %1054 = vdwg.mxu0
    %v1055 = vadd.f32 %v977, %v1052
    %v1056 = vxor.u32 %v1055, 2147483648
    %v1057 = vmul.f32 %v1056, 1.442695
    %v1058 = vpow.pop %v1057
    %v1059 = vadd.f32 %v1058, 1.0
    %v1060 = vrcp.pop %v1059
    %v1061 = vmul.f32 1.0, %v1060
    %v1062 = vtanh.pop %v1055
    %v1063 = vmul.f32 %v1061, %v796
    %1065 = vrot.lane.b32.xlu0 %v1062, 64
    %v1066 = vpop.permute.xlu0 %1065
    %v1068 = vmul.f32 %v1061, %v1066
    %1070 = vrot.lane.b32.xlu0 %v1068, 32
    %v1071 = vpop.permute.xlu0 %1070
    %v1073 = vadd.f32 %v1063, %v1071
    %v1074 = vtanh.pop %v1073
    %1076 = vrot.lane.b32.xlu0 %v1074, 64
    %v1077 = vpop.permute.xlu0 %1076
    %v1079 = vmul.f32 %v1061, %v1077
    %1080 = vmatprep.subr.mxu0 0.0
    %1081 = vmatpush1.msra.mxu0 %v130
    %1082 = vmatprep.subr.mxu0 0.0
    %1083 = vmatpush1.msra.mxu0 %v131
    %1084 = vmatprep.subr.mxu0 0.0
    %1085 = vmatpush1.msra.mxu0 %v132
    %1086 = vmatprep.subr.mxu0 0.0
    %1087 = vmatpush1.msra.mxu0 %v133
    %1088 = vmatprep.subr.mxu0 0.0
    %1089 = vmatpush1.msra.mxu0 0.0
    %1090 = vmatprep.subr.mxu0 0.0
    %1091 = vmatpush1.msra.mxu0 0.0
    %1092 = vmatprep.subr.mxu0 0.0
    %1093 = vmatpush1.msra.mxu0 0.0
    %1094 = vmatprep.subr.mxu0 0.0
    %1095 = vmatpush1.msra.mxu0 0.0
    %1096 = vmatprep.subr.mxu0 0.0
    %1097 = vmatpush1.msra.mxu0 0.0
    %1098 = vmatprep.subr.mxu0 0.0
    %1099 = vmatpush1.msra.mxu0 0.0
    %1100 = vmatprep.subr.mxu0 0.0
    %1101 = vmatpush1.msra.mxu0 0.0
    %1102 = vmatprep.subr.mxu0 0.0
    %1103 = vmatpush1.msra.mxu0 0.0
    %1104 = vmatprep.subr.mxu0 0.0
    %1105 = vmatpush1.msra.mxu0 0.0
    %1106 = vmatprep.subr.mxu0 0.0
    %1107 = vmatpush1.msra.mxu0 0.0
    %1108 = vmatprep.subr.mxu0 0.0
    %1109 = vmatpush1.msra.mxu0 0.0
    %1110 = vmatprep.subr.mxu0 0.0
    %1111 = vmatpush1.msra.mxu0 0.0
    %1112 = vmatprep.subr.mxu0 0.0
    %1113 = vmatpush1.msra.mxu0 0.0
    %1114 = vmatprep.subr.mxu0 0.0
    %1115 = vmatpush1.msra.mxu0 0.0
    %1116 = vmatprep.subr.mxu0 0.0
    %1117 = vmatpush1.msra.mxu0 0.0
    %1118 = vmatprep.subr.mxu0 0.0
    %1119 = vmatpush1.msra.mxu0 0.0
    %1120 = vmatprep.subr.mxu0 0.0
    %1121 = vmatpush1.msra.mxu0 0.0
    %1122 = vmatprep.subr.mxu0 0.0
    %1123 = vmatpush1.msra.mxu0 0.0
    %1124 = vmatprep.subr.mxu0 0.0
    %1125 = vmatpush1.msra.mxu0 0.0
    %1126 = vmatprep.subr.mxu0 0.0
    %1127 = vmatpush1.msra.mxu0 0.0
    %1128 = vmatprep.subr.mxu0 0.0
    %1129 = vmatpush1.msra.mxu0 0.0
    %1130 = vmatprep.subr.mxu0 0.0
    %1131 = vmatpush1.msra.mxu0 0.0
    %1132 = vmatprep.subr.mxu0 0.0
    %1133 = vmatpush1.msra.mxu0 0.0
    %1134 = vmatprep.subr.mxu0 0.0
    %1135 = vmatpush1.msra.mxu0 0.0
    %1136 = vmatprep.subr.mxu0 0.0
    %1137 = vmatpush1.msra.mxu0 0.0
    %1138 = vmatprep.subr.mxu0 0.0
    %1139 = vmatpush1.msra.mxu0 0.0
    %1140 = vmatprep.subr.mxu0 0.0
    %1141 = vmatpush1.msra.mxu0 0.0
    %1142 = vmatprep.subr.mxu0 0.0
    %1143 = vmatpush1.msra.mxu0 0.0
    %1144 = vmatprep.mubr.f32.mxu0 0.0
    %1145 = vmatmul.mubr.f32.gmra.mrb[0].mxu0 %v908
    %v1146 = vpop.f32.mrb[0].mxu0
    %v1147 = vadd.f32 0.0, %v1146
    %v1148 = vpop.f32.mrb[0].mxu0
    %1149 = vdwg.mxu0
    %v1151 = vrot.slane %v1147, 2
    %v1153 = vadd.f32 %v226, %v1151
    %v1154 = vxor.u32 %v1153, 2147483648
    %v1155 = vmul.f32 %v1154, 1.442695
    %v1156 = vpow.pop %v1155
    %v1157 = vadd.f32 %v1156, 1.0
    %v1158 = vrcp.pop %v1157
    %v1159 = vmul.f32 1.0, %v1158
    %v1160 = vtanh.pop %v1153
    %v1162 = vrot.slane %v897, 6
    %v1164 = vmul.f32 %v1159, %v1162
    %1166 = vrot.lane.b32.xlu0 %v1160, 64
    %v1167 = vpop.permute.xlu0 %1166
    %v1169 = vmul.f32 %v1159, %v1167
    %1171 = vrot.lane.b32.xlu0 %v1169, 32
    %v1172 = vpop.permute.xlu0 %1171
    %v1174 = vadd.f32 %v1164, %v1172
    %v1175 = vtanh.pop %v1174
    %1177 = vrot.lane.b32.xlu0 %v1175, 64
    %v1178 = vpop.permute.xlu0 %1177
    %v1180 = vmul.f32 %v1159, %v1178
    %v1182 = vrot.slane %v1180, 6
    %1183 = vrot.lane.b32.xlu0 %v1182, 32
    %v1184 = vpop.permute.xlu0 %1183
    %v1185 = vsel %vm240, %v1184, 0
    %1187 = vmatprep.subr.mxu0 0.0
    %1188 = vmatpush1.msra.mxu0 %v126
    %1189 = vmatprep.subr.mxu0 0.0
    %1190 = vmatpush1.msra.mxu0 %v127
    %1191 = vmatprep.subr.mxu0 0.0
    %1192 = vmatpush1.msra.mxu0 %v128
    %1193 = vmatprep.subr.mxu0 0.0
    %1194 = vmatpush1.msra.mxu0 %v129
    %1195 = vmatprep.subr.mxu0 0.0
    %1196 = vmatpush1.msra.mxu0 0.0
    %1197 = vmatprep.subr.mxu0 0.0
    %1198 = vmatpush1.msra.mxu0 0.0
    %1199 = vmatprep.subr.mxu0 0.0
    %1200 = vmatpush1.msra.mxu0 0.0
    %1201 = vmatprep.subr.mxu0 0.0
    %1202 = vmatpush1.msra.mxu0 0.0
    %1203 = vmatprep.subr.mxu0 0.0
    %1204 = vmatpush1.msra.mxu0 0.0
    %1205 = vmatprep.subr.mxu0 0.0
    %1206 = vmatpush1.msra.mxu0 0.0
    %1207 = vmatprep.subr.mxu0 0.0
    %1208 = vmatpush1.msra.mxu0 0.0
    %1209 = vmatprep.subr.mxu0 0.0
    %1210 = vmatpush1.msra.mxu0 0.0
    %1211 = vmatprep.subr.mxu0 0.0
    %1212 = vmatpush1.msra.mxu0 0.0
    %1213 = vmatprep.subr.mxu0 0.0
    %1214 = vmatpush1.msra.mxu0 0.0
    %1215 = vmatprep.subr.mxu0 0.0
    %1216 = vmatpush1.msra.mxu0 0.0
    %1217 = vmatprep.subr.mxu0 0.0
    %1218 = vmatpush1.msra.mxu0 0.0
    %1219 = vmatprep.subr.mxu0 0.0
    %1220 = vmatpush1.msra.mxu0 0.0
    %1221 = vmatprep.subr.mxu0 0.0
    %1222 = vmatpush1.msra.mxu0 0.0
    %1223 = vmatprep.subr.mxu0 0.0
    %1224 = vmatpush1.msra.mxu0 0.0
    %1225 = vmatprep.subr.mxu0 0.0
    %1226 = vmatpush1.msra.mxu0 0.0
    %1227 = vmatprep.subr.mxu0 0.0
    %1228 = vmatpush1.msra.mxu0 0.0
    %1229 = vmatprep.subr.mxu0 0.0
    %1230 = vmatpush1.msra.mxu0 0.0
    %1231 = vmatprep.subr.mxu0 0.0
    %1232 = vmatpush1.msra.mxu0 0.0
    %1233 = vmatprep.subr.mxu0 0.0
    %1234 = vmatpush1.msra.mxu0 0.0
    %1235 = vmatprep.subr.mxu0 0.0
    %1236 = vmatpush1.msra.mxu0 0.0
    %1237 = vmatprep.subr.mxu0 0.0
    %1238 = vmatpush1.msra.mxu0 0.0
    %1239 = vmatprep.subr.mxu0 0.0
    %1240 = vmatpush1.msra.mxu0 0.0
    %1241 = vmatprep.subr.mxu0 0.0
    %1242 = vmatpush1.msra.mxu0 0.0
    %1243 = vmatprep.subr.mxu0 0.0
    %1244 = vmatpush1.msra.mxu0 0.0
    %1245 = vmatprep.subr.mxu0 0.0
    %1246 = vmatpush1.msra.mxu0 0.0
    %1247 = vmatprep.subr.mxu0 0.0
    %1248 = vmatpush1.msra.mxu0 0.0
    %1249 = vmatprep.subr.mxu0 0.0
    %1250 = vmatpush1.msra.mxu0 0.0
    %1251 = vmatprep.mubr.f32.mxu0 0.0
    %1252 = vmatmul.mubr.f32.gmra.mrb[0].mxu0 %v1185
    %v1253 = vpop.f32.mrb[0].mxu0
    %v1254 = vadd.f32 %v347, %v1253
    %v1255 = vpop.f32.mrb[0].mxu0
    %1256 = vdwg.mxu0
    %1258 = vrot.lane.b32.xlu0 %v1079, 32
    %v1259 = vpop.permute.xlu0 %1258
    %v1260 = vsel %vm240, %v1259, 0
    %1262 = vmatprep.subr.mxu0 0.0
    %1263 = vmatpush1.msra.mxu0 %v134
    %1264 = vmatprep.subr.mxu0 0.0
    %1265 = vmatpush1.msra.mxu0 %v135
    %1266 = vmatprep.subr.mxu0 0.0
    %1267 = vmatpush1.msra.mxu0 %v136
    %1268 = vmatprep.subr.mxu0 0.0
    %1269 = vmatpush1.msra.mxu0 %v137
    %1270 = vmatprep.subr.mxu0 0.0
    %1271 = vmatpush1.msra.mxu0 0.0
    %1272 = vmatprep.subr.mxu0 0.0
    %1273 = vmatpush1.msra.mxu0 0.0
    %1274 = vmatprep.subr.mxu0 0.0
    %1275 = vmatpush1.msra.mxu0 0.0
    %1276 = vmatprep.subr.mxu0 0.0
    %1277 = vmatpush1.msra.mxu0 0.0
    %1278 = vmatprep.subr.mxu0 0.0
    %1279 = vmatpush1.msra.mxu0 0.0
    %1280 = vmatprep.subr.mxu0 0.0
    %1281 = vmatpush1.msra.mxu0 0.0
    %1282 = vmatprep.subr.mxu0 0.0
    %1283 = vmatpush1.msra.mxu0 0.0
    %1284 = vmatprep.subr.mxu0 0.0
    %1285 = vmatpush1.msra.mxu0 0.0
    %1286 = vmatprep.subr.mxu0 0.0
    %1287 = vmatpush1.msra.mxu0 0.0
    %1288 = vmatprep.subr.mxu0 0.0
    %1289 = vmatpush1.msra.mxu0 0.0
    %1290 = vmatprep.subr.mxu0 0.0
    %1291 = vmatpush1.msra.mxu0 0.0
    %1292 = vmatprep.subr.mxu0 0.0
    %1293 = vmatpush1.msra.mxu0 0.0
    %1294 = vmatprep.subr.mxu0 0.0
    %1295 = vmatpush1.msra.mxu0 0.0
    %1296 = vmatprep.subr.mxu0 0.0
    %1297 = vmatpush1.msra.mxu0 0.0
    %1298 = vmatprep.subr.mxu0 0.0
    %1299 = vmatpush1.msra.mxu0 0.0
    %1300 = vmatprep.subr.mxu0 0.0
    %1301 = vmatpush1.msra.mxu0 0.0
    %1302 = vmatprep.subr.mxu0 0.0
    %1303 = vmatpush1.msra.mxu0 0.0
    %1304 = vmatprep.subr.mxu0 0.0
    %1305 = vmatpush1.msra.mxu0 0.0
    %1306 = vmatprep.subr.mxu0 0.0
    %1307 = vmatpush1.msra.mxu0 0.0
    %1308 = vmatprep.subr.mxu0 0.0
    %1309 = vmatpush1.msra.mxu0 0.0
    %1310 = vmatprep.subr.mxu0 0.0
    %1311 = vmatpush1.msra.mxu0 0.0
    %1312 = vmatprep.subr.mxu0 0.0
    %1313 = vmatpush1.msra.mxu0 0.0
    %1314 = vmatprep.subr.mxu0 0.0
    %1315 = vmatpush1.msra.mxu0 0.0
    %1316 = vmatprep.subr.mxu0 0.0
    %1317 = vmatpush1.msra.mxu0 0.0
    %1318 = vmatprep.subr.mxu0 0.0
    %1319 = vmatpush1.msra.mxu0 0.0
    %1320 = vmatprep.subr.mxu0 0.0
    %1321 = vmatpush1.msra.mxu0 0.0
    %1322 = vmatprep.subr.mxu0 0.0
    %1323 = vmatpush1.msra.mxu0 0.0
    %1324 = vmatprep.subr.mxu0 0.0
    %1325 = vmatpush1.msra.mxu0 0.0
    %1326 = vmatprep.mubr.f32.mxu0 0.0
    %1327 = vmatmul.mubr.f32.gmra.mrb[0].mxu0 %v1260
    %v1328 = vpop.f32.mrb[0].mxu0
    %v1329 = vadd.f32 0.0, %v1328
    %v1330 = vpop.f32.mrb[0].mxu0
    %1331 = vdwg.mxu0
    %v1332 = vadd.f32 %v1254, %v1329
    %v1333 = vxor.u32 %v1332, 2147483648
    %v1334 = vmul.f32 %v1333, 1.442695
    %v1335 = vpow.pop %v1334
    %v1336 = vadd.f32 %v1335, 1.0
    %v1337 = vrcp.pop %v1336
    %v1338 = vmul.f32 1.0, %v1337
    %v1339 = vtanh.pop %v1332
    %v1340 = vmul.f32 %v1338, %v1073
    %1342 = vrot.lane.b32.xlu0 %v1339, 64
    %v1343 = vpop.permute.xlu0 %1342
    %v1345 = vmul.f32 %v1338, %v1343
    %1347 = vrot.lane.b32.xlu0 %v1345, 32
    %v1348 = vpop.permute.xlu0 %1347
    %v1350 = vadd.f32 %v1340, %v1348
    %v1351 = vtanh.pop %v1350
    %1353 = vrot.lane.b32.xlu0 %v1351, 64
    %v1354 = vpop.permute.xlu0 %1353
    %v1356 = vmul.f32 %v1338, %v1354
    %1357 = vmatprep.subr.mxu0 0.0
    %1358 = vmatpush1.msra.mxu0 %v130
    %1359 = vmatprep.subr.mxu0 0.0
    %1360 = vmatpush1.msra.mxu0 %v131
    %1361 = vmatprep.subr.mxu0 0.0
    %1362 = vmatpush1.msra.mxu0 %v132
    %1363 = vmatprep.subr.mxu0 0.0
    %1364 = vmatpush1.msra.mxu0 %v133
    %1365 = vmatprep.subr.mxu0 0.0
    %1366 = vmatpush1.msra.mxu0 0.0
    %1367 = vmatprep.subr.mxu0 0.0
    %1368 = vmatpush1.msra.mxu0 0.0
    %1369 = vmatprep.subr.mxu0 0.0
    %1370 = vmatpush1.msra.mxu0 0.0
    %1371 = vmatprep.subr.mxu0 0.0
    %1372 = vmatpush1.msra.mxu0 0.0
    %1373 = vmatprep.subr.mxu0 0.0
    %1374 = vmatpush1.msra.mxu0 0.0
    %1375 = vmatprep.subr.mxu0 0.0
    %1376 = vmatpush1.msra.mxu0 0.0
    %1377 = vmatprep.subr.mxu0 0.0
    %1378 = vmatpush1.msra.mxu0 0.0
    %1379 = vmatprep.subr.mxu0 0.0
    %1380 = vmatpush1.msra.mxu0 0.0
    %1381 = vmatprep.subr.mxu0 0.0
    %1382 = vmatpush1.msra.mxu0 0.0
    %1383 = vmatprep.subr.mxu0 0.0
    %1384 = vmatpush1.msra.mxu0 0.0
    %1385 = vmatprep.subr.mxu0 0.0
    %1386 = vmatpush1.msra.mxu0 0.0
    %1387 = vmatprep.subr.mxu0 0.0
    %1388 = vmatpush1.msra.mxu0 0.0
    %1389 = vmatprep.subr.mxu0 0.0
    %1390 = vmatpush1.msra.mxu0 0.0
    %1391 = vmatprep.subr.mxu0 0.0
    %1392 = vmatpush1.msra.mxu0 0.0
    %1393 = vmatprep.subr.mxu0 0.0
    %1394 = vmatpush1.msra.mxu0 0.0
    %1395 = vmatprep.subr.mxu0 0.0
    %1396 = vmatpush1.msra.mxu0 0.0
    %1397 = vmatprep.subr.mxu0 0.0
    %1398 = vmatpush1.msra.mxu0 0.0
    %1399 = vmatprep.subr.mxu0 0.0
    %1400 = vmatpush1.msra.mxu0 0.0
    %1401 = vmatprep.subr.mxu0 0.0
    %1402 = vmatpush1.msra.mxu0 0.0
    %1403 = vmatprep.subr.mxu0 0.0
    %1404 = vmatpush1.msra.mxu0 0.0
    %1405 = vmatprep.subr.mxu0 0.0
    %1406 = vmatpush1.msra.mxu0 0.0
    %1407 = vmatprep.subr.mxu0 0.0
    %1408 = vmatpush1.msra.mxu0 0.0
    %1409 = vmatprep.subr.mxu0 0.0
    %1410 = vmatpush1.msra.mxu0 0.0
    %1411 = vmatprep.subr.mxu0 0.0
    %1412 = vmatpush1.msra.mxu0 0.0
    %1413 = vmatprep.subr.mxu0 0.0
    %1414 = vmatpush1.msra.mxu0 0.0
    %1415 = vmatprep.subr.mxu0 0.0
    %1416 = vmatpush1.msra.mxu0 0.0
    %1417 = vmatprep.subr.mxu0 0.0
    %1418 = vmatpush1.msra.mxu0 0.0
    %1419 = vmatprep.subr.mxu0 0.0
    %1420 = vmatpush1.msra.mxu0 0.0
    %1421 = vmatprep.mubr.f32.mxu0 0.0
    %1422 = vmatmul.mubr.f32.gmra.mrb[0].mxu0 %v1185
    %v1423 = vpop.f32.mrb[0].mxu0
    %v1424 = vadd.f32 0.0, %v1423
    %v1425 = vpop.f32.mrb[0].mxu0
    %1426 = vdwg.mxu0
    %v1427 = vadd.f32 %v231, %v1424
    %v1428 = vxor.u32 %v1427, 2147483648
    %v1429 = vmul.f32 %v1428, 1.442695
    %v1430 = vpow.pop %v1429
    %v1431 = vadd.f32 %v1430, 1.0
    %v1432 = vrcp.pop %v1431
    %v1433 = vmul.f32 1.0, %v1432
    %v1434 = vtanh.pop %v1427
    %v1436 = vrot.slane %v1174, 6
    %v1438 = vmul.f32 %v1433, %v1436
    %1440 = vrot.lane.b32.xlu0 %v1434, 64
    %v1441 = vpop.permute.xlu0 %1440
    %v1443 = vmul.f32 %v1433, %v1441
    %1445 = vrot.lane.b32.xlu0 %v1443, 32
    %v1446 = vpop.permute.xlu0 %1445
    %v1448 = vadd.f32 %v1438, %v1446
    %v1449 = vtanh.pop %v1448
    %1451 = vrot.lane.b32.xlu0 %v1449, 64
    %v1452 = vpop.permute.xlu0 %1451
    %v1454 = vmul.f32 %v1433, %v1452
    %1456 = vrot.lane.b32.xlu0 %v1454, 32
    %v1457 = vpop.permute.xlu0 %1456
    %v1458 = vsel %vm240, %v1457, 0
    %1460 = vmatprep.subr.mxu0 0.0
    %1461 = vmatpush1.msra.mxu0 %v126
    %1462 = vmatprep.subr.mxu0 0.0
    %1463 = vmatpush1.msra.mxu0 %v127
    %1464 = vmatprep.subr.mxu0 0.0
    %1465 = vmatpush1.msra.mxu0 %v128
    %1466 = vmatprep.subr.mxu0 0.0
    %1467 = vmatpush1.msra.mxu0 %v129
    %1468 = vmatprep.subr.mxu0 0.0
    %1469 = vmatpush1.msra.mxu0 0.0
    %1470 = vmatprep.subr.mxu0 0.0
    %1471 = vmatpush1.msra.mxu0 0.0
    %1472 = vmatprep.subr.mxu0 0.0
    %1473 = vmatpush1.msra.mxu0 0.0
    %1474 = vmatprep.subr.mxu0 0.0
    %1475 = vmatpush1.msra.mxu0 0.0
    %1476 = vmatprep.subr.mxu0 0.0
    %1477 = vmatpush1.msra.mxu0 0.0
    %1478 = vmatprep.subr.mxu0 0.0
    %1479 = vmatpush1.msra.mxu0 0.0
    %1480 = vmatprep.subr.mxu0 0.0
    %1481 = vmatpush1.msra.mxu0 0.0
    %1482 = vmatprep.subr.mxu0 0.0
    %1483 = vmatpush1.msra.mxu0 0.0
    %1484 = vmatprep.subr.mxu0 0.0
    %1485 = vmatpush1.msra.mxu0 0.0
    %1486 = vmatprep.subr.mxu0 0.0
    %1487 = vmatpush1.msra.mxu0 0.0
    %1488 = vmatprep.subr.mxu0 0.0
    %1489 = vmatpush1.msra.mxu0 0.0
    %1490 = vmatprep.subr.mxu0 0.0
    %1491 = vmatpush1.msra.mxu0 0.0
    %1492 = vmatprep.subr.mxu0 0.0
    %1493 = vmatpush1.msra.mxu0 0.0
    %1494 = vmatprep.subr.mxu0 0.0
    %1495 = vmatpush1.msra.mxu0 0.0
    %1496 = vmatprep.subr.mxu0 0.0
    %1497 = vmatpush1.msra.mxu0 0.0
    %1498 = vmatprep.subr.mxu0 0.0
    %1499 = vmatpush1.msra.mxu0 0.0
    %1500 = vmatprep.subr.mxu0 0.0
    %1501 = vmatpush1.msra.mxu0 0.0
    %1502 = vmatprep.subr.mxu0 0.0
    %1503 = vmatpush1.msra.mxu0 0.0
    %1504 = vmatprep.subr.mxu0 0.0
    %1505 = vmatpush1.msra.mxu0 0.0
    %1506 = vmatprep.subr.mxu0 0.0
    %1507 = vmatpush1.msra.mxu0 0.0
    %1508 = vmatprep.subr.mxu0 0.0
    %1509 = vmatpush1.msra.mxu0 0.0
    %1510 = vmatprep.subr.mxu0 0.0
    %1511 = vmatpush1.msra.mxu0 0.0
    %1512 = vmatprep.subr.mxu0 0.0
    %1513 = vmatpush1.msra.mxu0 0.0
    %1514 = vmatprep.subr.mxu0 0.0
    %1515 = vmatpush1.msra.mxu0 0.0
    %1516 = vmatprep.subr.mxu0 0.0
    %1517 = vmatpush1.msra.mxu0 0.0
    %1518 = vmatprep.subr.mxu0 0.0
    %1519 = vmatpush1.msra.mxu0 0.0
    %1520 = vmatprep.subr.mxu0 0.0
    %1521 = vmatpush1.msra.mxu0 0.0
    %1522 = vmatprep.subr.mxu0 0.0
    %1523 = vmatpush1.msra.mxu0 0.0
    %1524 = vmatprep.mubr.f32.mxu0 0.0
    %1525 = vmatmul.mubr.f32.gmra.mrb[0].mxu0 %v1458
    %v1526 = vpop.f32.mrb[0].mxu0
    %v1527 = vadd.f32 %v347, %v1526
    %v1528 = vpop.f32.mrb[0].mxu0
    %1529 = vdwg.mxu0
    %1531 = vrot.lane.b32.xlu0 %v1356, 32
    %v1532 = vpop.permute.xlu0 %1531
    %v1533 = vsel %vm240, %v1532, 0
    %1535 = vmatprep.subr.mxu0 0.0
    %1536 = vmatpush1.msra.mxu0 %v134
    %1537 = vmatprep.subr.mxu0 0.0
    %1538 = vmatpush1.msra.mxu0 %v135
    %1539 = vmatprep.subr.mxu0 0.0
    %1540 = vmatpush1.msra.mxu0 %v136
    %1541 = vmatprep.subr.mxu0 0.0
    %1542 = vmatpush1.msra.mxu0 %v137
    %1543 = vmatprep.subr.mxu0 0.0
    %1544 = vmatpush1.msra.mxu0 0.0
    %1545 = vmatprep.subr.mxu0 0.0
    %1546 = vmatpush1.msra.mxu0 0.0
    %1547 = vmatprep.subr.mxu0 0.0
    %1548 = vmatpush1.msra.mxu0 0.0
    %1549 = vmatprep.subr.mxu0 0.0
    %1550 = vmatpush1.msra.mxu0 0.0
    %1551 = vmatprep.subr.mxu0 0.0
    %1552 = vmatpush1.msra.mxu0 0.0
    %1553 = vmatprep.subr.mxu0 0.0
    %1554 = vmatpush1.msra.mxu0 0.0
    %1555 = vmatprep.subr.mxu0 0.0
    %1556 = vmatpush1.msra.mxu0 0.0
    %1557 = vmatprep.subr.mxu0 0.0
    %1558 = vmatpush1.msra.mxu0 0.0
    %1559 = vmatprep.subr.mxu0 0.0
    %1560 = vmatpush1.msra.mxu0 0.0
    %1561 = vmatprep.subr.mxu0 0.0
    %1562 = vmatpush1.msra.mxu0 0.0
    %1563 = vmatprep.subr.mxu0 0.0
    %1564 = vmatpush1.msra.mxu0 0.0
    %1565 = vmatprep.subr.mxu0 0.0
    %1566 = vmatpush1.msra.mxu0 0.0
    %1567 = vmatprep.subr.mxu0 0.0
    %1568 = vmatpush1.msra.mxu0 0.0
    %1569 = vmatprep.subr.mxu0 0.0
    %1570 = vmatpush1.msra.mxu0 0.0
    %1571 = vmatprep.subr.mxu0 0.0
    %1572 = vmatpush1.msra.mxu0 0.0
    %1573 = vmatprep.subr.mxu0 0.0
    %1574 = vmatpush1.msra.mxu0 0.0
    %1575 = vmatprep.subr.mxu0 0.0
    %1576 = vmatpush1.msra.mxu0 0.0
    %1577 = vmatprep.subr.mxu0 0.0
    %1578 = vmatpush1.msra.mxu0 0.0
    %1579 = vmatprep.subr.mxu0 0.0
    %1580 = vmatpush1.msra.mxu0 0.0
    %1581 = vmatprep.subr.mxu0 0.0
    %1582 = vmatpush1.msra.mxu0 0.0
    %1583 = vmatprep.subr.mxu0 0.0
    %1584 = vmatpush1.msra.mxu0 0.0
    %1585 = vmatprep.subr.mxu0 0.0
    %1586 = vmatpush1.msra.mxu0 0.0
    %1587 = vmatprep.subr.mxu0 0.0
    %1588 = vmatpush1.msra.mxu0 0.0
    %1589 = vmatprep.subr.mxu0 0.0
    %1590 = vmatpush1.msra.mxu0 0.0
    %1591 = vmatprep.subr.mxu0 0.0
    %1592 = vmatpush1.msra.mxu0 0.0
    %1593 = vmatprep.subr.mxu0 0.0
    %1594 = vmatpush1.msra.mxu0 0.0
    %1595 = vmatprep.subr.mxu0 0.0
    %1596 = vmatpush1.msra.mxu0 0.0
    %1597 = vmatprep.subr.mxu0 0.0
    %1598 = vmatpush1.msra.mxu0 0.0
    %1599 = vmatprep.mubr.f32.mxu0 0.0
    %1600 = vmatmul.mubr.f32.gmra.mrb[0].mxu0 %v1533
    %v1601 = vpop.f32.mrb[0].mxu0
    %v1602 = vadd.f32 0.0, %v1601
    %v1603 = vpop.f32.mrb[0].mxu0
    %1604 = vdwg.mxu0
    %v1605 = vadd.f32 %v1527, %v1602
    %v1606 = vxor.u32 %v1605, 2147483648
    %v1607 = vmul.f32 %v1606, 1.442695
    %v1608 = vpow.pop %v1607
    %v1609 = vadd.f32 %v1608, 1.0
    %v1610 = vrcp.pop %v1609
    %v1611 = vmul.f32 1.0, %v1610
    %v1612 = vtanh.pop %v1605
    %v1613 = vmul.f32 %v1611, %v1350
    %1615 = vrot.lane.b32.xlu0 %v1612, 64
    %v1616 = vpop.permute.xlu0 %1615
    %v1618 = vmul.f32 %v1611, %v1616
    %1620 = vrot.lane.b32.xlu0 %v1618, 32
    %v1621 = vpop.permute.xlu0 %1620
    %v1623 = vadd.f32 %v1613, %v1621
    %v1624 = vtanh.pop %v1623
    %1626 = vrot.lane.b32.xlu0 %v1624, 64
    %v1627 = vpop.permute.xlu0 %1626
    %v1629 = vmul.f32 %v1611, %v1627
    %1630 = vmatprep.subr.mxu0 0.0
    %1631 = vmatpush1.msra.mxu0 %v130
    %1632 = vmatprep.subr.mxu0 0.0
    %1633 = vmatpush1.msra.mxu0 %v131
    %1634 = vmatprep.subr.mxu0 0.0
    %1635 = vmatpush1.msra.mxu0 %v132
    %1636 = vmatprep.subr.mxu0 0.0
    %1637 = vmatpush1.msra.mxu0 %v133
    %1638 = vmatprep.subr.mxu0 0.0
    %1639 = vmatpush1.msra.mxu0 0.0
    %1640 = vmatprep.subr.mxu0 0.0
    %1641 = vmatpush1.msra.mxu0 0.0
    %1642 = vmatprep.subr.mxu0 0.0
    %1643 = vmatpush1.msra.mxu0 0.0
    %1644 = vmatprep.subr.mxu0 0.0
    %1645 = vmatpush1.msra.mxu0 0.0
    %1646 = vmatprep.subr.mxu0 0.0
    %1647 = vmatpush1.msra.mxu0 0.0
    %1648 = vmatprep.subr.mxu0 0.0
    %1649 = vmatpush1.msra.mxu0 0.0
    %1650 = vmatprep.subr.mxu0 0.0
    %1651 = vmatpush1.msra.mxu0 0.0
    %1652 = vmatprep.subr.mxu0 0.0
    %1653 = vmatpush1.msra.mxu0 0.0
    %1654 = vmatprep.subr.mxu0 0.0
    %1655 = vmatpush1.msra.mxu0 0.0
    %1656 = vmatprep.subr.mxu0 0.0
    %1657 = vmatpush1.msra.mxu0 0.0
    %1658 = vmatprep.subr.mxu0 0.0
    %1659 = vmatpush1.msra.mxu0 0.0
    %1660 = vmatprep.subr.mxu0 0.0
    %1661 = vmatpush1.msra.mxu0 0.0
    %1662 = vmatprep.subr.mxu0 0.0
    %1663 = vmatpush1.msra.mxu0 0.0
    %1664 = vmatprep.subr.mxu0 0.0
    %1665 = vmatpush1.msra.mxu0 0.0
    %1666 = vmatprep.subr.mxu0 0.0
    %1667 = vmatpush1.msra.mxu0 0.0
    %1668 = vmatprep.subr.mxu0 0.0
    %1669 = vmatpush1.msra.mxu0 0.0
    %1670 = vmatprep.subr.mxu0 0.0
    %1671 = vmatpush1.msra.mxu0 0.0
    %1672 = vmatprep.subr.mxu0 0.0
    %1673 = vmatpush1.msra.mxu0 0.0
    %1674 = vmatprep.subr.mxu0 0.0
    %1675 = vmatpush1.msra.mxu0 0.0
    %1676 = vmatprep.subr.mxu0 0.0
    %1677 = vmatpush1.msra.mxu0 0.0
    %1678 = vmatprep.subr.mxu0 0.0
    %1679 = vmatpush1.msra.mxu0 0.0
    %1680 = vmatprep.subr.mxu0 0.0
    %1681 = vmatpush1.msra.mxu0 0.0
    %1682 = vmatprep.subr.mxu0 0.0
    %1683 = vmatpush1.msra.mxu0 0.0
    %1684 = vmatprep.subr.mxu0 0.0
    %1685 = vmatpush1.msra.mxu0 0.0
    %1686 = vmatprep.subr.mxu0 0.0
    %1687 = vmatpush1.msra.mxu0 0.0
    %1688 = vmatprep.subr.mxu0 0.0
    %1689 = vmatpush1.msra.mxu0 0.0
    %1690 = vmatprep.subr.mxu0 0.0
    %1691 = vmatpush1.msra.mxu0 0.0
    %1692 = vmatprep.subr.mxu0 0.0
    %1693 = vmatpush1.msra.mxu0 0.0
    %1694 = vmatprep.mubr.f32.mxu0 0.0
    %1695 = vmatmul.mubr.f32.gmra.mrb[0].mxu0 %v1458
    %v1696 = vpop.f32.mrb[0].mxu0
    %v1697 = vadd.f32 0.0, %v1696
    %v1698 = vpop.f32.mrb[0].mxu0
    %1699 = vdwg.mxu0
    %v1701 = vrot.slane %v1697, 6
    %v1703 = vadd.f32 %v231, %v1701
    %v1704 = vxor.u32 %v1703, 2147483648
    %v1705 = vmul.f32 %v1704, 1.442695
    %v1706 = vpow.pop %v1705
    %v1707 = vadd.f32 %v1706, 1.0
    %v1708 = vrcp.pop %v1707
    %v1709 = vmul.f32 1.0, %v1708
    %v1710 = vtanh.pop %v1703
    %v1712 = vrot.slane %v1448, 6
    %v1714 = vmul.f32 %v1709, %v1712
    %1716 = vrot.lane.b32.xlu0 %v1710, 64
    %v1717 = vpop.permute.xlu0 %1716
    %v1719 = vmul.f32 %v1709, %v1717
    %1721 = vrot.lane.b32.xlu0 %v1719, 32
    %v1722 = vpop.permute.xlu0 %1721
    %v1724 = vadd.f32 %v1714, %v1722
    %v1725 = vtanh.pop %v1724
    %1727 = vrot.lane.b32.xlu0 %v1725, 64
    %v1728 = vpop.permute.xlu0 %1727
    %v1730 = vmul.f32 %v1709, %v1728
    %v1732 = vrot.slane %v1730, 2
    %1733 = vrot.lane.b32.xlu0 %v1732, 32
    %v1734 = vpop.permute.xlu0 %1733
    %v1735 = vsel %vm240, %v1734, 0
    %1737 = vmatprep.subr.mxu0 0.0
    %1738 = vmatpush1.msra.mxu0 %v126
    %1739 = vmatprep.subr.mxu0 0.0
    %1740 = vmatpush1.msra.mxu0 %v127
    %1741 = vmatprep.subr.mxu0 0.0
    %1742 = vmatpush1.msra.mxu0 %v128
    %1743 = vmatprep.subr.mxu0 0.0
    %1744 = vmatpush1.msra.mxu0 %v129
    %1745 = vmatprep.subr.mxu0 0.0
    %1746 = vmatpush1.msra.mxu0 0.0
    %1747 = vmatprep.subr.mxu0 0.0
    %1748 = vmatpush1.msra.mxu0 0.0
    %1749 = vmatprep.subr.mxu0 0.0
    %1750 = vmatpush1.msra.mxu0 0.0
    %1751 = vmatprep.subr.mxu0 0.0
    %1752 = vmatpush1.msra.mxu0 0.0
    %1753 = vmatprep.subr.mxu0 0.0
    %1754 = vmatpush1.msra.mxu0 0.0
    %1755 = vmatprep.subr.mxu0 0.0
    %1756 = vmatpush1.msra.mxu0 0.0
    %1757 = vmatprep.subr.mxu0 0.0
    %1758 = vmatpush1.msra.mxu0 0.0
    %1759 = vmatprep.subr.mxu0 0.0
    %1760 = vmatpush1.msra.mxu0 0.0
    %1761 = vmatprep.subr.mxu0 0.0
    %1762 = vmatpush1.msra.mxu0 0.0
    %1763 = vmatprep.subr.mxu0 0.0
    %1764 = vmatpush1.msra.mxu0 0.0
    %1765 = vmatprep.subr.mxu0 0.0
    %1766 = vmatpush1.msra.mxu0 0.0
    %1767 = vmatprep.subr.mxu0 0.0
    %1768 = vmatpush1.msra.mxu0 0.0
    %1769 = vmatprep.subr.mxu0 0.0
    %1770 = vmatpush1.msra.mxu0 0.0
    %1771 = vmatprep.subr.mxu0 0.0
    %1772 = vmatpush1.msra.mxu0 0.0
    %1773 = vmatprep.subr.mxu0 0.0
    %1774 = vmatpush1.msra.mxu0 0.0
    %1775 = vmatprep.subr.mxu0 0.0
    %1776 = vmatpush1.msra.mxu0 0.0
    %1777 = vmatprep.subr.mxu0 0.0
    %1778 = vmatpush1.msra.mxu0 0.0
    %1779 = vmatprep.subr.mxu0 0.0
    %1780 = vmatpush1.msra.mxu0 0.0
    %1781 = vmatprep.subr.mxu0 0.0
    %1782 = vmatpush1.msra.mxu0 0.0
    %1783 = vmatprep.subr.mxu0 0.0
    %1784 = vmatpush1.msra.mxu0 0.0
    %1785 = vmatprep.subr.mxu0 0.0
    %1786 = vmatpush1.msra.mxu0 0.0
    %1787 = vmatprep.subr.mxu0 0.0
    %1788 = vmatpush1.msra.mxu0 0.0
    %1789 = vmatprep.subr.mxu0 0.0
    %1790 = vmatpush1.msra.mxu0 0.0
    %1791 = vmatprep.subr.mxu0 0.0
    %1792 = vmatpush1.msra.mxu0 0.0
    %1793 = vmatprep.subr.mxu0 0.0
    %1794 = vmatpush1.msra.mxu0 0.0
    %1795 = vmatprep.subr.mxu0 0.0
    %1796 = vmatpush1.msra.mxu0 0.0
    %1797 = vmatprep.subr.mxu0 0.0
    %1798 = vmatpush1.msra.mxu0 0.0
    %1799 = vmatprep.subr.mxu0 0.0
    %1800 = vmatpush1.msra.mxu0 0.0
    %1801 = vmatprep.mubr.f32.mxu0 0.0
    %1802 = vmatmul.mubr.f32.gmra.mrb[0].mxu0 %v1735
    %v1803 = vpop.f32.mrb[0].mxu0
    %v1804 = vadd.f32 %v347, %v1803
    %v1805 = vpop.f32.mrb[0].mxu0
    %1806 = vdwg.mxu0
    %1808 = vrot.lane.b32.xlu0 %v1629, 32
    %v1809 = vpop.permute.xlu0 %1808
    %v1810 = vsel %vm240, %v1809, 0
    %1812 = vmatprep.subr.mxu0 0.0
    %1813 = vmatpush1.msra.mxu0 %v134
    %1814 = vmatprep.subr.mxu0 0.0
    %1815 = vmatpush1.msra.mxu0 %v135
    %1816 = vmatprep.subr.mxu0 0.0
    %1817 = vmatpush1.msra.mxu0 %v136
    %1818 = vmatprep.subr.mxu0 0.0
    %1819 = vmatpush1.msra.mxu0 %v137
    %1820 = vmatprep.subr.mxu0 0.0
    %1821 = vmatpush1.msra.mxu0 0.0
    %1822 = vmatprep.subr.mxu0 0.0
    %1823 = vmatpush1.msra.mxu0 0.0
    %1824 = vmatprep.subr.mxu0 0.0
    %1825 = vmatpush1.msra.mxu0 0.0
    %1826 = vmatprep.subr.mxu0 0.0
    %1827 = vmatpush1.msra.mxu0 0.0
    %1828 = vmatprep.subr.mxu0 0.0
    %1829 = vmatpush1.msra.mxu0 0.0
    %1830 = vmatprep.subr.mxu0 0.0
    %1831 = vmatpush1.msra.mxu0 0.0
    %1832 = vmatprep.subr.mxu0 0.0
    %1833 = vmatpush1.msra.mxu0 0.0
    %1834 = vmatprep.subr.mxu0 0.0
    %1835 = vmatpush1.msra.mxu0 0.0
    %1836 = vmatprep.subr.mxu0 0.0
    %1837 = vmatpush1.msra.mxu0 0.0
    %1838 = vmatprep.subr.mxu0 0.0
    %1839 = vmatpush1.msra.mxu0 0.0
    %1840 = vmatprep.subr.mxu0 0.0
    %1841 = vmatpush1.msra.mxu0 0.0
    %1842 = vmatprep.subr.mxu0 0.0
    %1843 = vmatpush1.msra.mxu0 0.0
    %1844 = vmatprep.subr.mxu0 0.0
    %1845 = vmatpush1.msra.mxu0 0.0
    %1846 = vmatprep.subr.mxu0 0.0
    %1847 = vmatpush1.msra.mxu0 0.0
    %1848 = vmatprep.subr.mxu0 0.0
    %1849 = vmatpush1.msra.mxu0 0.0
    %1850 = vmatprep.subr.mxu0 0.0
    %1851 = vmatpush1.msra.mxu0 0.0
    %1852 = vmatprep.subr.mxu0 0.0
    %1853 = vmatpush1.msra.mxu0 0.0
    %1854 = vmatprep.subr.mxu0 0.0
    %1855 = vmatpush1.msra.mxu0 0.0
    %1856 = vmatprep.subr.mxu0 0.0
    %1857 = vmatpush1.msra.mxu0 0.0
    %1858 = vmatprep.subr.mxu0 0.0
    %1859 = vmatpush1.msra.mxu0 0.0
    %1860 = vmatprep.subr.mxu0 0.0
    %1861 = vmatpush1.msra.mxu0 0.0
    %1862 = vmatprep.subr.mxu0 0.0
    %1863 = vmatpush1.msra.mxu0 0.0
    %1864 = vmatprep.subr.mxu0 0.0
    %1865 = vmatpush1.msra.mxu0 0.0
    %1866 = vmatprep.subr.mxu0 0.0
    %1867 = vmatpush1.msra.mxu0 0.0
    %1868 = vmatprep.subr.mxu0 0.0
    %1869 = vmatpush1.msra.mxu0 0.0
    %1870 = vmatprep.subr.mxu0 0.0
    %1871 = vmatpush1.msra.mxu0 0.0
    %1872 = vmatprep.subr.mxu0 0.0
    %1873 = vmatpush1.msra.mxu0 0.0
    %1874 = vmatprep.subr.mxu0 0.0
    %1875 = vmatpush1.msra.mxu0 0.0
    %1876 = vmatprep.mubr.f32.mxu0 0.0
    %1877 = vmatmul.mubr.f32.gmra.mrb[0].mxu0 %v1810
    %v1878 = vpop.f32.mrb[0].mxu0
    %v1879 = vadd.f32 0.0, %v1878
    %v1880 = vpop.f32.mrb[0].mxu0
    %1881 = vdwg.mxu0
    %v1882 = vadd.f32 %v1804, %v1879
    %v1883 = vxor.u32 %v1882, 2147483648
    %v1884 = vmul.f32 %v1883, 1.442695
    %v1885 = vpow.pop %v1884
    %v1886 = vadd.f32 %v1885, 1.0
    %v1887 = vrcp.pop %v1886
    %v1888 = vmul.f32 1.0, %v1887
    %v1889 = vtanh.pop %v1882
    %v1890 = vmul.f32 %v1888, %v1623
    %1892 = vrot.lane.b32.xlu0 %v1889, 64
    %v1893 = vpop.permute.xlu0 %1892
    %v1895 = vmul.f32 %v1888, %v1893
    %1897 = vrot.lane.b32.xlu0 %v1895, 32
    %v1898 = vpop.permute.xlu0 %1897
    %v1900 = vadd.f32 %v1890, %v1898
    %v1901 = vtanh.pop %v1900
    %1903 = vrot.lane.b32.xlu0 %v1901, 64
    %v1904 = vpop.permute.xlu0 %1903
    %v1906 = vmul.f32 %v1888, %v1904
    %1907 = vmatprep.subr.mxu0 0.0
    %1908 = vmatpush1.msra.mxu0 %v130
    %1909 = vmatprep.subr.mxu0 0.0
    %1910 = vmatpush1.msra.mxu0 %v131
    %1911 = vmatprep.subr.mxu0 0.0
    %1912 = vmatpush1.msra.mxu0 %v132
    %1913 = vmatprep.subr.mxu0 0.0
    %1914 = vmatpush1.msra.mxu0 %v133
    %1915 = vmatprep.subr.mxu0 0.0
    %1916 = vmatpush1.msra.mxu0 0.0
    %1917 = vmatprep.subr.mxu0 0.0
    %1918 = vmatpush1.msra.mxu0 0.0
    %1919 = vmatprep.subr.mxu0 0.0
    %1920 = vmatpush1.msra.mxu0 0.0
    %1921 = vmatprep.subr.mxu0 0.0
    %1922 = vmatpush1.msra.mxu0 0.0
    %1923 = vmatprep.subr.mxu0 0.0
    %1924 = vmatpush1.msra.mxu0 0.0
    %1925 = vmatprep.subr.mxu0 0.0
    %1926 = vmatpush1.msra.mxu0 0.0
    %1927 = vmatprep.subr.mxu0 0.0
    %1928 = vmatpush1.msra.mxu0 0.0
    %1929 = vmatprep.subr.mxu0 0.0
    %1930 = vmatpush1.msra.mxu0 0.0
    %1931 = vmatprep.subr.mxu0 0.0
    %1932 = vmatpush1.msra.mxu0 0.0
    %1933 = vmatprep.subr.mxu0 0.0
    %1934 = vmatpush1.msra.mxu0 0.0
    %1935 = vmatprep.subr.mxu0 0.0
    %1936 = vmatpush1.msra.mxu0 0.0
    %1937 = vmatprep.subr.mxu0 0.0
    %1938 = vmatpush1.msra.mxu0 0.0
    %1939 = vmatprep.subr.mxu0 0.0
    %1940 = vmatpush1.msra.mxu0 0.0
    %1941 = vmatprep.subr.mxu0 0.0
    %1942 = vmatpush1.msra.mxu0 0.0
    %1943 = vmatprep.subr.mxu0 0.0
    %1944 = vmatpush1.msra.mxu0 0.0
    %1945 = vmatprep.subr.mxu0 0.0
    %1946 = vmatpush1.msra.mxu0 0.0
    %1947 = vmatprep.subr.mxu0 0.0
    %1948 = vmatpush1.msra.mxu0 0.0
    %1949 = vmatprep.subr.mxu0 0.0
    %1950 = vmatpush1.msra.mxu0 0.0
    %1951 = vmatprep.subr.mxu0 0.0
    %1952 = vmatpush1.msra.mxu0 0.0
    %1953 = vmatprep.subr.mxu0 0.0
    %1954 = vmatpush1.msra.mxu0 0.0
    %1955 = vmatprep.subr.mxu0 0.0
    %1956 = vmatpush1.msra.mxu0 0.0
    %1957 = vmatprep.subr.mxu0 0.0
    %1958 = vmatpush1.msra.mxu0 0.0
    %1959 = vmatprep.subr.mxu0 0.0
    %1960 = vmatpush1.msra.mxu0 0.0
    %1961 = vmatprep.subr.mxu0 0.0
    %1962 = vmatpush1.msra.mxu0 0.0
    %1963 = vmatprep.subr.mxu0 0.0
    %1964 = vmatpush1.msra.mxu0 0.0
    %1965 = vmatprep.subr.mxu0 0.0
    %1966 = vmatpush1.msra.mxu0 0.0
    %1967 = vmatprep.subr.mxu0 0.0
    %1968 = vmatpush1.msra.mxu0 0.0
    %1969 = vmatprep.subr.mxu0 0.0
    %1970 = vmatpush1.msra.mxu0 0.0
    %1971 = vmatprep.mubr.f32.mxu0 0.0
    %1972 = vmatmul.mubr.f32.gmra.mrb[0].mxu0 %v1735
    %v1973 = vpop.f32.mrb[0].mxu0
    %v1974 = vadd.f32 0.0, %v1973
    %v1975 = vpop.f32.mrb[0].mxu0
    %1976 = vdwg.mxu0
    %v1978 = vrot.slane %v1974, 4
    %v1980 = vadd.f32 %v231, %v1978
    %v1981 = vxor.u32 %v1980, 2147483648
    %v1982 = vmul.f32 %v1981, 1.442695
    %v1983 = vpow.pop %v1982
    %v1984 = vadd.f32 %v1983, 1.0
    %v1985 = vrcp.pop %v1984
    %v1986 = vmul.f32 1.0, %v1985
    %v1987 = vtanh.pop %v1980
    %v1989 = vrot.slane %v1724, 6
    %v1991 = vmul.f32 %v1986, %v1989
    %1993 = vrot.lane.b32.xlu0 %v1987, 64
    %v1994 = vpop.permute.xlu0 %1993
    %v1996 = vmul.f32 %v1986, %v1994
    %1998 = vrot.lane.b32.xlu0 %v1996, 32
    %v1999 = vpop.permute.xlu0 %1998
    %v2001 = vadd.f32 %v1991, %v1999
    %v2002 = vtanh.pop %v2001
    %2004 = vrot.lane.b32.xlu0 %v2002, 64
    %v2005 = vpop.permute.xlu0 %2004
    %v2007 = vmul.f32 %v1986, %v2005
    %v2009 = vrot.slane %v2007, 4
    %2010 = vrot.lane.b32.xlu0 %v2009, 32
    %v2011 = vpop.permute.xlu0 %2010
    %v2012 = vsel %vm240, %v2011, 0
    %2014 = vmatprep.subr.mxu0 0.0
    %2015 = vmatpush1.msra.mxu0 %v126
    %2016 = vmatprep.subr.mxu0 0.0
    %2017 = vmatpush1.msra.mxu0 %v127
    %2018 = vmatprep.subr.mxu0 0.0
    %2019 = vmatpush1.msra.mxu0 %v128
    %2020 = vmatprep.subr.mxu0 0.0
    %2021 = vmatpush1.msra.mxu0 %v129
    %2022 = vmatprep.subr.mxu0 0.0
    %2023 = vmatpush1.msra.mxu0 0.0
    %2024 = vmatprep.subr.mxu0 0.0
    %2025 = vmatpush1.msra.mxu0 0.0
    %2026 = vmatprep.subr.mxu0 0.0
    %2027 = vmatpush1.msra.mxu0 0.0
    %2028 = vmatprep.subr.mxu0 0.0
    %2029 = vmatpush1.msra.mxu0 0.0
    %2030 = vmatprep.subr.mxu0 0.0
    %2031 = vmatpush1.msra.mxu0 0.0
    %2032 = vmatprep.subr.mxu0 0.0
    %2033 = vmatpush1.msra.mxu0 0.0
    %2034 = vmatprep.subr.mxu0 0.0
    %2035 = vmatpush1.msra.mxu0 0.0
    %2036 = vmatprep.subr.mxu0 0.0
    %2037 = vmatpush1.msra.mxu0 0.0
    %2038 = vmatprep.subr.mxu0 0.0
    %2039 = vmatpush1.msra.mxu0 0.0
    %2040 = vmatprep.subr.mxu0 0.0
    %2041 = vmatpush1.msra.mxu0 0.0
    %2042 = vmatprep.subr.mxu0 0.0
    %2043 = vmatpush1.msra.mxu0 0.0
    %2044 = vmatprep.subr.mxu0 0.0
    %2045 = vmatpush1.msra.mxu0 0.0
    %2046 = vmatprep.subr.mxu0 0.0
    %2047 = vmatpush1.msra.mxu0 0.0
    %2048 = vmatprep.subr.mxu0 0.0
    %2049 = vmatpush1.msra.mxu0 0.0
    %2050 = vmatprep.subr.mxu0 0.0
    %2051 = vmatpush1.msra.mxu0 0.0
    %2052 = vmatprep.subr.mxu0 0.0
    %2053 = vmatpush1.msra.mxu0 0.0
    %2054 = vmatprep.subr.mxu0 0.0
    %2055 = vmatpush1.msra.mxu0 0.0
    %2056 = vmatprep.subr.mxu0 0.0
    %2057 = vmatpush1.msra.mxu0 0.0
    %2058 = vmatprep.subr.mxu0 0.0
    %2059 = vmatpush1.msra.mxu0 0.0
    %2060 = vmatprep.subr.mxu0 0.0
    %2061 = vmatpush1.msra.mxu0 0.0
    %2062 = vmatprep.subr.mxu0 0.0
    %2063 = vmatpush1.msra.mxu0 0.0
    %2064 = vmatprep.subr.mxu0 0.0
    %2065 = vmatpush1.msra.mxu0 0.0
    %2066 = vmatprep.subr.mxu0 0.0
    %2067 = vmatpush1.msra.mxu0 0.0
    %2068 = vmatprep.subr.mxu0 0.0
    %2069 = vmatpush1.msra.mxu0 0.0
    %2070 = vmatprep.subr.mxu0 0.0
    %2071 = vmatpush1.msra.mxu0 0.0
    %2072 = vmatprep.subr.mxu0 0.0
    %2073 = vmatpush1.msra.mxu0 0.0
    %2074 = vmatprep.subr.mxu0 0.0
    %2075 = vmatpush1.msra.mxu0 0.0
    %2076 = vmatprep.subr.mxu0 0.0
    %2077 = vmatpush1.msra.mxu0 0.0
    %2078 = vmatprep.mubr.f32.mxu0 0.0
    %2079 = vmatmul.mubr.f32.gmra.mrb[0].mxu0 %v2012
    %v2080 = vpop.f32.mrb[0].mxu0
    %v2081 = vadd.f32 %v347, %v2080
    %v2082 = vpop.f32.mrb[0].mxu0
    %2083 = vdwg.mxu0
    %2085 = vrot.lane.b32.xlu0 %v1906, 32
    %v2086 = vpop.permute.xlu0 %2085
    %v2087 = vsel %vm240, %v2086, 0
    %2089 = vmatprep.subr.mxu0 0.0
    %2090 = vmatpush1.msra.mxu0 %v134
    %2091 = vmatprep.subr.mxu0 0.0
    %2092 = vmatpush1.msra.mxu0 %v135
    %2093 = vmatprep.subr.mxu0 0.0
    %2094 = vmatpush1.msra.mxu0 %v136
    %2095 = vmatprep.subr.mxu0 0.0
    %2096 = vmatpush1.msra.mxu0 %v137
    %2097 = vmatprep.subr.mxu0 0.0
    %2098 = vmatpush1.msra.mxu0 0.0
    %2099 = vmatprep.subr.mxu0 0.0
    %2100 = vmatpush1.msra.mxu0 0.0
    %2101 = vmatprep.subr.mxu0 0.0
    %2102 = vmatpush1.msra.mxu0 0.0
    %2103 = vmatprep.subr.mxu0 0.0
    %2104 = vmatpush1.msra.mxu0 0.0
    %2105 = vmatprep.subr.mxu0 0.0
    %2106 = vmatpush1.msra.mxu0 0.0
    %2107 = vmatprep.subr.mxu0 0.0
    %2108 = vmatpush1.msra.mxu0 0.0
    %2109 = vmatprep.subr.mxu0 0.0
    %2110 = vmatpush1.msra.mxu0 0.0
    %2111 = vmatprep.subr.mxu0 0.0
    %2112 = vmatpush1.msra.mxu0 0.0
    %2113 = vmatprep.subr.mxu0 0.0
    %2114 = vmatpush1.msra.mxu0 0.0
    %2115 = vmatprep.subr.mxu0 0.0
    %2116 = vmatpush1.msra.mxu0 0.0
    %2117 = vmatprep.subr.mxu0 0.0
    %2118 = vmatpush1.msra.mxu0 0.0
    %2119 = vmatprep.subr.mxu0 0.0
    %2120 = vmatpush1.msra.mxu0 0.0
    %2121 = vmatprep.subr.mxu0 0.0
    %2122 = vmatpush1.msra.mxu0 0.0
    %2123 = vmatprep.subr.mxu0 0.0
    %2124 = vmatpush1.msra.mxu0 0.0
    %2125 = vmatprep.subr.mxu0 0.0
    %2126 = vmatpush1.msra.mxu0 0.0
    %2127 = vmatprep.subr.mxu0 0.0
    %2128 = vmatpush1.msra.mxu0 0.0
    %2129 = vmatprep.subr.mxu0 0.0
    %2130 = vmatpush1.msra.mxu0 0.0
    %2131 = vmatprep.subr.mxu0 0.0
    %2132 = vmatpush1.msra.mxu0 0.0
    %2133 = vmatprep.subr.mxu0 0.0
    %2134 = vmatpush1.msra.mxu0 0.0
    %2135 = vmatprep.subr.mxu0 0.0
    %2136 = vmatpush1.msra.mxu0 0.0
    %2137 = vmatprep.subr.mxu0 0.0
    %2138 = vmatpush1.msra.mxu0 0.0
    %2139 = vmatprep.subr.mxu0 0.0
    %2140 = vmatpush1.msra.mxu0 0.0
    %2141 = vmatprep.subr.mxu0 0.0
    %2142 = vmatpush1.msra.mxu0 0.0
    %2143 = vmatprep.subr.mxu0 0.0
    %2144 = vmatpush1.msra.mxu0 0.0
    %2145 = vmatprep.subr.mxu0 0.0
    %2146 = vmatpush1.msra.mxu0 0.0
    %2147 = vmatprep.subr.mxu0 0.0
    %2148 = vmatpush1.msra.mxu0 0.0
    %2149 = vmatprep.subr.mxu0 0.0
    %2150 = vmatpush1.msra.mxu0 0.0
    %2151 = vmatprep.subr.mxu0 0.0
    %2152 = vmatpush1.msra.mxu0 0.0
    %2153 = vmatprep.mubr.f32.mxu0 0.0
    %2154 = vmatmul.mubr.f32.gmra.mrb[0].mxu0 %v2087
    %v2155 = vpop.f32.mrb[0].mxu0
    %v2156 = vadd.f32 0.0, %v2155
    %v2157 = vpop.f32.mrb[0].mxu0
    %2158 = vdwg.mxu0
    %v2159 = vadd.f32 %v2081, %v2156
    %v2160 = vxor.u32 %v2159, 2147483648
    %v2161 = vmul.f32 %v2160, 1.442695
    %v2162 = vpow.pop %v2161
    %v2163 = vadd.f32 %v2162, 1.0
    %v2164 = vrcp.pop %v2163
    %v2165 = vmul.f32 1.0, %v2164
    %v2166 = vtanh.pop %v2159
    %v2167 = vmul.f32 %v2165, %v1900
    %2169 = vrot.lane.b32.xlu0 %v2166, 64
    %v2170 = vpop.permute.xlu0 %2169
    %v2172 = vmul.f32 %v2165, %v2170
    %2174 = vrot.lane.b32.xlu0 %v2172, 32
    %v2175 = vpop.permute.xlu0 %2174
    %v2177 = vadd.f32 %v2167, %v2175
    %v2178 = vtanh.pop %v2177
    %2180 = vrot.lane.b32.xlu0 %v2178, 64
    %v2181 = vpop.permute.xlu0 %2180
    %v2183 = vmul.f32 %v2165, %v2181
    %2184 = vmatprep.subr.mxu0 0.0
    %2185 = vmatpush1.msra.mxu0 %v130
    %2186 = vmatprep.subr.mxu0 0.0
    %2187 = vmatpush1.msra.mxu0 %v131
    %2188 = vmatprep.subr.mxu0 0.0
    %2189 = vmatpush1.msra.mxu0 %v132
    %2190 = vmatprep.subr.mxu0 0.0
    %2191 = vmatpush1.msra.mxu0 %v133
    %2192 = vmatprep.subr.mxu0 0.0
    %2193 = vmatpush1.msra.mxu0 0.0
    %2194 = vmatprep.subr.mxu0 0.0
    %2195 = vmatpush1.msra.mxu0 0.0
    %2196 = vmatprep.subr.mxu0 0.0
    %2197 = vmatpush1.msra.mxu0 0.0
    %2198 = vmatprep.subr.mxu0 0.0
    %2199 = vmatpush1.msra.mxu0 0.0
    %2200 = vmatprep.subr.mxu0 0.0
    %2201 = vmatpush1.msra.mxu0 0.0
    %2202 = vmatprep.subr.mxu0 0.0
    %2203 = vmatpush1.msra.mxu0 0.0
    %2204 = vmatprep.subr.mxu0 0.0
    %2205 = vmatpush1.msra.mxu0 0.0
    %2206 = vmatprep.subr.mxu0 0.0
    %2207 = vmatpush1.msra.mxu0 0.0
    %2208 = vmatprep.subr.mxu0 0.0
    %2209 = vmatpush1.msra.mxu0 0.0
    %2210 = vmatprep.subr.mxu0 0.0
    %2211 = vmatpush1.msra.mxu0 0.0
    %2212 = vmatprep.subr.mxu0 0.0
    %2213 = vmatpush1.msra.mxu0 0.0
    %2214 = vmatprep.subr.mxu0 0.0
    %2215 = vmatpush1.msra.mxu0 0.0
    %2216 = vmatprep.subr.mxu0 0.0
    %2217 = vmatpush1.msra.mxu0 0.0
    %2218 = vmatprep.subr.mxu0 0.0
    %2219 = vmatpush1.msra.mxu0 0.0
    %2220 = vmatprep.subr.mxu0 0.0
    %2221 = vmatpush1.msra.mxu0 0.0
    %2222 = vmatprep.subr.mxu0 0.0
    %2223 = vmatpush1.msra.mxu0 0.0
    %2224 = vmatprep.subr.mxu0 0.0
    %2225 = vmatpush1.msra.mxu0 0.0
    %2226 = vmatprep.subr.mxu0 0.0
    %2227 = vmatpush1.msra.mxu0 0.0
    %2228 = vmatprep.subr.mxu0 0.0
    %2229 = vmatpush1.msra.mxu0 0.0
    %2230 = vmatprep.subr.mxu0 0.0
    %2231 = vmatpush1.msra.mxu0 0.0
    %2232 = vmatprep.subr.mxu0 0.0
    %2233 = vmatpush1.msra.mxu0 0.0
    %2234 = vmatprep.subr.mxu0 0.0
    %2235 = vmatpush1.msra.mxu0 0.0
    %2236 = vmatprep.subr.mxu0 0.0
    %2237 = vmatpush1.msra.mxu0 0.0
    %2238 = vmatprep.subr.mxu0 0.0
    %2239 = vmatpush1.msra.mxu0 0.0
    %2240 = vmatprep.subr.mxu0 0.0
    %2241 = vmatpush1.msra.mxu0 0.0
    %2242 = vmatprep.subr.mxu0 0.0
    %2243 = vmatpush1.msra.mxu0 0.0
    %2244 = vmatprep.subr.mxu0 0.0
    %2245 = vmatpush1.msra.mxu0 0.0
    %2246 = vmatprep.subr.mxu0 0.0
    %2247 = vmatpush1.msra.mxu0 0.0
    %2248 = vmatprep.mubr.f32.mxu0 0.0
    %2249 = vmatmul.mubr.f32.gmra.mrb[0].mxu0 %v2012
    %v2250 = vpop.f32.mrb[0].mxu0
    %v2251 = vadd.f32 0.0, %v2250
    %v2252 = vpop.f32.mrb[0].mxu0
    %2253 = vdwg.mxu0
    %v2255 = vrot.slane %v2251, 2
    %v2257 = vadd.f32 %v231, %v2255
    %v2258 = vxor.u32 %v2257, 2147483648
    %v2259 = vmul.f32 %v2258, 1.442695
    %v2260 = vpow.pop %v2259
    %v2261 = vadd.f32 %v2260, 1.0
    %v2262 = vrcp.pop %v2261
    %v2263 = vmul.f32 1.0, %v2262
    %v2264 = vtanh.pop %v2257
    %v2266 = vrot.slane %v2001, 6
    %v2268 = vmul.f32 %v2263, %v2266
    %2270 = vrot.lane.b32.xlu0 %v2264, 64
    %v2271 = vpop.permute.xlu0 %2270
    %v2273 = vmul.f32 %v2263, %v2271
    %2275 = vrot.lane.b32.xlu0 %v2273, 32
    %v2276 = vpop.permute.xlu0 %2275
    %v2278 = vadd.f32 %v2268, %v2276
    %v2279 = vtanh.pop %v2278
    %2281 = vrot.lane.b32.xlu0 %v2279, 64
    %v2282 = vpop.permute.xlu0 %2281
    %v2284 = vmul.f32 %v2263, %v2282
    %v2286 = vrot.slane %v2284, 6
    %2287 = vrot.lane.b32.xlu0 %v2286, 32
    %v2288 = vpop.permute.xlu0 %2287
    %v2289 = vsel %vm240, %v2288, 0
    %2291 = vmatprep.subr.mxu0 0.0
    %2292 = vmatpush1.msra.mxu0 %v126
    %2293 = vmatprep.subr.mxu0 0.0
    %2294 = vmatpush1.msra.mxu0 %v127
    %2295 = vmatprep.subr.mxu0 0.0
    %2296 = vmatpush1.msra.mxu0 %v128
    %2297 = vmatprep.subr.mxu0 0.0
    %2298 = vmatpush1.msra.mxu0 %v129
    %2299 = vmatprep.subr.mxu0 0.0
    %2300 = vmatpush1.msra.mxu0 0.0
    %2301 = vmatprep.subr.mxu0 0.0
    %2302 = vmatpush1.msra.mxu0 0.0
    %2303 = vmatprep.subr.mxu0 0.0
    %2304 = vmatpush1.msra.mxu0 0.0
    %2305 = vmatprep.subr.mxu0 0.0
    %2306 = vmatpush1.msra.mxu0 0.0
    %2307 = vmatprep.subr.mxu0 0.0
    %2308 = vmatpush1.msra.mxu0 0.0
    %2309 = vmatprep.subr.mxu0 0.0
    %2310 = vmatpush1.msra.mxu0 0.0
    %2311 = vmatprep.subr.mxu0 0.0
    %2312 = vmatpush1.msra.mxu0 0.0
    %2313 = vmatprep.subr.mxu0 0.0
    %2314 = vmatpush1.msra.mxu0 0.0
    %2315 = vmatprep.subr.mxu0 0.0
    %2316 = vmatpush1.msra.mxu0 0.0
    %2317 = vmatprep.subr.mxu0 0.0
    %2318 = vmatpush1.msra.mxu0 0.0
    %2319 = vmatprep.subr.mxu0 0.0
    %2320 = vmatpush1.msra.mxu0 0.0
    %2321 = vmatprep.subr.mxu0 0.0
    %2322 = vmatpush1.msra.mxu0 0.0
    %2323 = vmatprep.subr.mxu0 0.0
    %2324 = vmatpush1.msra.mxu0 0.0
    %2325 = vmatprep.subr.mxu0 0.0
    %2326 = vmatpush1.msra.mxu0 0.0
    %2327 = vmatprep.subr.mxu0 0.0
    %2328 = vmatpush1.msra.mxu0 0.0
    %2329 = vmatprep.subr.mxu0 0.0
    %2330 = vmatpush1.msra.mxu0 0.0
    %2331 = vmatprep.subr.mxu0 0.0
    %2332 = vmatpush1.msra.mxu0 0.0
    %2333 = vmatprep.subr.mxu0 0.0
    %2334 = vmatpush1.msra.mxu0 0.0
    %2335 = vmatprep.subr.mxu0 0.0
    %2336 = vmatpush1.msra.mxu0 0.0
    %2337 = vmatprep.subr.mxu0 0.0
    %2338 = vmatpush1.msra.mxu0 0.0
    %2339 = vmatprep.subr.mxu0 0.0
    %2340 = vmatpush1.msra.mxu0 0.0
    %2341 = vmatprep.subr.mxu0 0.0
    %2342 = vmatpush1.msra.mxu0 0.0
    %2343 = vmatprep.subr.mxu0 0.0
    %2344 = vmatpush1.msra.mxu0 0.0
    %2345 = vmatprep.subr.mxu0 0.0
    %2346 = vmatpush1.msra.mxu0 0.0
    %2347 = vmatprep.subr.mxu0 0.0
    %2348 = vmatpush1.msra.mxu0 0.0
    %2349 = vmatprep.subr.mxu0 0.0
    %2350 = vmatpush1.msra.mxu0 0.0
    %2351 = vmatprep.subr.mxu0 0.0
    %2352 = vmatpush1.msra.mxu0 0.0
    %2353 = vmatprep.subr.mxu0 0.0
    %2354 = vmatpush1.msra.mxu0 0.0
    %2355 = vmatprep.mubr.f32.mxu0 0.0
    %2356 = vmatmul.mubr.f32.gmra.mrb[0].mxu0 %v2289
    %v2357 = vpop.f32.mrb[0].mxu0
    %v2358 = vadd.f32 %v347, %v2357
    %v2359 = vpop.f32.mrb[0].mxu0
    %2360 = vdwg.mxu0
    %2362 = vrot.lane.b32.xlu0 %v2183, 32
    %v2363 = vpop.permute.xlu0 %2362
    %v2364 = vsel %vm240, %v2363, 0
    %2366 = vmatprep.subr.mxu0 0.0
    %2367 = vmatpush1.msra.mxu0 %v134
    %2368 = vmatprep.subr.mxu0 0.0
    %2369 = vmatpush1.msra.mxu0 %v135
    %2370 = vmatprep.subr.mxu0 0.0
    %2371 = vmatpush1.msra.mxu0 %v136
    %2372 = vmatprep.subr.mxu0 0.0
    %2373 = vmatpush1.msra.mxu0 %v137
    %2374 = vmatprep.subr.mxu0 0.0
    %2375 = vmatpush1.msra.mxu0 0.0
    %2376 = vmatprep.subr.mxu0 0.0
    %2377 = vmatpush1.msra.mxu0 0.0
    %2378 = vmatprep.subr.mxu0 0.0
    %2379 = vmatpush1.msra.mxu0 0.0
    %2380 = vmatprep.subr.mxu0 0.0
    %2381 = vmatpush1.msra.mxu0 0.0
    %2382 = vmatprep.subr.mxu0 0.0
    %2383 = vmatpush1.msra.mxu0 0.0
    %2384 = vmatprep.subr.mxu0 0.0
    %2385 = vmatpush1.msra.mxu0 0.0
    %2386 = vmatprep.subr.mxu0 0.0
    %2387 = vmatpush1.msra.mxu0 0.0
    %2388 = vmatprep.subr.mxu0 0.0
    %2389 = vmatpush1.msra.mxu0 0.0
    %2390 = vmatprep.subr.mxu0 0.0
    %2391 = vmatpush1.msra.mxu0 0.0
    %2392 = vmatprep.subr.mxu0 0.0
    %2393 = vmatpush1.msra.mxu0 0.0
    %2394 = vmatprep.subr.mxu0 0.0
    %2395 = vmatpush1.msra.mxu0 0.0
    %2396 = vmatprep.subr.mxu0 0.0
    %2397 = vmatpush1.msra.mxu0 0.0
    %2398 = vmatprep.subr.mxu0 0.0
    %2399 = vmatpush1.msra.mxu0 0.0
    %2400 = vmatprep.subr.mxu0 0.0
    %2401 = vmatpush1.msra.mxu0 0.0
    %2402 = vmatprep.subr.mxu0 0.0
    %2403 = vmatpush1.msra.mxu0 0.0
    %2404 = vmatprep.subr.mxu0 0.0
    %2405 = vmatpush1.msra.mxu0 0.0
    %2406 = vmatprep.subr.mxu0 0.0
    %2407 = vmatpush1.msra.mxu0 0.0
    %2408 = vmatprep.subr.mxu0 0.0
    %2409 = vmatpush1.msra.mxu0 0.0
    %2410 = vmatprep.subr.mxu0 0.0
    %2411 = vmatpush1.msra.mxu0 0.0
    %2412 = vmatprep.subr.mxu0 0.0
    %2413 = vmatpush1.msra.mxu0 0.0
    %2414 = vmatprep.subr.mxu0 0.0
    %2415 = vmatpush1.msra.mxu0 0.0
    %2416 = vmatprep.subr.mxu0 0.0
    %2417 = vmatpush1.msra.mxu0 0.0
    %2418 = vmatprep.subr.mxu0 0.0
    %2419 = vmatpush1.msra.mxu0 0.0
    %2420 = vmatprep.subr.mxu0 0.0
    %2421 = vmatpush1.msra.mxu0 0.0
    %2422 = vmatprep.subr.mxu0 0.0
    %2423 = vmatpush1.msra.mxu0 0.0
    %2424 = vmatprep.subr.mxu0 0.0
    %2425 = vmatpush1.msra.mxu0 0.0
    %2426 = vmatprep.subr.mxu0 0.0
    %2427 = vmatpush1.msra.mxu0 0.0
    %2428 = vmatprep.subr.mxu0 0.0
    %2429 = vmatpush1.msra.mxu0 0.0
    %2430 = vmatprep.mubr.f32.mxu0 0.0
    %2431 = vmatmul.mubr.f32.gmra.mrb[0].mxu0 %v2364
    %v2432 = vpop.f32.mrb[0].mxu0
    %v2433 = vadd.f32 0.0, %v2432
    %v2434 = vpop.f32.mrb[0].mxu0
    %2435 = vdwg.mxu0
    %v2436 = vadd.f32 %v2358, %v2433
    %v2437 = vxor.u32 %v2436, 2147483648
    %v2438 = vmul.f32 %v2437, 1.442695
    %v2439 = vpow.pop %v2438
    %v2440 = vadd.f32 %v2439, 1.0
    %v2441 = vrcp.pop %v2440
    %v2442 = vmul.f32 1.0, %v2441
    %v2443 = vtanh.pop %v2436
    %v2444 = vmul.f32 %v2442, %v2177
    %2446 = vrot.lane.b32.xlu0 %v2443, 64
    %v2447 = vpop.permute.xlu0 %2446
    %v2449 = vmul.f32 %v2442, %v2447
    %2451 = vrot.lane.b32.xlu0 %v2449, 32
    %v2452 = vpop.permute.xlu0 %2451
    %v2454 = vadd.f32 %v2444, %v2452
    %v2455 = vtanh.pop %v2454
    %2457 = vrot.lane.b32.xlu0 %v2455, 64
    %v2458 = vpop.permute.xlu0 %2457
    %v2460 = vmul.f32 %v2442, %v2458
    %2461 = vrot.lane.b32.xlu0 %v2284, 32
    %v2462 = vpop.permute.xlu0 %2461
    %vm2464 = vcmask 261126
    %2465 = vst.msk [vmem:[#allocation13 - $0x6] sm:$0xc0] %vm2464, %v2462
    %2467 = vrot.lane.b32.xlu0 %v2278, 96
    %v2468 = vpop.permute.xlu0 %2467
    %2470 = vst.msk [vmem:[#allocation14 - $0x6] sm:$0xc0] %vm2464, %v2468
    %2472 = vrot.lane.b32.xlu0 %v2460, 32
    %v2473 = vpop.permute.xlu0 %2472
    %s2475 = scalar_lea.vmem [#allocation13], 2
    %vm2476 = vcmask 254976
    %2477 = vst.msk [vmem:[%s2475] sm:$0x3] %vm2476, %v2473
    %2479 = vrot.lane.b32.xlu0 %v2454, 96
    %v2480 = vpop.permute.xlu0 %2479
    %s2482 = scalar_lea.vmem [#allocation14], 2
    %2483 = vst.msk [vmem:[%s2482] sm:$0x3] %vm2476, %v2480
    %v2484 = vrot.slane %v802, 6
    %v2486 = vrot.slane %v1079, 4
    %v2488 = vrot.slane %v1356, 2
    %v2490 = vrot.slane %v1906, 6
    %v2492 = vrot.slane %v2183, 4
    %v2494 = vrot.slane %v2460, 2
    %vm2496 = vcmask 1041408
    %v2497 = vsel %vm2496, %v525, %v2484
    %v2498 = vsel %vm155, %v2497, %v2486
    %vm2499 = vcmask 1045504
    %v2500 = vsel %vm2499, %v2498, %v2488
    %v2501 = vsel %vm2496, %v1629, %v2490
    %v2502 = vsel %vm155, %v2501, %v2492
    %v2503 = vsel %vm2499, %v2502, %v2494
    %v2504 = vld [vmem:[%s9] sm:$0xff]
    %v2505 = vld [vmem:[%s9 + $0x8] sm:$0xff]
    %v2506 = vld [vmem:[%s9 + $0x10] sm:$0xff]
    %v2507 = vld [vmem:[%s9 + $0x18] sm:$0xff]
    %v2508 = vld [vmem:[#allocation10] sm:$0x1]
    %v2510 = vlaneseq
    %v2511 = vshrl.u32 %v2510, 7
    %v2512 = vsub.s32 0, %v2511
    %v2513 = vrot.slane %v2508, %v2512
    %2517 = vrot.lane.b32.xlu0 %v2500, 32
    %v2518 = vpop.permute.xlu0 %2517
    %2519 = vrot.lane.b32.xlu0 %v2503, 32
    %v2520 = vpop.permute.xlu0 %2519
    %v2521 = vsel %vm240, %v2518, 0
    %v2523 = vsel %vm240, %v2520, 0
    %2525 = vmatprep.subr.mxu0 0.0
    %2526 = vmatpush1.msra.mxu0 %v2504
    %2527 = vmatprep.subr.mxu0 0.0
    %2528 = vmatpush1.msra.mxu0 %v2505
    %2529 = vmatprep.subr.mxu0 0.0
    %2530 = vmatpush1.msra.mxu0 %v2506
    %2531 = vmatprep.subr.mxu0 0.0
    %2532 = vmatpush1.msra.mxu0 %v2507
    %2533 = vmatprep.subr.mxu0 0.0
    %2534 = vmatpush1.msra.mxu0 0.0
    %2535 = vmatprep.subr.mxu0 0.0
    %2536 = vmatpush1.msra.mxu0 0.0
    %2537 = vmatprep.subr.mxu0 0.0
    %2538 = vmatpush1.msra.mxu0 0.0
    %2539 = vmatprep.subr.mxu0 0.0
    %2540 = vmatpush1.msra.mxu0 0.0
    %2541 = vmatprep.subr.mxu0 0.0
    %2542 = vmatpush1.msra.mxu0 0.0
    %2543 = vmatprep.subr.mxu0 0.0
    %2544 = vmatpush1.msra.mxu0 0.0
    %2545 = vmatprep.subr.mxu0 0.0
    %2546 = vmatpush1.msra.mxu0 0.0
    %2547 = vmatprep.subr.mxu0 0.0
    %2548 = vmatpush1.msra.mxu0 0.0
    %2549 = vmatprep.subr.mxu0 0.0
    %2550 = vmatpush1.msra.mxu0 0.0
    %2551 = vmatprep.subr.mxu0 0.0
    %2552 = vmatpush1.msra.mxu0 0.0
    %2553 = vmatprep.subr.mxu0 0.0
    %2554 = vmatpush1.msra.mxu0 0.0
    %2555 = vmatprep.subr.mxu0 0.0
    %2556 = vmatpush1.msra.mxu0 0.0
    %2557 = vmatprep.subr.mxu0 0.0
    %2558 = vmatpush1.msra.mxu0 0.0
    %2559 = vmatprep.subr.mxu0 0.0
    %2560 = vmatpush1.msra.mxu0 0.0
    %2561 = vmatprep.subr.mxu0 0.0
    %2562 = vmatpush1.msra.mxu0 0.0
    %2563 = vmatprep.subr.mxu0 0.0
    %2564 = vmatpush1.msra.mxu0 0.0
    %2565 = vmatprep.subr.mxu0 0.0
    %2566 = vmatpush1.msra.mxu0 0.0
    %2567 = vmatprep.subr.mxu0 0.0
    %2568 = vmatpush1.msra.mxu0 0.0
    %2569 = vmatprep.subr.mxu0 0.0
    %2570 = vmatpush1.msra.mxu0 0.0
    %2571 = vmatprep.subr.mxu0 0.0
    %2572 = vmatpush1.msra.mxu0 0.0
    %2573 = vmatprep.subr.mxu0 0.0
    %2574 = vmatpush1.msra.mxu0 0.0
    %2575 = vmatprep.subr.mxu0 0.0
    %2576 = vmatpush1.msra.mxu0 0.0
    %2577 = vmatprep.subr.mxu0 0.0
    %2578 = vmatpush1.msra.mxu0 0.0
    %2579 = vmatprep.subr.mxu0 0.0
    %2580 = vmatpush1.msra.mxu0 0.0
    %2581 = vmatprep.subr.mxu0 0.0
    %2582 = vmatpush1.msra.mxu0 0.0
    %2583 = vmatprep.subr.mxu0 0.0
    %2584 = vmatpush1.msra.mxu0 0.0
    %2585 = vmatprep.subr.mxu0 0.0
    %2586 = vmatpush1.msra.mxu0 0.0
    %2587 = vmatprep.subr.mxu0 0.0
    %2588 = vmatpush1.msra.mxu0 0.0
    %2589 = vmatprep.mubr.f32.mxu0 0.0
    %2590 = vmatmul.mubr.f32.gmra.mrb[0].mxu0 %v2521
    %v2591 = vpop.f32.mrb[0].mxu0
    %v2592 = vadd.f32 %v2513, %v2591
    %v2593 = vpop.f32.mrb[0].mxu0
    %2594 = vmatprep.mubr.f32.mxu0 0.0
    %2595 = vmatmul.mubr.f32.gmra.mrb[0].mxu0 %v2523
    %v2596 = vpop.f32.mrb[0].mxu0
    %v2597 = vadd.f32 %v2513, %v2596
    %v2598 = vpop.f32.mrb[0].mxu0
    %2599 = vdwg.mxu0
    %v2600 = vmax.f32 %v2592, 0.0
    %v2601 = vmax.f32 %v2597, 0.0
    %s2602 = scalar_lea.vmem %s9, 32
    %v2603 = vld [vmem:[%s2602] sm:$0xff]
    %v2604 = vld [vmem:[%s2602 + $0x8] sm:$0xff]
    %v2605 = vld [vmem:[%s2602 + $0x10] sm:$0xff]
    %v2606 = vld [vmem:[%s2602 + $0x18] sm:$0xff]
    %s2607 = scalar_lea.vmem [#allocation10], 1
    %v2608 = vld [vmem:[%s2607] sm:$0x1]
    %v2610 = vlaneseq
    %v2611 = vshrl.u32 %v2610, 7
    %v2612 = vsub.s32 0, %v2611
    %v2613 = vrot.slane %v2608, %v2612
    %v2616 = vsel %vm240, %v2600, 0
    %v2619 = vsel %vm240, %v2601, 0
    %2621 = vmatprep.subr.mxu0 0.0
    %2622 = vmatpush1.msra.mxu0 %v2603
    %2623 = vmatprep.subr.mxu0 0.0
    %2624 = vmatpush1.msra.mxu0 %v2604
    %2625 = vmatprep.subr.mxu0 0.0
    %2626 = vmatpush1.msra.mxu0 %v2605
    %2627 = vmatprep.subr.mxu0 0.0
    %2628 = vmatpush1.msra.mxu0 %v2606
    %2629 = vmatprep.subr.mxu0 0.0
    %2630 = vmatpush1.msra.mxu0 0.0
    %2631 = vmatprep.subr.mxu0 0.0
    %2632 = vmatpush1.msra.mxu0 0.0
    %2633 = vmatprep.subr.mxu0 0.0
    %2634 = vmatpush1.msra.mxu0 0.0
    %2635 = vmatprep.subr.mxu0 0.0
    %2636 = vmatpush1.msra.mxu0 0.0
    %2637 = vmatprep.subr.mxu0 0.0
    %2638 = vmatpush1.msra.mxu0 0.0
    %2639 = vmatprep.subr.mxu0 0.0
    %2640 = vmatpush1.msra.mxu0 0.0
    %2641 = vmatprep.subr.mxu0 0.0
    %2642 = vmatpush1.msra.mxu0 0.0
    %2643 = vmatprep.subr.mxu0 0.0
    %2644 = vmatpush1.msra.mxu0 0.0
    %2645 = vmatprep.subr.mxu0 0.0
    %2646 = vmatpush1.msra.mxu0 0.0
    %2647 = vmatprep.subr.mxu0 0.0
    %2648 = vmatpush1.msra.mxu0 0.0
    %2649 = vmatprep.subr.mxu0 0.0
    %2650 = vmatpush1.msra.mxu0 0.0
    %2651 = vmatprep.subr.mxu0 0.0
    %2652 = vmatpush1.msra.mxu0 0.0
    %2653 = vmatprep.subr.mxu0 0.0
    %2654 = vmatpush1.msra.mxu0 0.0
    %2655 = vmatprep.subr.mxu0 0.0
    %2656 = vmatpush1.msra.mxu0 0.0
    %2657 = vmatprep.subr.mxu0 0.0
    %2658 = vmatpush1.msra.mxu0 0.0
    %2659 = vmatprep.subr.mxu0 0.0
    %2660 = vmatpush1.msra.mxu0 0.0
    %2661 = vmatprep.subr.mxu0 0.0
    %2662 = vmatpush1.msra.mxu0 0.0
    %2663 = vmatprep.subr.mxu0 0.0
    %2664 = vmatpush1.msra.mxu0 0.0
    %2665 = vmatprep.subr.mxu0 0.0
    %2666 = vmatpush1.msra.mxu0 0.0
    %2667 = vmatprep.subr.mxu0 0.0
    %2668 = vmatpush1.msra.mxu0 0.0
    %2669 = vmatprep.subr.mxu0 0.0
    %2670 = vmatpush1.msra.mxu0 0.0
    %2671 = vmatprep.subr.mxu0 0.0
    %2672 = vmatpush1.msra.mxu0 0.0
    %2673 = vmatprep.subr.mxu0 0.0
    %2674 = vmatpush1.msra.mxu0 0.0
    %2675 = vmatprep.subr.mxu0 0.0
    %2676 = vmatpush1.msra.mxu0 0.0
    %2677 = vmatprep.subr.mxu0 0.0
    %2678 = vmatpush1.msra.mxu0 0.0
    %2679 = vmatprep.subr.mxu0 0.0
    %2680 = vmatpush1.msra.mxu0 0.0
    %2681 = vmatprep.subr.mxu0 0.0
    %2682 = vmatpush1.msra.mxu0 0.0
    %2683 = vmatprep.subr.mxu0 0.0
    %2684 = vmatpush1.msra.mxu0 0.0
    %2685 = vmatprep.mubr.f32.mxu0 0.0
    %2686 = vmatmul.mubr.f32.gmra.mrb[0].mxu0 %v2616
    %v2687 = vpop.f32.mrb[0].mxu0
    %v2688 = vadd.f32 %v2613, %v2687
    %v2689 = vpop.f32.mrb[0].mxu0
    %2690 = vmatprep.mubr.f32.mxu0 0.0
    %2691 = vmatmul.mubr.f32.gmra.mrb[0].mxu0 %v2619
    %v2692 = vpop.f32.mrb[0].mxu0
    %v2693 = vadd.f32 %v2613, %v2692
    %v2694 = vpop.f32.mrb[0].mxu0
    %2695 = vdwg.mxu0
    %v2696 = vmax.f32 %v2688, 0.0
    %v2697 = vmax.f32 %v2693, 0.0
    %v2698 = vld [vmem:[%s11] sm:$0xff]
    %v2699 = vld [vmem:[%s11 + $0x8] sm:$0xff]
    %v2700 = vld [vmem:[%s11 + $0x10] sm:$0xff]
    %v2701 = vld [vmem:[%s11 + $0x18] sm:$0xff]
    %v2702 = vld [vmem:[#allocation11] sm:$0x1]
    %v2704 = vlaneseq
    %v2705 = vshrl.u32 %v2704, 7
    %v2706 = vsub.s32 0, %v2705
    %v2707 = vrot.slane %v2702, %v2706
    %v2710 = vsel %vm240, %v2696, 0
    %v2713 = vsel %vm240, %v2697, 0
    %2715 = vmatprep.subr.mxu0 0.0
    %2716 = vmatpush1.msra.mxu0 %v2698
    %2717 = vmatprep.subr.mxu0 0.0
    %2718 = vmatpush1.msra.mxu0 %v2699
    %2719 = vmatprep.subr.mxu0 0.0
    %2720 = vmatpush1.msra.mxu0 %v2700
    %2721 = vmatprep.subr.mxu0 0.0
    %2722 = vmatpush1.msra.mxu0 %v2701
    %2723 = vmatprep.subr.mxu0 0.0
    %2724 = vmatpush1.msra.mxu0 0.0
    %2725 = vmatprep.subr.mxu0 0.0
    %2726 = vmatpush1.msra.mxu0 0.0
    %2727 = vmatprep.subr.mxu0 0.0
    %2728 = vmatpush1.msra.mxu0 0.0
    %2729 = vmatprep.subr.mxu0 0.0
    %2730 = vmatpush1.msra.mxu0 0.0
    %2731 = vmatprep.subr.mxu0 0.0
    %2732 = vmatpush1.msra.mxu0 0.0
    %2733 = vmatprep.subr.mxu0 0.0
    %2734 = vmatpush1.msra.mxu0 0.0
    %2735 = vmatprep.subr.mxu0 0.0
    %2736 = vmatpush1.msra.mxu0 0.0
    %2737 = vmatprep.subr.mxu0 0.0
    %2738 = vmatpush1.msra.mxu0 0.0
    %2739 = vmatprep.subr.mxu0 0.0
    %2740 = vmatpush1.msra.mxu0 0.0
    %2741 = vmatprep.subr.mxu0 0.0
    %2742 = vmatpush1.msra.mxu0 0.0
    %2743 = vmatprep.subr.mxu0 0.0
    %2744 = vmatpush1.msra.mxu0 0.0
    %2745 = vmatprep.subr.mxu0 0.0
    %2746 = vmatpush1.msra.mxu0 0.0
    %2747 = vmatprep.subr.mxu0 0.0
    %2748 = vmatpush1.msra.mxu0 0.0
    %2749 = vmatprep.subr.mxu0 0.0
    %2750 = vmatpush1.msra.mxu0 0.0
    %2751 = vmatprep.subr.mxu0 0.0
    %2752 = vmatpush1.msra.mxu0 0.0
    %2753 = vmatprep.subr.mxu0 0.0
    %2754 = vmatpush1.msra.mxu0 0.0
    %2755 = vmatprep.subr.mxu0 0.0
    %2756 = vmatpush1.msra.mxu0 0.0
    %2757 = vmatprep.subr.mxu0 0.0
    %2758 = vmatpush1.msra.mxu0 0.0
    %2759 = vmatprep.subr.mxu0 0.0
    %2760 = vmatpush1.msra.mxu0 0.0
    %2761 = vmatprep.subr.mxu0 0.0
    %2762 = vmatpush1.msra.mxu0 0.0
    %2763 = vmatprep.subr.mxu0 0.0
    %2764 = vmatpush1.msra.mxu0 0.0
    %2765 = vmatprep.subr.mxu0 0.0
    %2766 = vmatpush1.msra.mxu0 0.0
    %2767 = vmatprep.subr.mxu0 0.0
    %2768 = vmatpush1.msra.mxu0 0.0
    %2769 = vmatprep.subr.mxu0 0.0
    %2770 = vmatpush1.msra.mxu0 0.0
    %2771 = vmatprep.subr.mxu0 0.0
    %2772 = vmatpush1.msra.mxu0 0.0
    %2773 = vmatprep.subr.mxu0 0.0
    %2774 = vmatpush1.msra.mxu0 0.0
    %2775 = vmatprep.subr.mxu0 0.0
    %2776 = vmatpush1.msra.mxu0 0.0
    %2777 = vmatprep.subr.mxu0 0.0
    %2778 = vmatpush1.msra.mxu0 0.0
    %2779 = vmatprep.mubr.f32.mxu0 0.0
    %2780 = vmatmul.mubr.f32.gmra.mrb[0].mxu0 %v2710
    %v2781 = vpop.f32.mrb[0].mxu0
    %v2782 = vadd.f32 %v2707, %v2781
    %v2783 = vpop.f32.mrb[0].mxu0
    %2784 = vmatprep.mubr.f32.mxu0 0.0
    %2785 = vmatmul.mubr.f32.gmra.mrb[0].mxu0 %v2713
    %v2786 = vpop.f32.mrb[0].mxu0
    %v2787 = vadd.f32 %v2707, %v2786
    %v2788 = vpop.f32.mrb[0].mxu0
    %2789 = vdwg.mxu0
    %2790 = vst.msk [vmem:[%s13] sm:$0xff] %vm148, %v2782
    %2791 = vst.msk [vmem:[%s13 + $0x8] sm:$0xff] %vm148, %v2787
    // Predicated region
    $region78: #{lstm_stacked_forward.1} parent=1 // pred_check
      _
    $region79: #{lstm_stacked_forward.1} parent=1 // pred_check_branch
      %2793 = sbr.rel (0) target = $region81
    $region80: #{lstm_stacked_forward.1} parent=1 // pred_region
      _
    $region81: #{lstm_stacked_forward.1} parent=1 // pred_fallthru
      _
    // Predicated region
    $region82: #{lstm_stacked_forward.1} parent=1 // pred_check
      _
    $region83: #{lstm_stacked_forward.1} parent=1 // pred_check_branch
      %2795 = sbr.rel (0) target = $region85
    $region84: #{lstm_stacked_forward.1} parent=1 // pred_region
      %s2797 = ssub.s32 64, 64
      %2798 = vsyncadd [#allocation4], %s2797
      %s2799 = sshll.u32 [#allocation13], 4
      %s2800 = int_to_ptr.vmem [resolvable:$true] %s2799
      %2805 = dma.vmem_to_hbm [thread:$0]  %s2800, 64, %s14, [#allocation4], 32, 32, 2
    $region85: #{lstm_stacked_forward.1} parent=1 // pred_fallthru
      _
    // Predicated region
    $region86: #{lstm_stacked_forward.1} parent=1 // pred_check
      _
    $region87: #{lstm_stacked_forward.1} parent=1 // pred_check_branch
      %2807 = sbr.rel (0) target = $region89
    $region88: #{lstm_stacked_forward.1} parent=1 // pred_region
      %s2809 = ssub.s32 64, 64
      %2810 = vsyncadd [#allocation15], %s2809
      %s2811 = sshll.u32 [#allocation14], 4
      %s2812 = int_to_ptr.vmem [resolvable:$true] %s2811
      %2817 = dma.vmem_to_hbm [thread:$0]  %s2812, 64, %s15, [#allocation15], 32, 32, 2
    $region89: #{lstm_stacked_forward.1} parent=1 // pred_fallthru
      _
    // Predicated region
    $region90: #{lstm_stacked_forward.1} parent=1 // pred_check
      _
    $region91: #{lstm_stacked_forward.1} parent=1 // pred_check_branch
      %2819 = sbr.rel (0) target = $region93
    $region92: #{lstm_stacked_forward.1} parent=1 // pred_region
      _
    $region93: #{lstm_stacked_forward.1} parent=1 // pred_fallthru
      _
    // Predicated region
    $region94: #{lstm_stacked_forward.1} parent=1 // pred_check
      _
    $region95: #{lstm_stacked_forward.1} parent=1 // pred_check_branch
      %2821 = sbr.rel (0) target = $region97
    $region96: #{lstm_stacked_forward.1} parent=1 // pred_region
      %2822 = dma.done [#allocation4], 64
    $region97: #{lstm_stacked_forward.1} parent=1 // pred_fallthru
      _
    // Predicated region
    $region98: #{lstm_stacked_forward.1} parent=1 // pred_check
      _
    $region99: #{lstm_stacked_forward.1} parent=1 // pred_check_branch
      %2824 = sbr.rel (0) target = $region101
    $region100: #{lstm_stacked_forward.1} parent=1 // pred_region
      %2825 = dma.done [#allocation15], 64
    $region101: #{lstm_stacked_forward.1} parent=1 // pred_fallthru
      _
    %2826 = vsyncpa [#allocation3], 1
    %2827 = vsyncpa [#allocation6], 1
    %2828 = vsyncpa [#allocation9], 1
    %2829 = vsyncpa [#allocation12], 1
    %2830 = vsyncpa [#allocation4], 1
    %2831 = vsyncpa [#allocation15], 1

</llo_original>
